<compile_context>
chip_gen: v7x
topology: tpu7x:2x2x1
jax: 0.10.0
libtpu: 0.0.40
codegen_flags: <defaults>
</compile_context>

<pallas_src>
import jax
import jax.numpy as jnp
import numpy as np
from jax.experimental import pallas as pl
from jax.experimental.pallas import tpu as pltpu


# ---------------------------------------------------------------------------
# Kernel 1: fused 3x3 conv (padding=1) + bias + ReLU + 2x2 maxpool.
# One grid step = one batch element x one row tile (TH_out pooled rows).
# ---------------------------------------------------------------------------
def _conv_pool_kernel(x_top, x_mid, x_bot, w_ref, b_ref, o_ref, slab, rowbuf):
    # x_top/x_bot: (1, 1, W, Cin)       halo rows (neighbouring row tiles)
    # x_mid:       (1, TH_in, W, Cin)   the rows this tile convolves
    # w_ref:       (3, 3*Cin, Cout)     HWIO weights with (kw, cin) merged
    # b_ref:       (1, Cout)
    # o_ref:       (1, TH_out, W2, Cout) pooled output rows
    # slab:        VMEM (TH_in+2, W+2, Cin) zero-padded input window
    # rowbuf:      VMEM (W, Cout) staging buffer for the W-direction pool
    _, th_in, W, Cin = x_mid.shape
    _, th_out, W2, Cout = o_ref.shape
    t = pl.program_id(1)
    T = pl.num_programs(1)

    # Build the zero-padded slab: interior rows + (conditionally) halo rows.
    slab[...] = jnp.zeros_like(slab)
    slab[1:th_in + 1, 1:W + 1, :] = x_mid[0]

    @pl.when(t > 0)
    def _():
        slab[0:1, 1:W + 1, :] = x_top[0]

    @pl.when(t < T - 1)
    def _():
        slab[th_in + 1:th_in + 2, 1:W + 1, :] = x_bot[0]

    # Hoisted bias broadcast (emitted once, reused every row).
    bias = jnp.broadcast_to(b_ref[...], (W, Cout)).astype(jnp.float32)

    if Cin == 1:
        # conv1: 9 broadcast FMAs on the VPU (avoids K=1..3 MXU matmuls).
        def conv_row(r):
            acc = bias
            for kh in range(3):
                row = slab[r + kh]                       # (W+2, 1)
                for kw in range(3):
                    acc = acc + row[kw:kw + W, :] * w_ref[kh, kw:kw + 1, :]
            return acc
    else:
        # conv2/3: fuse the 3 kw taps into one contraction, K = 3*Cin, M = W.
        def conv_row(r):
            acc = bias
            for kh in range(3):
                row = slab[r + kh]                       # (W+2, Cin)
                xk = jnp.concatenate(
                    [row[0:W, :], row[1:W + 1, :], row[2:W + 2, :]], axis=-1)
                acc = acc + jnp.dot(xk, w_ref[kh],
                                    preferred_element_type=jnp.float32)
            return acc

    def body(h2, carry):
        # Two conv rows -> ReLU + row-direction max.
        v = jnp.maximum(jnp.maximum(conv_row(2 * h2), conv_row(2 * h2 + 1)), 0.0)
        rowbuf[...] = v
        # W-direction max via strided loads (even / odd columns).
        pooled = jnp.maximum(rowbuf[pl.ds(0, W2, 2), :],
                             rowbuf[pl.ds(1, W2, 2), :])
        o_ref[0, h2] = pooled.astype(o_ref.dtype)
        return carry

    jax.lax.fori_loop(0, th_out, body, 0)


def _pick_th_out(H, W, Cin, Cout, budget_bytes=8 * 1024 * 1024):
    """Largest pooled-row tile (divisor of H//2) that fits the VMEM budget.

    Capped at H//4 so there are always >= 2 row tiles (keeps the halo path
    exercised and the per-step blocks modest — important for v7x's 64 MiB).
    """
    H2 = H // 2
    best = 1
    for cand in range(1, max(H2 // 2, 1) + 1):
        if H2 % cand:
            continue
        th_in = 2 * cand
        need = 4 * (
            2 * th_in * W * Cin                 # double-buffered mid input block
            + 4 * W * Cin                       # halo-row blocks (double-buffered)
            + (th_in + 2) * (W + 2) * Cin       # slab scratch
            + W * Cout                          # rowbuf scratch
            + 2 * cand * (W // 2) * Cout        # double-buffered output block
        )
        if need <= budget_bytes:
            best = cand
    return best


def conv3x3_relu_pool(x_nhwc, w_hwio, b):
    N, H, W, Cin = x_nhwc.shape
    Cout = w_hwio.shape[-1]
    assert H % 2 == 0 and W % 2 == 0
    H2, W2 = H // 2, W // 2

    th_out = _pick_th_out(H, W, Cin, Cout)
    th_in = 2 * th_out
    T = H2 // th_out

    w_k = w_hwio.reshape(3, 3 * Cin, Cout)      # merge (kw, cin) -> K axis
    b2 = b.reshape(1, Cout)

    return pl.pallas_call(
        _conv_pool_kernel,
        out_shape=jax.ShapeDtypeStruct((N, H2, W2, Cout), jnp.float32),
        grid=(N, T),
        in_specs=[
            # top halo row (clamped; masked off in-kernel when t == 0)
            pl.BlockSpec((1, 1, W, Cin),
                         lambda n, t: (n, jnp.maximum(t * th_in - 1, 0), 0, 0)),
            # main rows of this tile
            pl.BlockSpec((1, th_in, W, Cin), lambda n, t: (n, t, 0, 0)),
            # bottom halo row (clamped; masked off when t == T-1)
            pl.BlockSpec((1, 1, W, Cin),
                         lambda n, t: (n, jnp.minimum((t + 1) * th_in, H - 1), 0, 0)),
            pl.BlockSpec((3, 3 * Cin, Cout), lambda n, t: (0, 0, 0)),
            pl.BlockSpec((1, Cout), lambda n, t: (0, 0)),
        ],
        out_specs=pl.BlockSpec((1, th_out, W2, Cout), lambda n, t: (n, t, 0, 0)),
        scratch_shapes=[
            pltpu.VMEM((th_in + 2, W + 2, Cin), jnp.float32),
            pltpu.VMEM((W, Cout), jnp.float32),
        ],
        compiler_params=pltpu.CompilerParams(
            dimension_semantics=("parallel", "parallel"),
            vmem_limit_bytes=32 * 1024 * 1024),
    )(x_nhwc, x_nhwc, x_nhwc, w_k, b2)


# ---------------------------------------------------------------------------
# Kernel 2: classifier head relu(x @ W1 + b1) @ W2 + b2, K-tiled over features
# with an f32 accumulator (fc1's weight is ~84 MiB at the real shape).
# ---------------------------------------------------------------------------
def _mlp_head_kernel(x_ref, w1_ref, b1_ref, w2_ref, b2_ref, o_ref, acc_ref):
    k = pl.program_id(0)

    @pl.when(k == 0)
    def _():
        acc_ref[...] = jnp.zeros_like(acc_ref)

    acc_ref[...] += jnp.dot(x_ref[...], w1_ref[...],
                            preferred_element_type=jnp.float32)

    @pl.when(k == pl.num_programs(0) - 1)
    def _():
        h = jnp.maximum(acc_ref[...] + b1_ref[...], 0.0)
        o_ref[...] = (jnp.dot(h, w2_ref[...], preferred_element_type=jnp.float32)
                      + b2_ref[...]).astype(o_ref.dtype)


def _pick_tk(F, max_tk=4096):
    """Largest lane-aligned (multiple of 128) divisor of F <= max_tk."""
    if F <= max_tk:
        return F
    for cand in range(max_tk - max_tk % 128, 0, -128):
        if F % cand == 0:
            return cand
    return F  # fallback: single block


def mlp_head(x, w1, b1, w2, b2):
    N, F = x.shape
    Hd = w1.shape[1]
    C = w2.shape[1]
    tk = _pick_tk(F)
    nk = F // tk
    return pl.pallas_call(
        _mlp_head_kernel,
        out_shape=jax.ShapeDtypeStruct((N, C), jnp.float32),
        grid=(nk,),
        in_specs=[
            pl.BlockSpec((N, tk), lambda k: (0, k)),
            pl.BlockSpec((tk, Hd), lambda k: (k, 0)),
            pl.BlockSpec((1, Hd), lambda k: (0, 0)),
            pl.BlockSpec((Hd, C), lambda k: (0, 0)),
            pl.BlockSpec((1, C), lambda k: (0, 0)),
        ],
        out_specs=pl.BlockSpec((N, C), lambda k: (0, 0)),
        scratch_shapes=[pltpu.VMEM((N, Hd), jnp.float32)],
        compiler_params=pltpu.CompilerParams(
            dimension_semantics=("arbitrary",),
            vmem_limit_bytes=32 * 1024 * 1024),
    )(x, w1, b1.reshape(1, Hd), w2, b2.reshape(1, C))


# ---------------------------------------------------------------------------
# Full forward pass (mirrors MusicCNN.forward). Expects params prepared with
# `prepare_params` so fc1 accepts the NHWC flatten directly (no per-forward
# transpose of the last activation).
# ---------------------------------------------------------------------------
def music_cnn_forward(x_nchw, params):
    x = jnp.transpose(x_nchw, (0, 2, 3, 1)).astype(jnp.float32)  # NCHW -> NHWC
    x = conv3x3_relu_pool(x, params["w1"], params["b1"])
    x = conv3x3_relu_pool(x, params["w2"], params["b2"])
    x = conv3x3_relu_pool(x, params["w3"], params["b3"])
    N = x.shape[0]
    flat = x.reshape(N, -1)                       # NHWC flatten (contiguous)
    return mlp_head(flat, params["fw1_nhwc"], params["fb1"],
                    params["fw2"], params["fb2"])


def prepare_params(params, final_c, final_h, final_w):
    """One-time weight prep: permute fc1 rows from torch (c,h,w) flatten order
    to NHWC (h,w,c) flatten order so the forward needs no transpose."""
    perm = (jnp.arange(final_c * final_h * final_w)
            .reshape(final_c, final_h, final_w)
            .transpose(1, 2, 0).reshape(-1))
    out = dict(params)
    out["fw1_nhwc"] = params["fw1"][perm]
    return out


# ---------------------------------------------------------------------------
# Deterministic synthetic parameters (same shapes as the PyTorch module,
# conv weights kept in HWIO, linear weights as (in, out)).
# ---------------------------------------------------------------------------
def init_params(key, num_classes, num_features):
    ks = jax.random.split(key, 10)

    def conv_w(k, cin, cout):
        return jax.random.normal(k, (3, 3, cin, cout), jnp.float32) / np.sqrt(9 * cin)

    def lin_w(k, fin, fout):
        return jax.random.normal(k, (fin, fout), jnp.float32) / np.sqrt(fin)

    return {
        "w1": conv_w(ks[0], 1, 64),
        "b1": 0.01 * jax.random.normal(ks[1], (64,), jnp.float32),
        "w2": conv_w(ks[2], 64, 32),
        "b2": 0.01 * jax.random.normal(ks[3], (32,), jnp.float32),
        "w3": conv_w(ks[4], 32, 32),
        "b3": 0.01 * jax.random.normal(ks[5], (32,), jnp.float32),
        "fw1": lin_w(ks[6], num_features, 256),
        "fb1": 0.01 * jax.random.normal(ks[7], (256,), jnp.float32),
        "fw2": lin_w(ks[8], 256, num_classes),
        "fb2": 0.01 * jax.random.normal(ks[9], (num_classes,), jnp.float32),
    }


# ---------------------------------------------------------------------------
# Pure-JAX reference (torch-style C-major flatten, original fc1 weight).
# ---------------------------------------------------------------------------
def reference_forward(x_nchw, params):
    x = jnp.transpose(x_nchw, (0, 2, 3, 1)).astype(jnp.float32)

    def conv(x, w, b):
        y = jax.lax.conv_general_dilated(
            x, w, window_strides=(1, 1), padding=((1, 1), (1, 1)),
            dimension_numbers=("NHWC", "HWIO", "NHWC"))
        return jax.nn.relu(y + b)

    def pool(x):
        N, H, W, C = x.shape
        return x.reshape(N, H // 2, 2, W // 2, 2, C).max(axis=(2, 4))

    x = pool(conv(x, params["w1"], params["b1"]))
    x = pool(conv(x, params["w2"], params["b2"]))
    x = pool(conv(x, params["w3"], params["b3"]))
    N = x.shape[0]
    flat = jnp.transpose(x, (0, 3, 1, 2)).reshape(N, -1)  # torch flatten (c,h,w)
    h = jax.nn.relu(flat @ params["fw1"] + params["fb1"])
    return h @ params["fw2"] + params["fb2"]


if __name__ == "__main__":
    key = jax.random.PRNGKey(0)
    k_x, k_p = jax.random.split(key)

    # Small shapes consistent with the module: batch=2, 1 input channel,
    # 16x16 "spectrogram" (instead of 128x1288); num_classes=10.
    N, H, W = 2, 16, 16
    num_classes = 10
    x = jax.random.normal(k_x, (N, 1, H, W), jnp.float32)   # NCHW like PyTorch

    H3, W3 = H // 8, W // 8
    num_features = 32 * H3 * W3                              # torch's dummy-forward value
    params = init_params(k_p, num_classes, num_features)
    params = prepare_params(params, 32, H3, W3)

    fwd = jax.jit(music_cnn_forward)
    out = jax.block_until_ready(fwd(x, params))
    assert out.shape == (N, num_classes)

    ref = reference_forward(x, params)
    np.testing.assert_allclose(np.asarray(out), np.asarray(ref),
                               rtol=5e-4, atol=5e-4)
    print("KERNEL_OK")
</pallas_src>

<mosaic_0001>
module attributes {stable_mosaic.version = 11 : i64} {
  func.func @_conv_pool_kernel(%arg0: i32, %arg1: i32, %arg2: memref<1x1x16x1xf32, #tpu.memory_space<vmem>>, %arg3: memref<1x8x16x1xf32, #tpu.memory_space<vmem>>, %arg4: memref<1x1x16x1xf32, #tpu.memory_space<vmem>>, %arg5: memref<3x3x64xf32, #tpu.memory_space<vmem>>, %arg6: memref<1x64xf32, #tpu.memory_space<vmem>>, %arg7: memref<1x4x8x64xf32, #tpu.memory_space<vmem>>, %arg8: memref<10x18x1xf32, #tpu.memory_space<vmem>>, %arg9: memref<16x64xf32, #tpu.memory_space<vmem>>) attributes {dimension_semantics = [#tpu.dimension_semantics<parallel>, #tpu.dimension_semantics<parallel>], iteration_bounds = array<i64: 2, 2>, scalar_prefetch = 0 : i64, scratch_operands = 2 : i64, tpu.core_type = #tpu.core_type<tc>, window_params = [{transform_indices = @transform_0, window_bounds = array<i64: 1, 1, 16, 1>}, {transform_indices = @transform_1, window_bounds = array<i64: 1, 8, 16, 1>}, {transform_indices = @transform_2, window_bounds = array<i64: 1, 1, 16, 1>}, {pipeline_mode = #tpu.pipeline_mode<synchronous>, transform_indices = @transform_3, window_bounds = array<i64: 3, 3, 64>}, {pipeline_mode = #tpu.pipeline_mode<synchronous>, transform_indices = @transform_4, window_bounds = array<i64: 1, 64>}, {transform_indices = @transform_5, window_bounds = array<i64: 1, 4, 8, 64>}]} {
    %cst = arith.constant 0.000000e+00 : f32
    %0 = vector.broadcast %cst : f32 to vector<10x18x1xf32>
    %c0 = arith.constant 0 : index
    %c0_0 = arith.constant 0 : index
    %c0_1 = arith.constant 0 : index
    %1 = vector.load %arg8[%c0, %c0_0, %c0_1] : memref<10x18x1xf32, #tpu.memory_space<vmem>>, vector<10x18x1xf32>
    tpu.vector_store %arg8[%c0, %c0_0, %c0_1], %0 {strides = array<i32>} : memref<10x18x1xf32, #tpu.memory_space<vmem>>, vector<10x18x1xf32>,
    %c0_2 = arith.constant 0 : index
    %c0_3 = arith.constant 0 : index
    %c0_4 = arith.constant 0 : index
    %c0_5 = arith.constant 0 : index
    %2 = vector.load %arg3[%c0_2, %c0_3, %c0_4, %c0_5] : memref<1x8x16x1xf32, #tpu.memory_space<vmem>>, vector<1x8x16x1xf32>
    %3 = vector.shape_cast %2 : vector<1x8x16x1xf32> to vector<8x16x1xf32>
    %c1 = arith.constant 1 : index
    %c1_6 = arith.constant 1 : index
    %c0_7 = arith.constant 0 : index
    %4 = vector.load %arg8[%c1, %c1_6, %c0_7] : memref<10x18x1xf32, #tpu.memory_space<vmem>>, vector<8x16x1xf32>
    tpu.vector_store %arg8[%c1, %c1_6, %c0_7], %3 {strides = array<i32>} : memref<10x18x1xf32, #tpu.memory_space<vmem>>, vector<8x16x1xf32>,
    %c0_i32 = arith.constant 0 : i32
    %5 = arith.cmpi sgt, %arg1, %c0_i32 : i32
    %6 = arith.extui %5 : i1 to i32
    %c0_i32_8 = arith.constant 0 : i32
    %7 = arith.cmpi ne, %6, %c0_i32_8 : i32
    scf.if %7 {
      %c0_15 = arith.constant 0 : index
      %c0_16 = arith.constant 0 : index
      %c0_17 = arith.constant 0 : index
      %c0_18 = arith.constant 0 : index
      %15 = vector.load %arg2[%c0_15, %c0_16, %c0_17, %c0_18] : memref<1x1x16x1xf32, #tpu.memory_space<vmem>>, vector<1x1x16x1xf32>
      %16 = vector.shape_cast %15 : vector<1x1x16x1xf32> to vector<1x16x1xf32>
      %c0_19 = arith.constant 0 : index
      %c1_20 = arith.constant 1 : index
      %c0_21 = arith.constant 0 : index
      %17 = vector.load %arg8[%c0_19, %c1_20, %c0_21] : memref<10x18x1xf32, #tpu.memory_space<vmem>>, vector<1x16x1xf32>
      tpu.vector_store %arg8[%c0_19, %c1_20, %c0_21], %16 {strides = array<i32>} : memref<10x18x1xf32, #tpu.memory_space<vmem>>, vector<1x16x1xf32>,
    } else {
    }
    %c1_i32 = arith.constant 1 : i32
    %8 = arith.cmpi slt, %arg1, %c1_i32 : i32
    %9 = arith.extui %8 : i1 to i32
    %c0_i32_9 = arith.constant 0 : i32
    %10 = arith.cmpi ne, %9, %c0_i32_9 : i32
    scf.if %10 {
      %c0_15 = arith.constant 0 : index
      %c0_16 = arith.constant 0 : index
      %c0_17 = arith.constant 0 : index
      %c0_18 = arith.constant 0 : index
      %15 = vector.load %arg4[%c0_15, %c0_16, %c0_17, %c0_18] : memref<1x1x16x1xf32, #tpu.memory_space<vmem>>, vector<1x1x16x1xf32>
      %16 = vector.shape_cast %15 : vector<1x1x16x1xf32> to vector<1x16x1xf32>
      %c9 = arith.constant 9 : index
      %c1_19 = arith.constant 1 : index
      %c0_20 = arith.constant 0 : index
      %17 = vector.load %arg8[%c9, %c1_19, %c0_20] : memref<10x18x1xf32, #tpu.memory_space<vmem>>, vector<1x16x1xf32>
      tpu.vector_store %arg8[%c9, %c1_19, %c0_20], %16 {strides = array<i32>} : memref<10x18x1xf32, #tpu.memory_space<vmem>>, vector<1x16x1xf32>,
    } else {
    }
    %c0_10 = arith.constant 0 : index
    %c0_11 = arith.constant 0 : index
    %11 = vector.load %arg6[%c0_10, %c0_11] : memref<1x64xf32, #tpu.memory_space<vmem>>, vector<1x64xf32>
    %12 = vector.shape_cast %11 : vector<1x64xf32> to vector<1x64xf32>
    %13 = vector.broadcast %12 : vector<1x64xf32> to vector<16x64xf32>
    %c0_i32_12 = arith.constant 0 : i32
    %c4_i32 = arith.constant 4 : i32
    %14 = arith.addi %c0_i32_12, %c4_i32 : i32
    %c1_i32_13 = arith.constant 1 : i32
    scf.for %arg10 = %c0_i32_12 to %14 step %c1_i32_13  : i32 {
      %c2_i32 = arith.constant 2 : i32
      %15 = arith.muli %c2_i32, %arg10 : i32
      %c0_i32_15 = arith.constant 0 : i32
      %16 = arith.addi %15, %c0_i32_15 : i32
      %17 = arith.index_cast %16 : i32 to index
      %c0_16 = arith.constant 0 : index
      %c0_17 = arith.constant 0 : index
      %18 = vector.load %arg8[%17, %c0_16, %c0_17] : memref<10x18x1xf32, #tpu.memory_space<vmem>>, vector<1x18x1xf32>
      %19 = vector.shape_cast %18 : vector<1x18x1xf32> to vector<18x1xf32>
      %20 = vector.extract_strided_slice %19 {offsets = [0, 0], sizes = [16, 1], strides = [1, 1]} : vector<18x1xf32> to vector<16x1xf32>
      %c0_18 = arith.constant 0 : index
      %c0_19 = arith.constant 0 : index
      %c0_20 = arith.constant 0 : index
      %21 = vector.load %arg5[%c0_18, %c0_19, %c0_20] : memref<3x3x64xf32, #tpu.memory_space<vmem>>, vector<1x1x64xf32>
      %22 = vector.shape_cast %21 : vector<1x1x64xf32> to vector<1x64xf32>
      %23 = vector.broadcast %20 : vector<16x1xf32> to vector<16x64xf32>
      %24 = vector.broadcast %22 : vector<1x64xf32> to vector<16x64xf32>
      %25 = arith.mulf %23, %24 : vector<16x64xf32>
      %26 = arith.addf %13, %25 : vector<16x64xf32>
      %27 = vector.extract_strided_slice %19 {offsets = [1, 0], sizes = [16, 1], strides = [1, 1]} : vector<18x1xf32> to vector<16x1xf32>
      %c0_21 = arith.constant 0 : index
      %c1_22 = arith.constant 1 : index
      %c0_23 = arith.constant 0 : index
      %28 = vector.load %arg5[%c0_21, %c1_22, %c0_23] : memref<3x3x64xf32, #tpu.memory_space<vmem>>, vector<1x1x64xf32>
      %29 = vector.shape_cast %28 : vector<1x1x64xf32> to vector<1x64xf32>
      %30 = vector.broadcast %27 : vector<16x1xf32> to vector<16x64xf32>
      %31 = vector.broadcast %29 : vector<1x64xf32> to vector<16x64xf32>
      %32 = arith.mulf %30, %31 : vector<16x64xf32>
      %33 = arith.addf %26, %32 : vector<16x64xf32>
      %34 = vector.extract_strided_slice %19 {offsets = [2, 0], sizes = [16, 1], strides = [1, 1]} : vector<18x1xf32> to vector<16x1xf32>
      %c0_24 = arith.constant 0 : index
      %c2 = arith.constant 2 : index
      %c0_25 = arith.constant 0 : index
      %35 = vector.load %arg5[%c0_24, %c2, %c0_25] : memref<3x3x64xf32, #tpu.memory_space<vmem>>, vector<1x1x64xf32>
      %36 = vector.shape_cast %35 : vector<1x1x64xf32> to vector<1x64xf32>
      %37 = vector.broadcast %34 : vector<16x1xf32> to vector<16x64xf32>
      %38 = vector.broadcast %36 : vector<1x64xf32> to vector<16x64xf32>
      %39 = arith.mulf %37, %38 : vector<16x64xf32>
      %40 = arith.addf %33, %39 : vector<16x64xf32>
      %c1_i32_26 = arith.constant 1 : i32
      %41 = arith.addi %15, %c1_i32_26 : i32
      %42 = arith.index_cast %41 : i32 to index
      %c0_27 = arith.constant 0 : index
      %c0_28 = arith.constant 0 : index
      %43 = vector.load %arg8[%42, %c0_27, %c0_28] : memref<10x18x1xf32, #tpu.memory_space<vmem>>, vector<1x18x1xf32>
      %44 = vector.shape_cast %43 : vector<1x18x1xf32> to vector<18x1xf32>
      %45 = vector.extract_strided_slice %44 {offsets = [0, 0], sizes = [16, 1], strides = [1, 1]} : vector<18x1xf32> to vector<16x1xf32>
      %c1_29 = arith.constant 1 : index
      %c0_30 = arith.constant 0 : index
      %c0_31 = arith.constant 0 : index
      %46 = vector.load %arg5[%c1_29, %c0_30, %c0_31] : memref<3x3x64xf32, #tpu.memory_space<vmem>>, vector<1x1x64xf32>
      %47 = vector.shape_cast %46 : vector<1x1x64xf32> to vector<1x64xf32>
      %48 = vector.broadcast %45 : vector<16x1xf32> to vector<16x64xf32>
      %49 = vector.broadcast %47 : vector<1x64xf32> to vector<16x64xf32>
      %50 = arith.mulf %48, %49 : vector<16x64xf32>
      %51 = arith.addf %40, %50 : vector<16x64xf32>
      %52 = vector.extract_strided_slice %44 {offsets = [1, 0], sizes = [16, 1], strides = [1, 1]} : vector<18x1xf32> to vector<16x1xf32>
      %c1_32 = arith.constant 1 : index
      %c1_33 = arith.constant 1 : index
      %c0_34 = arith.constant 0 : index
      %53 = vector.load %arg5[%c1_32, %c1_33, %c0_34] : memref<3x3x64xf32, #tpu.memory_space<vmem>>, vector<1x1x64xf32>
      %54 = vector.shape_cast %53 : vector<1x1x64xf32> to vector<1x64xf32>
      %55 = vector.broadcast %52 : vector<16x1xf32> to vector<16x64xf32>
      %56 = vector.broadcast %54 : vector<1x64xf32> to vector<16x64xf32>
      %57 = arith.mulf %55, %56 : vector<16x64xf32>
      %58 = arith.addf %51, %57 : vector<16x64xf32>
      %59 = vector.extract_strided_slice %44 {offsets = [2, 0], sizes = [16, 1], strides = [1, 1]} : vector<18x1xf32> to vector<16x1xf32>
      %c1_35 = arith.constant 1 : index
      %c2_36 = arith.constant 2 : index
      %c0_37 = arith.constant 0 : index
      %60 = vector.load %arg5[%c1_35, %c2_36, %c0_37] : memref<3x3x64xf32, #tpu.memory_space<vmem>>, vector<1x1x64xf32>
      %61 = vector.shape_cast %60 : vector<1x1x64xf32> to vector<1x64xf32>
      %62 = vector.broadcast %59 : vector<16x1xf32> to vector<16x64xf32>
      %63 = vector.broadcast %61 : vector<1x64xf32> to vector<16x64xf32>
      %64 = arith.mulf %62, %63 : vector<16x64xf32>
      %65 = arith.addf %58, %64 : vector<16x64xf32>
      %c2_i32_38 = arith.constant 2 : i32
      %66 = arith.addi %15, %c2_i32_38 : i32
      %67 = arith.index_cast %66 : i32 to index
      %c0_39 = arith.constant 0 : index
      %c0_40 = arith.constant 0 : index
      %68 = vector.load %arg8[%67, %c0_39, %c0_40] : memref<10x18x1xf32, #tpu.memory_space<vmem>>, vector<1x18x1xf32>
      %69 = vector.shape_cast %68 : vector<1x18x1xf32> to vector<18x1xf32>
      %70 = vector.extract_strided_slice %69 {offsets = [0, 0], sizes = [16, 1], strides = [1, 1]} : vector<18x1xf32> to vector<16x1xf32>
      %c2_41 = arith.constant 2 : index
      %c0_42 = arith.constant 0 : index
      %c0_43 = arith.constant 0 : index
      %71 = vector.load %arg5[%c2_41, %c0_42, %c0_43] : memref<3x3x64xf32, #tpu.memory_space<vmem>>, vector<1x1x64xf32>
      %72 = vector.shape_cast %71 : vector<1x1x64xf32> to vector<1x64xf32>
      %73 = vector.broadcast %70 : vector<16x1xf32> to vector<16x64xf32>
      %74 = vector.broadcast %72 : vector<1x64xf32> to vector<16x64xf32>
      %75 = arith.mulf %73, %74 : vector<16x64xf32>
      %76 = arith.addf %65, %75 : vector<16x64xf32>
      %77 = vector.extract_strided_slice %69 {offsets = [1, 0], sizes = [16, 1], strides = [1, 1]} : vector<18x1xf32> to vector<16x1xf32>
      %c2_44 = arith.constant 2 : index
      %c1_45 = arith.constant 1 : index
      %c0_46 = arith.constant 0 : index
      %78 = vector.load %arg5[%c2_44, %c1_45, %c0_46] : memref<3x3x64xf32, #tpu.memory_space<vmem>>, vector<1x1x64xf32>
      %79 = vector.shape_cast %78 : vector<1x1x64xf32> to vector<1x64xf32>
      %80 = vector.broadcast %77 : vector<16x1xf32> to vector<16x64xf32>
      %81 = vector.broadcast %79 : vector<1x64xf32> to vector<16x64xf32>
      %82 = arith.mulf %80, %81 : vector<16x64xf32>
      %83 = arith.addf %76, %82 : vector<16x64xf32>
      %84 = vector.extract_strided_slice %69 {offsets = [2, 0], sizes = [16, 1], strides = [1, 1]} : vector<18x1xf32> to vector<16x1xf32>
      %c2_47 = arith.constant 2 : index
      %c2_48 = arith.constant 2 : index
      %c0_49 = arith.constant 0 : index
      %85 = vector.load %arg5[%c2_47, %c2_48, %c0_49] : memref<3x3x64xf32, #tpu.memory_space<vmem>>, vector<1x1x64xf32>
      %86 = vector.shape_cast %85 : vector<1x1x64xf32> to vector<1x64xf32>
      %87 = vector.broadcast %84 : vector<16x1xf32> to vector<16x64xf32>
      %88 = vector.broadcast %86 : vector<1x64xf32> to vector<16x64xf32>
      %89 = arith.mulf %87, %88 : vector<16x64xf32>
      %90 = arith.addf %83, %89 : vector<16x64xf32>
      %c2_i32_50 = arith.constant 2 : i32
      %91 = arith.muli %c2_i32_50, %arg10 : i32
      %c1_i32_51 = arith.constant 1 : i32
      %92 = arith.addi %91, %c1_i32_51 : i32
      %c0_i32_52 = arith.constant 0 : i32
      %93 = arith.addi %92, %c0_i32_52 : i32
      %94 = arith.index_cast %93 : i32 to index
      %c0_53 = arith.constant 0 : index
      %c0_54 = arith.constant 0 : index
      %95 = vector.load %arg8[%94, %c0_53, %c0_54] : memref<10x18x1xf32, #tpu.memory_space<vmem>>, vector<1x18x1xf32>
      %96 = vector.shape_cast %95 : vector<1x18x1xf32> to vector<18x1xf32>
      %97 = vector.extract_strided_slice %96 {offsets = [0, 0], sizes = [16, 1], strides = [1, 1]} : vector<18x1xf32> to vector<16x1xf32>
      %c0_55 = arith.constant 0 : index
      %c0_56 = arith.constant 0 : index
      %c0_57 = arith.constant 0 : index
      %98 = vector.load %arg5[%c0_55, %c0_56, %c0_57] : memref<3x3x64xf32, #tpu.memory_space<vmem>>, vector<1x1x64xf32>
      %99 = vector.shape_cast %98 : vector<1x1x64xf32> to vector<1x64xf32>
      %100 = vector.broadcast %97 : vector<16x1xf32> to vector<16x64xf32>
      %101 = vector.broadcast %99 : vector<1x64xf32> to vector<16x64xf32>
      %102 = arith.mulf %100, %101 : vector<16x64xf32>
      %103 = arith.addf %13, %102 : vector<16x64xf32>
      %104 = vector.extract_strided_slice %96 {offsets = [1, 0], sizes = [16, 1], strides = [1, 1]} : vector<18x1xf32> to vector<16x1xf32>
      %c0_58 = arith.constant 0 : index
      %c1_59 = arith.constant 1 : index
      %c0_60 = arith.constant 0 : index
      %105 = vector.load %arg5[%c0_58, %c1_59, %c0_60] : memref<3x3x64xf32, #tpu.memory_space<vmem>>, vector<1x1x64xf32>
      %106 = vector.shape_cast %105 : vector<1x1x64xf32> to vector<1x64xf32>
      %107 = vector.broadcast %104 : vector<16x1xf32> to vector<16x64xf32>
      %108 = vector.broadcast %106 : vector<1x64xf32> to vector<16x64xf32>
      %109 = arith.mulf %107, %108 : vector<16x64xf32>
      %110 = arith.addf %103, %109 : vector<16x64xf32>
      %111 = vector.extract_strided_slice %96 {offsets = [2, 0], sizes = [16, 1], strides = [1, 1]} : vector<18x1xf32> to vector<16x1xf32>
      %c0_61 = arith.constant 0 : index
      %c2_62 = arith.constant 2 : index
      %c0_63 = arith.constant 0 : index
      %112 = vector.load %arg5[%c0_61, %c2_62, %c0_63] : memref<3x3x64xf32, #tpu.memory_space<vmem>>, vector<1x1x64xf32>
      %113 = vector.shape_cast %112 : vector<1x1x64xf32> to vector<1x64xf32>
      %114 = vector.broadcast %111 : vector<16x1xf32> to vector<16x64xf32>
      %115 = vector.broadcast %113 : vector<1x64xf32> to vector<16x64xf32>
      %116 = arith.mulf %114, %115 : vector<16x64xf32>
      %117 = arith.addf %110, %116 : vector<16x64xf32>
      %c1_i32_64 = arith.constant 1 : i32
      %118 = arith.addi %92, %c1_i32_64 : i32
      %119 = arith.index_cast %118 : i32 to index
      %c0_65 = arith.constant 0 : index
      %c0_66 = arith.constant 0 : index
      %120 = vector.load %arg8[%119, %c0_65, %c0_66] : memref<10x18x1xf32, #tpu.memory_space<vmem>>, vector<1x18x1xf32>
      %121 = vector.shape_cast %120 : vector<1x18x1xf32> to vector<18x1xf32>
      %122 = vector.extract_strided_slice %121 {offsets = [0, 0], sizes = [16, 1], strides = [1, 1]} : vector<18x1xf32> to vector<16x1xf32>
      %c1_67 = arith.constant 1 : index
      %c0_68 = arith.constant 0 : index
      %c0_69 = arith.constant 0 : index
      %123 = vector.load %arg5[%c1_67, %c0_68, %c0_69] : memref<3x3x64xf32, #tpu.memory_space<vmem>>, vector<1x1x64xf32>
      %124 = vector.shape_cast %123 : vector<1x1x64xf32> to vector<1x64xf32>
      %125 = vector.broadcast %122 : vector<16x1xf32> to vector<16x64xf32>
      %126 = vector.broadcast %124 : vector<1x64xf32> to vector<16x64xf32>
      %127 = arith.mulf %125, %126 : vector<16x64xf32>
      %128 = arith.addf %117, %127 : vector<16x64xf32>
      %129 = vector.extract_strided_slice %121 {offsets = [1, 0], sizes = [16, 1], strides = [1, 1]} : vector<18x1xf32> to vector<16x1xf32>
      %c1_70 = arith.constant 1 : index
      %c1_71 = arith.constant 1 : index
      %c0_72 = arith.constant 0 : index
      %130 = vector.load %arg5[%c1_70, %c1_71, %c0_72] : memref<3x3x64xf32, #tpu.memory_space<vmem>>, vector<1x1x64xf32>
      %131 = vector.shape_cast %130 : vector<1x1x64xf32> to vector<1x64xf32>
      %132 = vector.broadcast %129 : vector<16x1xf32> to vector<16x64xf32>
      %133 = vector.broadcast %131 : vector<1x64xf32> to vector<16x64xf32>
      %134 = arith.mulf %132, %133 : vector<16x64xf32>
      %135 = arith.addf %128, %134 : vector<16x64xf32>
      %136 = vector.extract_strided_slice %121 {offsets = [2, 0], sizes = [16, 1], strides = [1, 1]} : vector<18x1xf32> to vector<16x1xf32>
      %c1_73 = arith.constant 1 : index
      %c2_74 = arith.constant 2 : index
      %c0_75 = arith.constant 0 : index
      %137 = vector.load %arg5[%c1_73, %c2_74, %c0_75] : memref<3x3x64xf32, #tpu.memory_space<vmem>>, vector<1x1x64xf32>
      %138 = vector.shape_cast %137 : vector<1x1x64xf32> to vector<1x64xf32>
      %139 = vector.broadcast %136 : vector<16x1xf32> to vector<16x64xf32>
      %140 = vector.broadcast %138 : vector<1x64xf32> to vector<16x64xf32>
      %141 = arith.mulf %139, %140 : vector<16x64xf32>
      %142 = arith.addf %135, %141 : vector<16x64xf32>
      %c2_i32_76 = arith.constant 2 : i32
      %143 = arith.addi %92, %c2_i32_76 : i32
      %144 = arith.index_cast %143 : i32 to index
      %c0_77 = arith.constant 0 : index
      %c0_78 = arith.constant 0 : index
      %145 = vector.load %arg8[%144, %c0_77, %c0_78] : memref<10x18x1xf32, #tpu.memory_space<vmem>>, vector<1x18x1xf32>
      %146 = vector.shape_cast %145 : vector<1x18x1xf32> to vector<18x1xf32>
      %147 = vector.extract_strided_slice %146 {offsets = [0, 0], sizes = [16, 1], strides = [1, 1]} : vector<18x1xf32> to vector<16x1xf32>
      %c2_79 = arith.constant 2 : index
      %c0_80 = arith.constant 0 : index
      %c0_81 = arith.constant 0 : index
      %148 = vector.load %arg5[%c2_79, %c0_80, %c0_81] : memref<3x3x64xf32, #tpu.memory_space<vmem>>, vector<1x1x64xf32>
      %149 = vector.shape_cast %148 : vector<1x1x64xf32> to vector<1x64xf32>
      %150 = vector.broadcast %147 : vector<16x1xf32> to vector<16x64xf32>
      %151 = vector.broadcast %149 : vector<1x64xf32> to vector<16x64xf32>
      %152 = arith.mulf %150, %151 : vector<16x64xf32>
      %153 = arith.addf %142, %152 : vector<16x64xf32>
      %154 = vector.extract_strided_slice %146 {offsets = [1, 0], sizes = [16, 1], strides = [1, 1]} : vector<18x1xf32> to vector<16x1xf32>
      %c2_82 = arith.constant 2 : index
      %c1_83 = arith.constant 1 : index
      %c0_84 = arith.constant 0 : index
      %155 = vector.load %arg5[%c2_82, %c1_83, %c0_84] : memref<3x3x64xf32, #tpu.memory_space<vmem>>, vector<1x1x64xf32>
      %156 = vector.shape_cast %155 : vector<1x1x64xf32> to vector<1x64xf32>
      %157 = vector.broadcast %154 : vector<16x1xf32> to vector<16x64xf32>
      %158 = vector.broadcast %156 : vector<1x64xf32> to vector<16x64xf32>
      %159 = arith.mulf %157, %158 : vector<16x64xf32>
      %160 = arith.addf %153, %159 : vector<16x64xf32>
      %161 = vector.extract_strided_slice %146 {offsets = [2, 0], sizes = [16, 1], strides = [1, 1]} : vector<18x1xf32> to vector<16x1xf32>
      %c2_85 = arith.constant 2 : index
      %c2_86 = arith.constant 2 : index
      %c0_87 = arith.constant 0 : index
      %162 = vector.load %arg5[%c2_85, %c2_86, %c0_87] : memref<3x3x64xf32, #tpu.memory_space<vmem>>, vector<1x1x64xf32>
      %163 = vector.shape_cast %162 : vector<1x1x64xf32> to vector<1x64xf32>
      %164 = vector.broadcast %161 : vector<16x1xf32> to vector<16x64xf32>
      %165 = vector.broadcast %163 : vector<1x64xf32> to vector<16x64xf32>
      %166 = arith.mulf %164, %165 : vector<16x64xf32>
      %167 = arith.addf %160, %166 : vector<16x64xf32>
      %168 = arith.maximumf %90, %167 : vector<16x64xf32>
      %cst_88 = arith.constant 0.000000e+00 : f32
      %169 = vector.broadcast %cst_88 : f32 to vector<16x64xf32>
      %170 = arith.maximumf %168, %169 : vector<16x64xf32>
      %c0_89 = arith.constant 0 : index
      %c0_90 = arith.constant 0 : index
      %171 = vector.load %arg9[%c0_89, %c0_90] : memref<16x64xf32, #tpu.memory_space<vmem>>, vector<16x64xf32>
      tpu.vector_store %arg9[%c0_89, %c0_90], %170 {strides = array<i32>} : memref<16x64xf32, #tpu.memory_space<vmem>>, vector<16x64xf32>,
      %c0_91 = arith.constant 0 : index
      %c0_92 = arith.constant 0 : index
      %172 = tpu.strided_load %arg9[%c0_91, %c0_92] {strides = array<i32: 2, 1>} : memref<16x64xf32, #tpu.memory_space<vmem>>, vector<8x64xf32>
      %c1_93 = arith.constant 1 : index
      %c0_94 = arith.constant 0 : index
      %173 = tpu.strided_load %arg9[%c1_93, %c0_94] {strides = array<i32: 2, 1>} : memref<16x64xf32, #tpu.memory_space<vmem>>, vector<8x64xf32>
      %174 = arith.maximumf %172, %173 : vector<8x64xf32>
      %c0_95 = arith.constant 0 : index
      %175 = arith.index_cast %arg10 : i32 to index
      %c0_96 = arith.constant 0 : index
      %c0_97 = arith.constant 0 : index
      %176 = vector.load %arg7[%c0_95, %175, %c0_96, %c0_97] : memref<1x4x8x64xf32, #tpu.memory_space<vmem>>, vector<1x1x8x64xf32>
      %177 = vector.shape_cast %176 : vector<1x1x8x64xf32> to vector<8x64xf32>
      %178 = vector.shape_cast %174 : vector<8x64xf32> to vector<1x1x8x64xf32>
      tpu.vector_store %arg7[%c0_95, %175, %c0_96, %c0_97], %178 {strides = array<i32>} : memref<1x4x8x64xf32, #tpu.memory_space<vmem>>, vector<1x1x8x64xf32>,
    }
    %c4_i32_14 = arith.constant 4 : i32
    return
  }
  func.func @transform_0(%arg0: i32, %arg1: i32) -> (i32, i32, i32, i32) {
    %c8_i32 = arith.constant 8 : i32
    %0 = arith.muli %arg1, %c8_i32 : i32
    %c1_i32 = arith.constant 1 : i32
    %1 = arith.subi %0, %c1_i32 : i32
    %c0_i32 = arith.constant 0 : i32
    %2 = arith.maxsi %1, %c0_i32 : i32
    %c0_i32_0 = arith.constant 0 : i32
    %c0_i32_1 = arith.constant 0 : i32
    %c0_i32_2 = arith.constant 0 : i32
    return %arg0, %2, %c0_i32_0, %c0_i32_1 : i32, i32, i32, i32
  }
  func.func @transform_1(%arg0: i32, %arg1: i32) -> (i32, i32, i32, i32) {
    %c0_i32 = arith.constant 0 : i32
    %c0_i32_0 = arith.constant 0 : i32
    %c0_i32_1 = arith.constant 0 : i32
    return %arg0, %arg1, %c0_i32, %c0_i32_0 : i32, i32, i32, i32
  }
  func.func @transform_2(%arg0: i32, %arg1: i32) -> (i32, i32, i32, i32) {
    %c1_i32 = arith.constant 1 : i32
    %0 = arith.addi %arg1, %c1_i32 : i32
    %c8_i32 = arith.constant 8 : i32
    %1 = arith.muli %0, %c8_i32 : i32
    %c15_i32 = arith.constant 15 : i32
    %2 = arith.minsi %1, %c15_i32 : i32
    %c0_i32 = arith.constant 0 : i32
    %c0_i32_0 = arith.constant 0 : i32
    %c0_i32_1 = arith.constant 0 : i32
    return %arg0, %2, %c0_i32, %c0_i32_0 : i32, i32, i32, i32
  }
  func.func @transform_3(%arg0: i32, %arg1: i32) -> (i32, i32, i32) {
    %c0_i32 = arith.constant 0 : i32
    %c0_i32_0 = arith.constant 0 : i32
    %c0_i32_1 = arith.constant 0 : i32
    %c0_i32_2 = arith.constant 0 : i32
    return %c0_i32, %c0_i32_0, %c0_i32_1 : i32, i32, i32
  }
  func.func @transform_4(%arg0: i32, %arg1: i32) -> (i32, i32) {
    %c0_i32 = arith.constant 0 : i32
    %c0_i32_0 = arith.constant 0 : i32
    %c0_i32_1 = arith.constant 0 : i32
    return %c0_i32, %c0_i32_0 : i32, i32
  }
  func.func @transform_5(%arg0: i32, %arg1: i32) -> (i32, i32, i32, i32) {
    %c0_i32 = arith.constant 0 : i32
    %c0_i32_0 = arith.constant 0 : i32
    %c0_i32_1 = arith.constant 0 : i32
    return %arg0, %arg1, %c0_i32, %c0_i32_0 : i32, i32, i32, i32
  }
}

module attributes {stable_mosaic.version = 11 : i64} {
  func.func @_conv_pool_kernel(%arg0: i32, %arg1: i32, %arg2: memref<1x1x8x64xf32, #tpu.memory_space<vmem>>, %arg3: memref<1x4x8x64xf32, #tpu.memory_space<vmem>>, %arg4: memref<1x1x8x64xf32, #tpu.memory_space<vmem>>, %arg5: memref<3x192x32xf32, #tpu.memory_space<vmem>>, %arg6: memref<1x32xf32, #tpu.memory_space<vmem>>, %arg7: memref<1x2x4x32xf32, #tpu.memory_space<vmem>>, %arg8: memref<6x10x64xf32, #tpu.memory_space<vmem>>, %arg9: memref<8x32xf32, #tpu.memory_space<vmem>>) attributes {dimension_semantics = [#tpu.dimension_semantics<parallel>, #tpu.dimension_semantics<parallel>], iteration_bounds = array<i64: 2, 2>, scalar_prefetch = 0 : i64, scratch_operands = 2 : i64, tpu.core_type = #tpu.core_type<tc>, window_params = [{transform_indices = @transform_0, window_bounds = array<i64: 1, 1, 8, 64>}, {transform_indices = @transform_1, window_bounds = array<i64: 1, 4, 8, 64>}, {transform_indices = @transform_2, window_bounds = array<i64: 1, 1, 8, 64>}, {pipeline_mode = #tpu.pipeline_mode<synchronous>, transform_indices = @transform_3, window_bounds = array<i64: 3, 192, 32>}, {pipeline_mode = #tpu.pipeline_mode<synchronous>, transform_indices = @transform_4, window_bounds = array<i64: 1, 32>}, {transform_indices = @transform_5, window_bounds = array<i64: 1, 2, 4, 32>}]} {
    %cst = arith.constant 0.000000e+00 : f32
    %0 = vector.broadcast %cst : f32 to vector<6x10x64xf32>
    %c0 = arith.constant 0 : index
    %c0_0 = arith.constant 0 : index
    %c0_1 = arith.constant 0 : index
    %1 = vector.load %arg8[%c0, %c0_0, %c0_1] : memref<6x10x64xf32, #tpu.memory_space<vmem>>, vector<6x10x64xf32>
    tpu.vector_store %arg8[%c0, %c0_0, %c0_1], %0 {strides = array<i32>} : memref<6x10x64xf32, #tpu.memory_space<vmem>>, vector<6x10x64xf32>,
    %c0_2 = arith.constant 0 : index
    %c0_3 = arith.constant 0 : index
    %c0_4 = arith.constant 0 : index
    %c0_5 = arith.constant 0 : index
    %2 = vector.load %arg3[%c0_2, %c0_3, %c0_4, %c0_5] : memref<1x4x8x64xf32, #tpu.memory_space<vmem>>, vector<1x4x8x64xf32>
    %3 = vector.shape_cast %2 : vector<1x4x8x64xf32> to vector<4x8x64xf32>
    %c1 = arith.constant 1 : index
    %c1_6 = arith.constant 1 : index
    %c0_7 = arith.constant 0 : index
    %4 = vector.load %arg8[%c1, %c1_6, %c0_7] : memref<6x10x64xf32, #tpu.memory_space<vmem>>, vector<4x8x64xf32>
    tpu.vector_store %arg8[%c1, %c1_6, %c0_7], %3 {strides = array<i32>} : memref<6x10x64xf32, #tpu.memory_space<vmem>>, vector<4x8x64xf32>,
    %c0_i32 = arith.constant 0 : i32
    %5 = arith.cmpi sgt, %arg1, %c0_i32 : i32
    %6 = arith.extui %5 : i1 to i32
    %c0_i32_8 = arith.constant 0 : i32
    %7 = arith.cmpi ne, %6, %c0_i32_8 : i32
    scf.if %7 {
      %c0_15 = arith.constant 0 : index
      %c0_16 = arith.constant 0 : index
      %c0_17 = arith.constant 0 : index
      %c0_18 = arith.constant 0 : index
      %15 = vector.load %arg2[%c0_15, %c0_16, %c0_17, %c0_18] : memref<1x1x8x64xf32, #tpu.memory_space<vmem>>, vector<1x1x8x64xf32>
      %16 = vector.shape_cast %15 : vector<1x1x8x64xf32> to vector<1x8x64xf32>
      %c0_19 = arith.constant 0 : index
      %c1_20 = arith.constant 1 : index
      %c0_21 = arith.constant 0 : index
      %17 = vector.load %arg8[%c0_19, %c1_20, %c0_21] : memref<6x10x64xf32, #tpu.memory_space<vmem>>, vector<1x8x64xf32>
      tpu.vector_store %arg8[%c0_19, %c1_20, %c0_21], %16 {strides = array<i32>} : memref<6x10x64xf32, #tpu.memory_space<vmem>>, vector<1x8x64xf32>,
    } else {
    }
    %c1_i32 = arith.constant 1 : i32
    %8 = arith.cmpi slt, %arg1, %c1_i32 : i32
    %9 = arith.extui %8 : i1 to i32
    %c0_i32_9 = arith.constant 0 : i32
    %10 = arith.cmpi ne, %9, %c0_i32_9 : i32
    scf.if %10 {
      %c0_15 = arith.constant 0 : index
      %c0_16 = arith.constant 0 : index
      %c0_17 = arith.constant 0 : index
      %c0_18 = arith.constant 0 : index
      %15 = vector.load %arg4[%c0_15, %c0_16, %c0_17, %c0_18] : memref<1x1x8x64xf32, #tpu.memory_space<vmem>>, vector<1x1x8x64xf32>
      %16 = vector.shape_cast %15 : vector<1x1x8x64xf32> to vector<1x8x64xf32>
      %c5 = arith.constant 5 : index
      %c1_19 = arith.constant 1 : index
      %c0_20 = arith.constant 0 : index
      %17 = vector.load %arg8[%c5, %c1_19, %c0_20] : memref<6x10x64xf32, #tpu.memory_space<vmem>>, vector<1x8x64xf32>
      tpu.vector_store %arg8[%c5, %c1_19, %c0_20], %16 {strides = array<i32>} : memref<6x10x64xf32, #tpu.memory_space<vmem>>, vector<1x8x64xf32>,
    } else {
    }
    %c0_10 = arith.constant 0 : index
    %c0_11 = arith.constant 0 : index
    %11 = vector.load %arg6[%c0_10, %c0_11] : memref<1x32xf32, #tpu.memory_space<vmem>>, vector<1x32xf32>
    %12 = vector.shape_cast %11 : vector<1x32xf32> to vector<1x32xf32>
    %13 = vector.broadcast %12 : vector<1x32xf32> to vector<8x32xf32>
    %c0_i32_12 = arith.constant 0 : i32
    %c2_i32 = arith.constant 2 : i32
    %14 = arith.addi %c0_i32_12, %c2_i32 : i32
    %c1_i32_13 = arith.constant 1 : i32
    scf.for %arg10 = %c0_i32_12 to %14 step %c1_i32_13  : i32 {
      %c2_i32_15 = arith.constant 2 : i32
      %15 = arith.muli %c2_i32_15, %arg10 : i32
      %c0_i32_16 = arith.constant 0 : i32
      %16 = arith.addi %15, %c0_i32_16 : i32
      %17 = arith.index_cast %16 : i32 to index
      %c0_17 = arith.constant 0 : index
      %c0_18 = arith.constant 0 : index
      %18 = vector.load %arg8[%17, %c0_17, %c0_18] : memref<6x10x64xf32, #tpu.memory_space<vmem>>, vector<1x10x64xf32>
      %19 = vector.shape_cast %18 : vector<1x10x64xf32> to vector<10x64xf32>
      %20 = vector.extract_strided_slice %19 {offsets = [0, 0], sizes = [8, 64], strides = [1, 1]} : vector<10x64xf32> to vector<8x64xf32>
      %21 = vector.extract_strided_slice %19 {offsets = [1, 0], sizes = [8, 64], strides = [1, 1]} : vector<10x64xf32> to vector<8x64xf32>
      %22 = vector.extract_strided_slice %19 {offsets = [2, 0], sizes = [8, 64], strides = [1, 1]} : vector<10x64xf32> to vector<8x64xf32>
      %23 = tpu.concatenate %20, %21, %22 in 1 : vector<8x64xf32>, vector<8x64xf32>, vector<8x64xf32> -> vector<8x192xf32>
      %c0_19 = arith.constant 0 : index
      %c0_20 = arith.constant 0 : index
      %c0_21 = arith.constant 0 : index
      %24 = vector.load %arg5[%c0_19, %c0_20, %c0_21] : memref<3x192x32xf32, #tpu.memory_space<vmem>>, vector<1x192x32xf32>
      %25 = vector.shape_cast %24 : vector<1x192x32xf32> to vector<192x32xf32>
      %cst_22 = arith.constant dense<0.000000e+00> : vector<8x32xf32>
      %26 = tpu.matmul %23, %25, %cst_22 {dimension_numbers = #tpu.dot_dimension_numbers<[1], [0], [0], [1], [0, 0, 1, 1], [], []>} : vector<8x192xf32>, vector<192x32xf32>, vector<8x32xf32> -> vector<8x32xf32>
      %27 = arith.addf %13, %26 : vector<8x32xf32>
      %c1_i32_23 = arith.constant 1 : i32
      %28 = arith.addi %15, %c1_i32_23 : i32
      %29 = arith.index_cast %28 : i32 to index
      %c0_24 = arith.constant 0 : index
      %c0_25 = arith.constant 0 : index
      %30 = vector.load %arg8[%29, %c0_24, %c0_25] : memref<6x10x64xf32, #tpu.memory_space<vmem>>, vector<1x10x64xf32>
      %31 = vector.shape_cast %30 : vector<1x10x64xf32> to vector<10x64xf32>
      %32 = vector.extract_strided_slice %31 {offsets = [0, 0], sizes = [8, 64], strides = [1, 1]} : vector<10x64xf32> to vector<8x64xf32>
      %33 = vector.extract_strided_slice %31 {offsets = [1, 0], sizes = [8, 64], strides = [1, 1]} : vector<10x64xf32> to vector<8x64xf32>
      %34 = vector.extract_strided_slice %31 {offsets = [2, 0], sizes = [8, 64], strides = [1, 1]} : vector<10x64xf32> to vector<8x64xf32>
      %35 = tpu.concatenate %32, %33, %34 in 1 : vector<8x64xf32>, vector<8x64xf32>, vector<8x64xf32> -> vector<8x192xf32>
      %c1_26 = arith.constant 1 : index
      %c0_27 = arith.constant 0 : index
      %c0_28 = arith.constant 0 : index
      %36 = vector.load %arg5[%c1_26, %c0_27, %c0_28] : memref<3x192x32xf32, #tpu.memory_space<vmem>>, vector<1x192x32xf32>
      %37 = vector.shape_cast %36 : vector<1x192x32xf32> to vector<192x32xf32>
      %cst_29 = arith.constant dense<0.000000e+00> : vector<8x32xf32>
      %38 = tpu.matmul %35, %37, %cst_29 {dimension_numbers = #tpu.dot_dimension_numbers<[1], [0], [0], [1], [0, 0, 1, 1], [], []>} : vector<8x192xf32>, vector<192x32xf32>, vector<8x32xf32> -> vector<8x32xf32>
      %39 = arith.addf %27, %38 : vector<8x32xf32>
      %c2_i32_30 = arith.constant 2 : i32
      %40 = arith.addi %15, %c2_i32_30 : i32
      %41 = arith.index_cast %40 : i32 to index
      %c0_31 = arith.constant 0 : index
      %c0_32 = arith.constant 0 : index
      %42 = vector.load %arg8[%41, %c0_31, %c0_32] : memref<6x10x64xf32, #tpu.memory_space<vmem>>, vector<1x10x64xf32>
      %43 = vector.shape_cast %42 : vector<1x10x64xf32> to vector<10x64xf32>
      %44 = vector.extract_strided_slice %43 {offsets = [0, 0], sizes = [8, 64], strides = [1, 1]} : vector<10x64xf32> to vector<8x64xf32>
      %45 = vector.extract_strided_slice %43 {offsets = [1, 0], sizes = [8, 64], strides = [1, 1]} : vector<10x64xf32> to vector<8x64xf32>
      %46 = vector.extract_strided_slice %43 {offsets = [2, 0], sizes = [8, 64], strides = [1, 1]} : vector<10x64xf32> to vector<8x64xf32>
      %47 = tpu.concatenate %44, %45, %46 in 1 : vector<8x64xf32>, vector<8x64xf32>, vector<8x64xf32> -> vector<8x192xf32>
      %c2 = arith.constant 2 : index
      %c0_33 = arith.constant 0 : index
      %c0_34 = arith.constant 0 : index
      %48 = vector.load %arg5[%c2, %c0_33, %c0_34] : memref<3x192x32xf32, #tpu.memory_space<vmem>>, vector<1x192x32xf32>
      %49 = vector.shape_cast %48 : vector<1x192x32xf32> to vector<192x32xf32>
      %cst_35 = arith.constant dense<0.000000e+00> : vector<8x32xf32>
      %50 = tpu.matmul %47, %49, %cst_35 {dimension_numbers = #tpu.dot_dimension_numbers<[1], [0], [0], [1], [0, 0, 1, 1], [], []>} : vector<8x192xf32>, vector<192x32xf32>, vector<8x32xf32> -> vector<8x32xf32>
      %51 = arith.addf %39, %50 : vector<8x32xf32>
      %c2_i32_36 = arith.constant 2 : i32
      %52 = arith.muli %c2_i32_36, %arg10 : i32
      %c1_i32_37 = arith.constant 1 : i32
      %53 = arith.addi %52, %c1_i32_37 : i32
      %c0_i32_38 = arith.constant 0 : i32
      %54 = arith.addi %53, %c0_i32_38 : i32
      %55 = arith.index_cast %54 : i32 to index
      %c0_39 = arith.constant 0 : index
      %c0_40 = arith.constant 0 : index
      %56 = vector.load %arg8[%55, %c0_39, %c0_40] : memref<6x10x64xf32, #tpu.memory_space<vmem>>, vector<1x10x64xf32>
      %57 = vector.shape_cast %56 : vector<1x10x64xf32> to vector<10x64xf32>
      %58 = vector.extract_strided_slice %57 {offsets = [0, 0], sizes = [8, 64], strides = [1, 1]} : vector<10x64xf32> to vector<8x64xf32>
      %59 = vector.extract_strided_slice %57 {offsets = [1, 0], sizes = [8, 64], strides = [1, 1]} : vector<10x64xf32> to vector<8x64xf32>
      %60 = vector.extract_strided_slice %57 {offsets = [2, 0], sizes = [8, 64], strides = [1, 1]} : vector<10x64xf32> to vector<8x64xf32>
      %61 = tpu.concatenate %58, %59, %60 in 1 : vector<8x64xf32>, vector<8x64xf32>, vector<8x64xf32> -> vector<8x192xf32>
      %c0_41 = arith.constant 0 : index
      %c0_42 = arith.constant 0 : index
      %c0_43 = arith.constant 0 : index
      %62 = vector.load %arg5[%c0_41, %c0_42, %c0_43] : memref<3x192x32xf32, #tpu.memory_space<vmem>>, vector<1x192x32xf32>
      %63 = vector.shape_cast %62 : vector<1x192x32xf32> to vector<192x32xf32>
      %cst_44 = arith.constant dense<0.000000e+00> : vector<8x32xf32>
      %64 = tpu.matmul %61, %63, %cst_44 {dimension_numbers = #tpu.dot_dimension_numbers<[1], [0], [0], [1], [0, 0, 1, 1], [], []>} : vector<8x192xf32>, vector<192x32xf32>, vector<8x32xf32> -> vector<8x32xf32>
      %65 = arith.addf %13, %64 : vector<8x32xf32>
      %c1_i32_45 = arith.constant 1 : i32
      %66 = arith.addi %53, %c1_i32_45 : i32
      %67 = arith.index_cast %66 : i32 to index
      %c0_46 = arith.constant 0 : index
      %c0_47 = arith.constant 0 : index
      %68 = vector.load %arg8[%67, %c0_46, %c0_47] : memref<6x10x64xf32, #tpu.memory_space<vmem>>, vector<1x10x64xf32>
      %69 = vector.shape_cast %68 : vector<1x10x64xf32> to vector<10x64xf32>
      %70 = vector.extract_strided_slice %69 {offsets = [0, 0], sizes = [8, 64], strides = [1, 1]} : vector<10x64xf32> to vector<8x64xf32>
      %71 = vector.extract_strided_slice %69 {offsets = [1, 0], sizes = [8, 64], strides = [1, 1]} : vector<10x64xf32> to vector<8x64xf32>
      %72 = vector.extract_strided_slice %69 {offsets = [2, 0], sizes = [8, 64], strides = [1, 1]} : vector<10x64xf32> to vector<8x64xf32>
      %73 = tpu.concatenate %70, %71, %72 in 1 : vector<8x64xf32>, vector<8x64xf32>, vector<8x64xf32> -> vector<8x192xf32>
      %c1_48 = arith.constant 1 : index
      %c0_49 = arith.constant 0 : index
      %c0_50 = arith.constant 0 : index
      %74 = vector.load %arg5[%c1_48, %c0_49, %c0_50] : memref<3x192x32xf32, #tpu.memory_space<vmem>>, vector<1x192x32xf32>
      %75 = vector.shape_cast %74 : vector<1x192x32xf32> to vector<192x32xf32>
      %cst_51 = arith.constant dense<0.000000e+00> : vector<8x32xf32>
      %76 = tpu.matmul %73, %75, %cst_51 {dimension_numbers = #tpu.dot_dimension_numbers<[1], [0], [0], [1], [0, 0, 1, 1], [], []>} : vector<8x192xf32>, vector<192x32xf32>, vector<8x32xf32> -> vector<8x32xf32>
      %77 = arith.addf %65, %76 : vector<8x32xf32>
      %c2_i32_52 = arith.constant 2 : i32
      %78 = arith.addi %53, %c2_i32_52 : i32
      %79 = arith.index_cast %78 : i32 to index
      %c0_53 = arith.constant 0 : index
      %c0_54 = arith.constant 0 : index
      %80 = vector.load %arg8[%79, %c0_53, %c0_54] : memref<6x10x64xf32, #tpu.memory_space<vmem>>, vector<1x10x64xf32>
      %81 = vector.shape_cast %80 : vector<1x10x64xf32> to vector<10x64xf32>
      %82 = vector.extract_strided_slice %81 {offsets = [0, 0], sizes = [8, 64], strides = [1, 1]} : vector<10x64xf32> to vector<8x64xf32>
      %83 = vector.extract_strided_slice %81 {offsets = [1, 0], sizes = [8, 64], strides = [1, 1]} : vector<10x64xf32> to vector<8x64xf32>
      %84 = vector.extract_strided_slice %81 {offsets = [2, 0], sizes = [8, 64], strides = [1, 1]} : vector<10x64xf32> to vector<8x64xf32>
      %85 = tpu.concatenate %82, %83, %84 in 1 : vector<8x64xf32>, vector<8x64xf32>, vector<8x64xf32> -> vector<8x192xf32>
      %c2_55 = arith.constant 2 : index
      %c0_56 = arith.constant 0 : index
      %c0_57 = arith.constant 0 : index
      %86 = vector.load %arg5[%c2_55, %c0_56, %c0_57] : memref<3x192x32xf32, #tpu.memory_space<vmem>>, vector<1x192x32xf32>
      %87 = vector.shape_cast %86 : vector<1x192x32xf32> to vector<192x32xf32>
      %cst_58 = arith.constant dense<0.000000e+00> : vector<8x32xf32>
      %88 = tpu.matmul %85, %87, %cst_58 {dimension_numbers = #tpu.dot_dimension_numbers<[1], [0], [0], [1], [0, 0, 1, 1], [], []>} : vector<8x192xf32>, vector<192x32xf32>, vector<8x32xf32> -> vector<8x32xf32>
      %89 = arith.addf %77, %88 : vector<8x32xf32>
      %90 = arith.maximumf %51, %89 : vector<8x32xf32>
      %cst_59 = arith.constant 0.000000e+00 : f32
      %91 = vector.broadcast %cst_59 : f32 to vector<8x32xf32>
      %92 = arith.maximumf %90, %91 : vector<8x32xf32>
      %c0_60 = arith.constant 0 : index
      %c0_61 = arith.constant 0 : index
      %93 = vector.load %arg9[%c0_60, %c0_61] : memref<8x32xf32, #tpu.memory_space<vmem>>, vector<8x32xf32>
      tpu.vector_store %arg9[%c0_60, %c0_61], %92 {strides = array<i32>} : memref<8x32xf32, #tpu.memory_space<vmem>>, vector<8x32xf32>,
      %c0_62 = arith.constant 0 : index
      %c0_63 = arith.constant 0 : index
      %94 = tpu.strided_load %arg9[%c0_62, %c0_63] {strides = array<i32: 2, 1>} : memref<8x32xf32, #tpu.memory_space<vmem>>, vector<4x32xf32>
      %c1_64 = arith.constant 1 : index
      %c0_65 = arith.constant 0 : index
      %95 = tpu.strided_load %arg9[%c1_64, %c0_65] {strides = array<i32: 2, 1>} : memref<8x32xf32, #tpu.memory_space<vmem>>, vector<4x32xf32>
      %96 = arith.maximumf %94, %95 : vector<4x32xf32>
      %c0_66 = arith.constant 0 : index
      %97 = arith.index_cast %arg10 : i32 to index
      %c0_67 = arith.constant 0 : index
      %c0_68 = arith.constant 0 : index
      %98 = vector.load %arg7[%c0_66, %97, %c0_67, %c0_68] : memref<1x2x4x32xf32, #tpu.memory_space<vmem>>, vector<1x1x4x32xf32>
      %99 = vector.shape_cast %98 : vector<1x1x4x32xf32> to vector<4x32xf32>
      %100 = vector.shape_cast %96 : vector<4x32xf32> to vector<1x1x4x32xf32>
      tpu.vector_store %arg7[%c0_66, %97, %c0_67, %c0_68], %100 {strides = array<i32>} : memref<1x2x4x32xf32, #tpu.memory_space<vmem>>, vector<1x1x4x32xf32>,
    }
    %c2_i32_14 = arith.constant 2 : i32
    return
  }
  func.func @transform_0(%arg0: i32, %arg1: i32) -> (i32, i32, i32, i32) {
    %c4_i32 = arith.constant 4 : i32
    %0 = arith.muli %arg1, %c4_i32 : i32
    %c1_i32 = arith.constant 1 : i32
    %1 = arith.subi %0, %c1_i32 : i32
    %c0_i32 = arith.constant 0 : i32
    %2 = arith.maxsi %1, %c0_i32 : i32
    %c0_i32_0 = arith.constant 0 : i32
    %c0_i32_1 = arith.constant 0 : i32
    %c0_i32_2 = arith.constant 0 : i32
    return %arg0, %2, %c0_i32_0, %c0_i32_1 : i32, i32, i32, i32
  }
  func.func @transform_1(%arg0: i32, %arg1: i32) -> (i32, i32, i32, i32) {
    %c0_i32 = arith.constant 0 : i32
    %c0_i32_0 = arith.constant 0 : i32
    %c0_i32_1 = arith.constant 0 : i32
    return %arg0, %arg1, %c0_i32, %c0_i32_0 : i32, i32, i32, i32
  }
  func.func @transform_2(%arg0: i32, %arg1: i32) -> (i32, i32, i32, i32) {
    %c1_i32 = arith.constant 1 : i32
    %0 = arith.addi %arg1, %c1_i32 : i32
    %c4_i32 = arith.constant 4 : i32
    %1 = arith.muli %0, %c4_i32 : i32
    %c7_i32 = arith.constant 7 : i32
    %2 = arith.minsi %1, %c7_i32 : i32
    %c0_i32 = arith.constant 0 : i32
    %c0_i32_0 = arith.constant 0 : i32
    %c0_i32_1 = arith.constant 0 : i32
    return %arg0, %2, %c0_i32, %c0_i32_0 : i32, i32, i32, i32
  }
  func.func @transform_3(%arg0: i32, %arg1: i32) -> (i32, i32, i32) {
    %c0_i32 = arith.constant 0 : i32
    %c0_i32_0 = arith.constant 0 : i32
    %c0_i32_1 = arith.constant 0 : i32
    %c0_i32_2 = arith.constant 0 : i32
    return %c0_i32, %c0_i32_0, %c0_i32_1 : i32, i32, i32
  }
  func.func @transform_4(%arg0: i32, %arg1: i32) -> (i32, i32) {
    %c0_i32 = arith.constant 0 : i32
    %c0_i32_0 = arith.constant 0 : i32
    %c0_i32_1 = arith.constant 0 : i32
    return %c0_i32, %c0_i32_0 : i32, i32
  }
  func.func @transform_5(%arg0: i32, %arg1: i32) -> (i32, i32, i32, i32) {
    %c0_i32 = arith.constant 0 : i32
    %c0_i32_0 = arith.constant 0 : i32
    %c0_i32_1 = arith.constant 0 : i32
    return %arg0, %arg1, %c0_i32, %c0_i32_0 : i32, i32, i32, i32
  }
}

module attributes {stable_mosaic.version = 11 : i64} {
  func.func @_conv_pool_kernel(%arg0: i32, %arg1: i32, %arg2: memref<1x1x4x32xf32, #tpu.memory_space<vmem>>, %arg3: memref<1x2x4x32xf32, #tpu.memory_space<vmem>>, %arg4: memref<1x1x4x32xf32, #tpu.memory_space<vmem>>, %arg5: memref<3x96x32xf32, #tpu.memory_space<vmem>>, %arg6: memref<1x32xf32, #tpu.memory_space<vmem>>, %arg7: memref<1x1x2x32xf32, #tpu.memory_space<vmem>>, %arg8: memref<4x6x32xf32, #tpu.memory_space<vmem>>, %arg9: memref<4x32xf32, #tpu.memory_space<vmem>>) attributes {dimension_semantics = [#tpu.dimension_semantics<parallel>, #tpu.dimension_semantics<parallel>], iteration_bounds = array<i64: 2, 2>, scalar_prefetch = 0 : i64, scratch_operands = 2 : i64, tpu.core_type = #tpu.core_type<tc>, window_params = [{transform_indices = @transform_0, window_bounds = array<i64: 1, 1, 4, 32>}, {transform_indices = @transform_1, window_bounds = array<i64: 1, 2, 4, 32>}, {transform_indices = @transform_2, window_bounds = array<i64: 1, 1, 4, 32>}, {pipeline_mode = #tpu.pipeline_mode<synchronous>, transform_indices = @transform_3, window_bounds = array<i64: 3, 96, 32>}, {pipeline_mode = #tpu.pipeline_mode<synchronous>, transform_indices = @transform_4, window_bounds = array<i64: 1, 32>}, {transform_indices = @transform_5, window_bounds = array<i64: 1, 1, 2, 32>}]} {
    %cst = arith.constant 0.000000e+00 : f32
    %0 = vector.broadcast %cst : f32 to vector<4x6x32xf32>
    %c0 = arith.constant 0 : index
    %c0_0 = arith.constant 0 : index
    %c0_1 = arith.constant 0 : index
    %1 = vector.load %arg8[%c0, %c0_0, %c0_1] : memref<4x6x32xf32, #tpu.memory_space<vmem>>, vector<4x6x32xf32>
    tpu.vector_store %arg8[%c0, %c0_0, %c0_1], %0 {strides = array<i32>} : memref<4x6x32xf32, #tpu.memory_space<vmem>>, vector<4x6x32xf32>,
    %c0_2 = arith.constant 0 : index
    %c0_3 = arith.constant 0 : index
    %c0_4 = arith.constant 0 : index
    %c0_5 = arith.constant 0 : index
    %2 = vector.load %arg3[%c0_2, %c0_3, %c0_4, %c0_5] : memref<1x2x4x32xf32, #tpu.memory_space<vmem>>, vector<1x2x4x32xf32>
    %3 = vector.shape_cast %2 : vector<1x2x4x32xf32> to vector<2x4x32xf32>
    %c1 = arith.constant 1 : index
    %c1_6 = arith.constant 1 : index
    %c0_7 = arith.constant 0 : index
    %4 = vector.load %arg8[%c1, %c1_6, %c0_7] : memref<4x6x32xf32, #tpu.memory_space<vmem>>, vector<2x4x32xf32>
    tpu.vector_store %arg8[%c1, %c1_6, %c0_7], %3 {strides = array<i32>} : memref<4x6x32xf32, #tpu.memory_space<vmem>>, vector<2x4x32xf32>,
    %c0_i32 = arith.constant 0 : i32
    %5 = arith.cmpi sgt, %arg1, %c0_i32 : i32
    %6 = arith.extui %5 : i1 to i32
    %c0_i32_8 = arith.constant 0 : i32
    %7 = arith.cmpi ne, %6, %c0_i32_8 : i32
    scf.if %7 {
      %c0_67 = arith.constant 0 : index
      %c0_68 = arith.constant 0 : index
      %c0_69 = arith.constant 0 : index
      %c0_70 = arith.constant 0 : index
      %100 = vector.load %arg2[%c0_67, %c0_68, %c0_69, %c0_70] : memref<1x1x4x32xf32, #tpu.memory_space<vmem>>, vector<1x1x4x32xf32>
      %101 = vector.shape_cast %100 : vector<1x1x4x32xf32> to vector<1x4x32xf32>
      %c0_71 = arith.constant 0 : index
      %c1_72 = arith.constant 1 : index
      %c0_73 = arith.constant 0 : index
      %102 = vector.load %arg8[%c0_71, %c1_72, %c0_73] : memref<4x6x32xf32, #tpu.memory_space<vmem>>, vector<1x4x32xf32>
      tpu.vector_store %arg8[%c0_71, %c1_72, %c0_73], %101 {strides = array<i32>} : memref<4x6x32xf32, #tpu.memory_space<vmem>>, vector<1x4x32xf32>,
    } else {
    }
    %c1_i32 = arith.constant 1 : i32
    %8 = arith.cmpi slt, %arg1, %c1_i32 : i32
    %9 = arith.extui %8 : i1 to i32
    %c0_i32_9 = arith.constant 0 : i32
    %10 = arith.cmpi ne, %9, %c0_i32_9 : i32
    scf.if %10 {
      %c0_67 = arith.constant 0 : index
      %c0_68 = arith.constant 0 : index
      %c0_69 = arith.constant 0 : index
      %c0_70 = arith.constant 0 : index
      %100 = vector.load %arg4[%c0_67, %c0_68, %c0_69, %c0_70] : memref<1x1x4x32xf32, #tpu.memory_space<vmem>>, vector<1x1x4x32xf32>
      %101 = vector.shape_cast %100 : vector<1x1x4x32xf32> to vector<1x4x32xf32>
      %c3 = arith.constant 3 : index
      %c1_71 = arith.constant 1 : index
      %c0_72 = arith.constant 0 : index
      %102 = vector.load %arg8[%c3, %c1_71, %c0_72] : memref<4x6x32xf32, #tpu.memory_space<vmem>>, vector<1x4x32xf32>
      tpu.vector_store %arg8[%c3, %c1_71, %c0_72], %101 {strides = array<i32>} : memref<4x6x32xf32, #tpu.memory_space<vmem>>, vector<1x4x32xf32>,
    } else {
    }
    %c0_10 = arith.constant 0 : index
    %c0_11 = arith.constant 0 : index
    %11 = vector.load %arg6[%c0_10, %c0_11] : memref<1x32xf32, #tpu.memory_space<vmem>>, vector<1x32xf32>
    %12 = vector.shape_cast %11 : vector<1x32xf32> to vector<1x32xf32>
    %13 = vector.broadcast %12 : vector<1x32xf32> to vector<4x32xf32>
    %c0_i32_12 = arith.constant 0 : i32
    %c2_i32 = arith.constant 2 : i32
    %14 = arith.muli %c2_i32, %c0_i32_12 : i32
    %c0_i32_13 = arith.constant 0 : i32
    %15 = arith.addi %14, %c0_i32_13 : i32
    %16 = arith.index_cast %15 : i32 to index
    %c0_14 = arith.constant 0 : index
    %c0_15 = arith.constant 0 : index
    %17 = vector.load %arg8[%16, %c0_14, %c0_15] : memref<4x6x32xf32, #tpu.memory_space<vmem>>, vector<1x6x32xf32>
    %18 = vector.shape_cast %17 : vector<1x6x32xf32> to vector<6x32xf32>
    %19 = vector.extract_strided_slice %18 {offsets = [0, 0], sizes = [4, 32], strides = [1, 1]} : vector<6x32xf32> to vector<4x32xf32>
    %20 = vector.extract_strided_slice %18 {offsets = [1, 0], sizes = [4, 32], strides = [1, 1]} : vector<6x32xf32> to vector<4x32xf32>
    %21 = vector.extract_strided_slice %18 {offsets = [2, 0], sizes = [4, 32], strides = [1, 1]} : vector<6x32xf32> to vector<4x32xf32>
    %22 = tpu.concatenate %19, %20, %21 in 1 : vector<4x32xf32>, vector<4x32xf32>, vector<4x32xf32> -> vector<4x96xf32>
    %c0_16 = arith.constant 0 : index
    %c0_17 = arith.constant 0 : index
    %c0_18 = arith.constant 0 : index
    %23 = vector.load %arg5[%c0_16, %c0_17, %c0_18] : memref<3x96x32xf32, #tpu.memory_space<vmem>>, vector<1x96x32xf32>
    %24 = vector.shape_cast %23 : vector<1x96x32xf32> to vector<96x32xf32>
    %cst_19 = arith.constant dense<0.000000e+00> : vector<4x32xf32>
    %25 = tpu.matmul %22, %24, %cst_19 {dimension_numbers = #tpu.dot_dimension_numbers<[1], [0], [0], [1], [0, 0, 1, 1], [], []>} : vector<4x96xf32>, vector<96x32xf32>, vector<4x32xf32> -> vector<4x32xf32>
    %26 = arith.addf %13, %25 : vector<4x32xf32>
    %c1_i32_20 = arith.constant 1 : i32
    %27 = arith.addi %14, %c1_i32_20 : i32
    %28 = arith.index_cast %27 : i32 to index
    %c0_21 = arith.constant 0 : index
    %c0_22 = arith.constant 0 : index
    %29 = vector.load %arg8[%28, %c0_21, %c0_22] : memref<4x6x32xf32, #tpu.memory_space<vmem>>, vector<1x6x32xf32>
    %30 = vector.shape_cast %29 : vector<1x6x32xf32> to vector<6x32xf32>
    %31 = vector.extract_strided_slice %30 {offsets = [0, 0], sizes = [4, 32], strides = [1, 1]} : vector<6x32xf32> to vector<4x32xf32>
    %32 = vector.extract_strided_slice %30 {offsets = [1, 0], sizes = [4, 32], strides = [1, 1]} : vector<6x32xf32> to vector<4x32xf32>
    %33 = vector.extract_strided_slice %30 {offsets = [2, 0], sizes = [4, 32], strides = [1, 1]} : vector<6x32xf32> to vector<4x32xf32>
    %34 = tpu.concatenate %31, %32, %33 in 1 : vector<4x32xf32>, vector<4x32xf32>, vector<4x32xf32> -> vector<4x96xf32>
    %c1_23 = arith.constant 1 : index
    %c0_24 = arith.constant 0 : index
    %c0_25 = arith.constant 0 : index
    %35 = vector.load %arg5[%c1_23, %c0_24, %c0_25] : memref<3x96x32xf32, #tpu.memory_space<vmem>>, vector<1x96x32xf32>
    %36 = vector.shape_cast %35 : vector<1x96x32xf32> to vector<96x32xf32>
    %cst_26 = arith.constant dense<0.000000e+00> : vector<4x32xf32>
    %37 = tpu.matmul %34, %36, %cst_26 {dimension_numbers = #tpu.dot_dimension_numbers<[1], [0], [0], [1], [0, 0, 1, 1], [], []>} : vector<4x96xf32>, vector<96x32xf32>, vector<4x32xf32> -> vector<4x32xf32>
    %38 = arith.addf %26, %37 : vector<4x32xf32>
    %c2_i32_27 = arith.constant 2 : i32
    %39 = arith.addi %14, %c2_i32_27 : i32
    %40 = arith.index_cast %39 : i32 to index
    %c0_28 = arith.constant 0 : index
    %c0_29 = arith.constant 0 : index
    %41 = vector.load %arg8[%40, %c0_28, %c0_29] : memref<4x6x32xf32, #tpu.memory_space<vmem>>, vector<1x6x32xf32>
    %42 = vector.shape_cast %41 : vector<1x6x32xf32> to vector<6x32xf32>
    %43 = vector.extract_strided_slice %42 {offsets = [0, 0], sizes = [4, 32], strides = [1, 1]} : vector<6x32xf32> to vector<4x32xf32>
    %44 = vector.extract_strided_slice %42 {offsets = [1, 0], sizes = [4, 32], strides = [1, 1]} : vector<6x32xf32> to vector<4x32xf32>
    %45 = vector.extract_strided_slice %42 {offsets = [2, 0], sizes = [4, 32], strides = [1, 1]} : vector<6x32xf32> to vector<4x32xf32>
    %46 = tpu.concatenate %43, %44, %45 in 1 : vector<4x32xf32>, vector<4x32xf32>, vector<4x32xf32> -> vector<4x96xf32>
    %c2 = arith.constant 2 : index
    %c0_30 = arith.constant 0 : index
    %c0_31 = arith.constant 0 : index
    %47 = vector.load %arg5[%c2, %c0_30, %c0_31] : memref<3x96x32xf32, #tpu.memory_space<vmem>>, vector<1x96x32xf32>
    %48 = vector.shape_cast %47 : vector<1x96x32xf32> to vector<96x32xf32>
    %cst_32 = arith.constant dense<0.000000e+00> : vector<4x32xf32>
    %49 = tpu.matmul %46, %48, %cst_32 {dimension_numbers = #tpu.dot_dimension_numbers<[1], [0], [0], [1], [0, 0, 1, 1], [], []>} : vector<4x96xf32>, vector<96x32xf32>, vector<4x32xf32> -> vector<4x32xf32>
    %50 = arith.addf %38, %49 : vector<4x32xf32>
    %c2_i32_33 = arith.constant 2 : i32
    %51 = arith.muli %c2_i32_33, %c0_i32_12 : i32
    %c1_i32_34 = arith.constant 1 : i32
    %52 = arith.addi %51, %c1_i32_34 : i32
    %c0_i32_35 = arith.constant 0 : i32
    %53 = arith.addi %52, %c0_i32_35 : i32
    %54 = arith.index_cast %53 : i32 to index
    %c0_36 = arith.constant 0 : index
    %c0_37 = arith.constant 0 : index
    %55 = vector.load %arg8[%54, %c0_36, %c0_37] : memref<4x6x32xf32, #tpu.memory_space<vmem>>, vector<1x6x32xf32>
    %56 = vector.shape_cast %55 : vector<1x6x32xf32> to vector<6x32xf32>
    %57 = vector.extract_strided_slice %56 {offsets = [0, 0], sizes = [4, 32], strides = [1, 1]} : vector<6x32xf32> to vector<4x32xf32>
    %58 = vector.extract_strided_slice %56 {offsets = [1, 0], sizes = [4, 32], strides = [1, 1]} : vector<6x32xf32> to vector<4x32xf32>
    %59 = vector.extract_strided_slice %56 {offsets = [2, 0], sizes = [4, 32], strides = [1, 1]} : vector<6x32xf32> to vector<4x32xf32>
    %60 = tpu.concatenate %57, %58, %59 in 1 : vector<4x32xf32>, vector<4x32xf32>, vector<4x32xf32> -> vector<4x96xf32>
    %c0_38 = arith.constant 0 : index
    %c0_39 = arith.constant 0 : index
    %c0_40 = arith.constant 0 : index
    %61 = vector.load %arg5[%c0_38, %c0_39, %c0_40] : memref<3x96x32xf32, #tpu.memory_space<vmem>>, vector<1x96x32xf32>
    %62 = vector.shape_cast %61 : vector<1x96x32xf32> to vector<96x32xf32>
    %cst_41 = arith.constant dense<0.000000e+00> : vector<4x32xf32>
    %63 = tpu.matmul %60, %62, %cst_41 {dimension_numbers = #tpu.dot_dimension_numbers<[1], [0], [0], [1], [0, 0, 1, 1], [], []>} : vector<4x96xf32>, vector<96x32xf32>, vector<4x32xf32> -> vector<4x32xf32>
    %64 = arith.addf %13, %63 : vector<4x32xf32>
    %c1_i32_42 = arith.constant 1 : i32
    %65 = arith.addi %52, %c1_i32_42 : i32
    %66 = arith.index_cast %65 : i32 to index
    %c0_43 = arith.constant 0 : index
    %c0_44 = arith.constant 0 : index
    %67 = vector.load %arg8[%66, %c0_43, %c0_44] : memref<4x6x32xf32, #tpu.memory_space<vmem>>, vector<1x6x32xf32>
    %68 = vector.shape_cast %67 : vector<1x6x32xf32> to vector<6x32xf32>
    %69 = vector.extract_strided_slice %68 {offsets = [0, 0], sizes = [4, 32], strides = [1, 1]} : vector<6x32xf32> to vector<4x32xf32>
    %70 = vector.extract_strided_slice %68 {offsets = [1, 0], sizes = [4, 32], strides = [1, 1]} : vector<6x32xf32> to vector<4x32xf32>
    %71 = vector.extract_strided_slice %68 {offsets = [2, 0], sizes = [4, 32], strides = [1, 1]} : vector<6x32xf32> to vector<4x32xf32>
    %72 = tpu.concatenate %69, %70, %71 in 1 : vector<4x32xf32>, vector<4x32xf32>, vector<4x32xf32> -> vector<4x96xf32>
    %c1_45 = arith.constant 1 : index
    %c0_46 = arith.constant 0 : index
    %c0_47 = arith.constant 0 : index
    %73 = vector.load %arg5[%c1_45, %c0_46, %c0_47] : memref<3x96x32xf32, #tpu.memory_space<vmem>>, vector<1x96x32xf32>
    %74 = vector.shape_cast %73 : vector<1x96x32xf32> to vector<96x32xf32>
    %cst_48 = arith.constant dense<0.000000e+00> : vector<4x32xf32>
    %75 = tpu.matmul %72, %74, %cst_48 {dimension_numbers = #tpu.dot_dimension_numbers<[1], [0], [0], [1], [0, 0, 1, 1], [], []>} : vector<4x96xf32>, vector<96x32xf32>, vector<4x32xf32> -> vector<4x32xf32>
    %76 = arith.addf %64, %75 : vector<4x32xf32>
    %c2_i32_49 = arith.constant 2 : i32
    %77 = arith.addi %52, %c2_i32_49 : i32
    %78 = arith.index_cast %77 : i32 to index
    %c0_50 = arith.constant 0 : index
    %c0_51 = arith.constant 0 : index
    %79 = vector.load %arg8[%78, %c0_50, %c0_51] : memref<4x6x32xf32, #tpu.memory_space<vmem>>, vector<1x6x32xf32>
    %80 = vector.shape_cast %79 : vector<1x6x32xf32> to vector<6x32xf32>
    %81 = vector.extract_strided_slice %80 {offsets = [0, 0], sizes = [4, 32], strides = [1, 1]} : vector<6x32xf32> to vector<4x32xf32>
    %82 = vector.extract_strided_slice %80 {offsets = [1, 0], sizes = [4, 32], strides = [1, 1]} : vector<6x32xf32> to vector<4x32xf32>
    %83 = vector.extract_strided_slice %80 {offsets = [2, 0], sizes = [4, 32], strides = [1, 1]} : vector<6x32xf32> to vector<4x32xf32>
    %84 = tpu.concatenate %81, %82, %83 in 1 : vector<4x32xf32>, vector<4x32xf32>, vector<4x32xf32> -> vector<4x96xf32>
    %c2_52 = arith.constant 2 : index
    %c0_53 = arith.constant 0 : index
    %c0_54 = arith.constant 0 : index
    %85 = vector.load %arg5[%c2_52, %c0_53, %c0_54] : memref<3x96x32xf32, #tpu.memory_space<vmem>>, vector<1x96x32xf32>
    %86 = vector.shape_cast %85 : vector<1x96x32xf32> to vector<96x32xf32>
    %cst_55 = arith.constant dense<0.000000e+00> : vector<4x32xf32>
    %87 = tpu.matmul %84, %86, %cst_55 {dimension_numbers = #tpu.dot_dimension_numbers<[1], [0], [0], [1], [0, 0, 1, 1], [], []>} : vector<4x96xf32>, vector<96x32xf32>, vector<4x32xf32> -> vector<4x32xf32>
    %88 = arith.addf %76, %87 : vector<4x32xf32>
    %89 = arith.maximumf %50, %88 : vector<4x32xf32>
    %cst_56 = arith.constant 0.000000e+00 : f32
    %90 = vector.broadcast %cst_56 : f32 to vector<4x32xf32>
    %91 = arith.maximumf %89, %90 : vector<4x32xf32>
    %c0_57 = arith.constant 0 : index
    %c0_58 = arith.constant 0 : index
    %92 = vector.load %arg9[%c0_57, %c0_58] : memref<4x32xf32, #tpu.memory_space<vmem>>, vector<4x32xf32>
    tpu.vector_store %arg9[%c0_57, %c0_58], %91 {strides = array<i32>} : memref<4x32xf32, #tpu.memory_space<vmem>>, vector<4x32xf32>,
    %c0_59 = arith.constant 0 : index
    %c0_60 = arith.constant 0 : index
    %93 = tpu.strided_load %arg9[%c0_59, %c0_60] {strides = array<i32: 2, 1>} : memref<4x32xf32, #tpu.memory_space<vmem>>, vector<2x32xf32>
    %c1_61 = arith.constant 1 : index
    %c0_62 = arith.constant 0 : index
    %94 = tpu.strided_load %arg9[%c1_61, %c0_62] {strides = array<i32: 2, 1>} : memref<4x32xf32, #tpu.memory_space<vmem>>, vector<2x32xf32>
    %95 = arith.maximumf %93, %94 : vector<2x32xf32>
    %c0_63 = arith.constant 0 : index
    %96 = arith.index_cast %c0_i32_12 : i32 to index
    %c0_64 = arith.constant 0 : index
    %c0_65 = arith.constant 0 : index
    %97 = vector.load %arg7[%c0_63, %96, %c0_64, %c0_65] : memref<1x1x2x32xf32, #tpu.memory_space<vmem>>, vector<1x1x2x32xf32>
    %98 = vector.shape_cast %97 : vector<1x1x2x32xf32> to vector<2x32xf32>
    %99 = vector.shape_cast %95 : vector<2x32xf32> to vector<1x1x2x32xf32>
    tpu.vector_store %arg7[%c0_63, %96, %c0_64, %c0_65], %99 {strides = array<i32>} : memref<1x1x2x32xf32, #tpu.memory_space<vmem>>, vector<1x1x2x32xf32>,
    %c1_i32_66 = arith.constant 1 : i32
    return
  }
  func.func @transform_0(%arg0: i32, %arg1: i32) -> (i32, i32, i32, i32) {
    %c2_i32 = arith.constant 2 : i32
    %0 = arith.muli %arg1, %c2_i32 : i32
    %c1_i32 = arith.constant 1 : i32
    %1 = arith.subi %0, %c1_i32 : i32
    %c0_i32 = arith.constant 0 : i32
    %2 = arith.maxsi %1, %c0_i32 : i32
    %c0_i32_0 = arith.constant 0 : i32
    %c0_i32_1 = arith.constant 0 : i32
    %c0_i32_2 = arith.constant 0 : i32
    return %arg0, %2, %c0_i32_0, %c0_i32_1 : i32, i32, i32, i32
  }
  func.func @transform_1(%arg0: i32, %arg1: i32) -> (i32, i32, i32, i32) {
    %c0_i32 = arith.constant 0 : i32
    %c0_i32_0 = arith.constant 0 : i32
    %c0_i32_1 = arith.constant 0 : i32
    return %arg0, %arg1, %c0_i32, %c0_i32_0 : i32, i32, i32, i32
  }
  func.func @transform_2(%arg0: i32, %arg1: i32) -> (i32, i32, i32, i32) {
    %c1_i32 = arith.constant 1 : i32
    %0 = arith.addi %arg1, %c1_i32 : i32
    %c2_i32 = arith.constant 2 : i32
    %1 = arith.muli %0, %c2_i32 : i32
    %c3_i32 = arith.constant 3 : i32
    %2 = arith.minsi %1, %c3_i32 : i32
    %c0_i32 = arith.constant 0 : i32
    %c0_i32_0 = arith.constant 0 : i32
    %c0_i32_1 = arith.constant 0 : i32
    return %arg0, %2, %c0_i32, %c0_i32_0 : i32, i32, i32, i32
  }
  func.func @transform_3(%arg0: i32, %arg1: i32) -> (i32, i32, i32) {
    %c0_i32 = arith.constant 0 : i32
    %c0_i32_0 = arith.constant 0 : i32
    %c0_i32_1 = arith.constant 0 : i32
    %c0_i32_2 = arith.constant 0 : i32
    return %c0_i32, %c0_i32_0, %c0_i32_1 : i32, i32, i32
  }
  func.func @transform_4(%arg0: i32, %arg1: i32) -> (i32, i32) {
    %c0_i32 = arith.constant 0 : i32
    %c0_i32_0 = arith.constant 0 : i32
    %c0_i32_1 = arith.constant 0 : i32
    return %c0_i32, %c0_i32_0 : i32, i32
  }
  func.func @transform_5(%arg0: i32, %arg1: i32) -> (i32, i32, i32, i32) {
    %c0_i32 = arith.constant 0 : i32
    %c0_i32_0 = arith.constant 0 : i32
    %c0_i32_1 = arith.constant 0 : i32
    return %arg0, %arg1, %c0_i32, %c0_i32_0 : i32, i32, i32, i32
  }
}

module attributes {stable_mosaic.version = 11 : i64} {
  func.func @_mlp_head_kernel(%arg0: i32, %arg1: memref<2x128xf32, #tpu.memory_space<vmem>>, %arg2: memref<128x256xf32, #tpu.memory_space<vmem>>, %arg3: memref<1x256xf32, #tpu.memory_space<vmem>>, %arg4: memref<256x10xf32, #tpu.memory_space<vmem>>, %arg5: memref<1x10xf32, #tpu.memory_space<vmem>>, %arg6: memref<2x10xf32, #tpu.memory_space<vmem>>, %arg7: memref<2x256xf32, #tpu.memory_space<vmem>>) attributes {dimension_semantics = [#tpu.dimension_semantics<arbitrary>], iteration_bounds = array<i64: 1>, scalar_prefetch = 0 : i64, scratch_operands = 1 : i64, tpu.core_type = #tpu.core_type<tc>, window_params = [{transform_indices = @transform_0, window_bounds = array<i64: 2, 128>}, {transform_indices = @transform_1, window_bounds = array<i64: 128, 256>}, {pipeline_mode = #tpu.pipeline_mode<synchronous>, transform_indices = @transform_2, window_bounds = array<i64: 1, 256>}, {pipeline_mode = #tpu.pipeline_mode<synchronous>, transform_indices = @transform_3, window_bounds = array<i64: 256, 10>}, {pipeline_mode = #tpu.pipeline_mode<synchronous>, transform_indices = @transform_4, window_bounds = array<i64: 1, 10>}, {pipeline_mode = #tpu.pipeline_mode<synchronous>, transform_indices = @transform_5, window_bounds = array<i64: 2, 10>}]} {
    %c0_i32 = arith.constant 0 : i32
    %0 = arith.cmpi eq, %arg0, %c0_i32 : i32
    %1 = arith.extui %0 : i1 to i32
    %c0_i32_0 = arith.constant 0 : i32
    %2 = arith.cmpi ne, %1, %c0_i32_0 : i32
    scf.if %2 {
      %cst_10 = arith.constant 0.000000e+00 : f32
      %12 = vector.broadcast %cst_10 : f32 to vector<2x256xf32>
      %c0_11 = arith.constant 0 : index
      %c0_12 = arith.constant 0 : index
      %13 = vector.load %arg7[%c0_11, %c0_12] : memref<2x256xf32, #tpu.memory_space<vmem>>, vector<2x256xf32>
      tpu.vector_store %arg7[%c0_11, %c0_12], %12 {strides = array<i32>} : memref<2x256xf32, #tpu.memory_space<vmem>>, vector<2x256xf32>,
    } else {
    }
    %c0 = arith.constant 0 : index
    %c0_1 = arith.constant 0 : index
    %3 = vector.load %arg7[%c0, %c0_1] : memref<2x256xf32, #tpu.memory_space<vmem>>, vector<2x256xf32>
    %c0_2 = arith.constant 0 : index
    %c0_3 = arith.constant 0 : index
    %4 = vector.load %arg1[%c0_2, %c0_3] : memref<2x128xf32, #tpu.memory_space<vmem>>, vector<2x128xf32>
    %c0_4 = arith.constant 0 : index
    %c0_5 = arith.constant 0 : index
    %5 = vector.load %arg2[%c0_4, %c0_5] : memref<128x256xf32, #tpu.memory_space<vmem>>, vector<128x256xf32>
    %cst = arith.constant dense<0.000000e+00> : vector<2x256xf32>
    %6 = tpu.matmul %4, %5, %cst {dimension_numbers = #tpu.dot_dimension_numbers<[1], [0], [0], [1], [0, 0, 1, 1], [], []>} : vector<2x128xf32>, vector<128x256xf32>, vector<2x256xf32> -> vector<2x256xf32>
    %7 = arith.addf %3, %6 : vector<2x256xf32>
    %c0_6 = arith.constant 0 : index
    %c0_7 = arith.constant 0 : index
    %8 = vector.load %arg7[%c0_6, %c0_7] : memref<2x256xf32, #tpu.memory_space<vmem>>, vector<2x256xf32>
    tpu.vector_store %arg7[%c0_6, %c0_7], %7 {strides = array<i32>} : memref<2x256xf32, #tpu.memory_space<vmem>>, vector<2x256xf32>,
    %c0_i32_8 = arith.constant 0 : i32
    %9 = arith.cmpi eq, %arg0, %c0_i32_8 : i32
    %10 = arith.extui %9 : i1 to i32
    %c0_i32_9 = arith.constant 0 : i32
    %11 = arith.cmpi ne, %10, %c0_i32_9 : i32
    scf.if %11 {
      %c0_10 = arith.constant 0 : index
      %c0_11 = arith.constant 0 : index
      %12 = vector.load %arg7[%c0_10, %c0_11] : memref<2x256xf32, #tpu.memory_space<vmem>>, vector<2x256xf32>
      %c0_12 = arith.constant 0 : index
      %c0_13 = arith.constant 0 : index
      %13 = vector.load %arg3[%c0_12, %c0_13] : memref<1x256xf32, #tpu.memory_space<vmem>>, vector<1x256xf32>
      %14 = vector.broadcast %13 : vector<1x256xf32> to vector<2x256xf32>
      %15 = arith.addf %12, %14 : vector<2x256xf32>
      %cst_14 = arith.constant 0.000000e+00 : f32
      %16 = vector.broadcast %cst_14 : f32 to vector<2x256xf32>
      %17 = arith.maximumf %15, %16 : vector<2x256xf32>
      %c0_15 = arith.constant 0 : index
      %c0_16 = arith.constant 0 : index
      %18 = vector.load %arg4[%c0_15, %c0_16] : memref<256x10xf32, #tpu.memory_space<vmem>>, vector<256x10xf32>
      %cst_17 = arith.constant dense<0.000000e+00> : vector<2x10xf32>
      %19 = tpu.matmul %17, %18, %cst_17 {dimension_numbers = #tpu.dot_dimension_numbers<[1], [0], [0], [1], [0, 0, 1, 1], [], []>} : vector<2x256xf32>, vector<256x10xf32>, vector<2x10xf32> -> vector<2x10xf32>
      %c0_18 = arith.constant 0 : index
      %c0_19 = arith.constant 0 : index
      %20 = vector.load %arg5[%c0_18, %c0_19] : memref<1x10xf32, #tpu.memory_space<vmem>>, vector<1x10xf32>
      %21 = vector.broadcast %20 : vector<1x10xf32> to vector<2x10xf32>
      %22 = arith.addf %19, %21 : vector<2x10xf32>
      %c0_20 = arith.constant 0 : index
      %c0_21 = arith.constant 0 : index
      %23 = vector.load %arg6[%c0_20, %c0_21] : memref<2x10xf32, #tpu.memory_space<vmem>>, vector<2x10xf32>
      tpu.vector_store %arg6[%c0_20, %c0_21], %22 {strides = array<i32>} : memref<2x10xf32, #tpu.memory_space<vmem>>, vector<2x10xf32>,
    } else {
    }
    return
  }
  func.func @transform_0(%arg0: i32) -> (i32, i32) {
    %c0_i32 = arith.constant 0 : i32
    %c0_i32_0 = arith.constant 0 : i32
    return %c0_i32, %arg0 : i32, i32
  }
  func.func @transform_1(%arg0: i32) -> (i32, i32) {
    %c0_i32 = arith.constant 0 : i32
    %c0_i32_0 = arith.constant 0 : i32
    return %arg0, %c0_i32 : i32, i32
  }
  func.func @transform_2(%arg0: i32) -> (i32, i32) {
    %c0_i32 = arith.constant 0 : i32
    %c0_i32_0 = arith.constant 0 : i32
    %c0_i32_1 = arith.constant 0 : i32
    return %c0_i32, %c0_i32_0 : i32, i32
  }
  func.func @transform_3(%arg0: i32) -> (i32, i32) {
    %c0_i32 = arith.constant 0 : i32
    %c0_i32_0 = arith.constant 0 : i32
    %c0_i32_1 = arith.constant 0 : i32
    return %c0_i32, %c0_i32_0 : i32, i32
  }
  func.func @transform_4(%arg0: i32) -> (i32, i32) {
    %c0_i32 = arith.constant 0 : i32
    %c0_i32_0 = arith.constant 0 : i32
    %c0_i32_1 = arith.constant 0 : i32
    return %c0_i32, %c0_i32_0 : i32, i32
  }
  func.func @transform_5(%arg0: i32) -> (i32, i32) {
    %c0_i32 = arith.constant 0 : i32
    %c0_i32_0 = arith.constant 0 : i32
    %c0_i32_1 = arith.constant 0 : i32
    return %c0_i32, %c0_i32_0 : i32, i32
  }
}

</mosaic_0001>

<llo_original>
// kernel: music_cnn_forward.4
$region0: #{music_cnn_forward.4}
  #allocation0 [shape = 'u32[]', space=smem, size = 0x4, offset = 0x4, fixed_abs, tag = 'smem constant byte address 0x4 - core index']
  #allocation1 [shape = 'u32[144,128]{1,0:T(1,128)}', space=vmem, size = 0x12000, scoped, tag = 'internal scratch']
  #allocation2 [shape = 'f32[10,18,1]{2,1,0:T(8,128)}', space=vmem, size = 0x1e000, scoped, tag = 'scratch operand']
  #allocation3 [shape = 'f32[16,64]{1,0:T(8,128)}', space=vmem, size = 0x2000, scoped, tag = 'scratch operand']
  %s0 = inlined_call_operand.vmem [shape: f32[2,16,16,1], index: 0, kind: input, shape index: {}, may-alias: {0,1,2}]
  %s1 = inlined_call_operand.vmem [shape: f32[2,16,16,1], index: 1, kind: input, shape index: {}, may-alias: {0,1,2}]
  %s2 = inlined_call_operand.vmem [shape: f32[2,16,16,1], index: 2, kind: input, shape index: {}, may-alias: {0,1,2}]
  %s3 = inlined_call_operand.vmem [shape: f32[3,3,64], index: 3, kind: input, shape index: {}]
  %s4 = inlined_call_operand.vmem [shape: f32[1,64], index: 4, kind: input, shape index: {}]
  %s5 = inlined_call_operand.vmem [shape: f32[2,8,8,64], index: 5, kind: output, shape index: {}]
  %s6 = sld [smem:[#allocation0]]
  $region68: #{music_cnn_forward.4} parent=0
    _
  %s8 = ssub.s32 1, %s6
  %s9 = scalar_select 0, %s8, %s6
  loop: start=0, step=1, limit=6
  $region2: #{music_cnn_forward.4} parent=0 // loop_pre_header
    _
  $region3: #{music_cnn_forward.4} parent=0 // loop_header
    %s11 = sphi 0, %s15
    %p12 = scmp.ge.s32.totalorder %s11, 6
    %s18 = sphi 0, %s30
    %s19 = sphi 0, %s26
    %s20 = sphi 0, %s18
    %s21 = sphi 0, %s19
    %s22 = sphi 0, %s20
    %s23 = sphi 0, %s21
    %s43 = sphi 0, %s45
    %s46 = sphi 0, %s43
    %s47 = sphi 0, %s46
    %s63 = sphi 0, %s47
    %s71 = sphi 0, %s73
    %s74 = sphi 0, %s71
    %s75 = sphi 0, %s74
    %s91 = sphi 0, %s75
    %s107 = sphi 0, %s109
    %s110 = sphi 0, %s107
    %s111 = sphi 0, %s110
    %s127 = sphi 0, %s111
    %s131 = sphi 0, %s131
    %s133 = sphi 0, %s131
    %s134 = sphi 0, %s133
    %s148 = sphi 0, %s134
    %s152 = sphi 0, %s152
    %s154 = sphi 0, %s152
    %s155 = sphi 0, %s154
    %s169 = sphi 0, %s155
    %s177 = sphi 0, %s179
    %s180 = sphi 0, %s177
    %s181 = sphi 0, %s180
    %s197 = sphi 0, %s181
  $region4: #{music_cnn_forward.4} parent=0 // loop_header_branch
    %14 = sbr.rel (%p12) target = $region8
  $region5: #{music_cnn_forward.4} parent=0 // loop_body
    %s16 = ssub.s32 %s11, 1
    %s17 = ssub.s32 %s11, 2
    %s24 = sadd.s32 1, %s19
    %p25 = scmp.ge.s32.totalorder %s24, 2
    %s26 = scalar_select %p25, 0, %s24
    %s27 = sadd.s32 1, %s18
    %s28 = scalar_select %p25, %s27, %s18
    %p29 = scmp.ge.s32.totalorder %s28, 2
    %s30 = scalar_select %p29, 0, %s28
    %s31 = smul.u32 %s19, 8
    %s32 = ssub.s32 %s31, 1
    %p33 = scmp.gt.s32.totalorder %s32, 0
    %s34 = scalar_select %p33, %s32, 0
    %s35 = smul.u32 %s26, 8
    %s36 = ssub.s32 %s35, 1
    %p37 = scmp.gt.s32.totalorder %s36, 0
    %s38 = scalar_select %p37, %s36, 0
    %s39 = ssub.s32 %s18, %s30
    %s40 = ssub.s32 %s34, %s38
    %s41 = sor.u32 %s39, %s40
    %p42 = scmp.eq.s32.totalorder %s41, 0
    %s44 = sadd.s32 %s43, 1
    %s45 = scalar_select %p42, %s43, %s44
    %p48 = pneg %p42
    %p49 = scmp.eq.s32.totalorder %s11, 3
    %p50 = por %p48, %p49
    %p51 = scmp.ne.s32.totalorder %s43, %s46
    %p52 = scmp.eq.s32.totalorder %s11, 0
    %p53 = por %p51, %p52
    %p54 = scmp.ne.s32.totalorder %s43, %s46
    %p55 = scmp.eq.s32.totalorder %s16, 3
    %p56 = por %p54, %p55
    %p57 = scmp.ne.s32.totalorder %s46, %s47
    %p58 = scmp.eq.s32.totalorder %s16, 0
    %p59 = por %p57, %p58
    %p60 = scmp.ne.s32.totalorder %s46, %s47
    %p61 = scmp.eq.s32.totalorder %s17, 3
    %p62 = por %p60, %p61
    %p64 = scmp.ne.s32.totalorder %s47, %s63
    %p65 = scmp.eq.s32.totalorder %s17, 0
    %p66 = por %p64, %p65
    %s67 = ssub.s32 %s18, %s30
    %s68 = ssub.s32 %s19, %s26
    %s69 = sor.u32 %s67, %s68
    %p70 = scmp.eq.s32.totalorder %s69, 0
    %s72 = sadd.s32 %s71, 1
    %s73 = scalar_select %p70, %s71, %s72
    %p76 = pneg %p70
    %p77 = scmp.eq.s32.totalorder %s11, 3
    %p78 = por %p76, %p77
    %p79 = scmp.ne.s32.totalorder %s71, %s74
    %p80 = scmp.eq.s32.totalorder %s11, 0
    %p81 = por %p79, %p80
    %p82 = scmp.ne.s32.totalorder %s71, %s74
    %p83 = scmp.eq.s32.totalorder %s16, 3
    %p84 = por %p82, %p83
    %p85 = scmp.ne.s32.totalorder %s74, %s75
    %p86 = scmp.eq.s32.totalorder %s16, 0
    %p87 = por %p85, %p86
    %p88 = scmp.ne.s32.totalorder %s74, %s75
    %p89 = scmp.eq.s32.totalorder %s17, 3
    %p90 = por %p88, %p89
    %p92 = scmp.ne.s32.totalorder %s75, %s91
    %p93 = scmp.eq.s32.totalorder %s17, 0
    %p94 = por %p92, %p93
    %s95 = sadd.s32 %s19, 1
    %s96 = smul.u32 %s95, 8
    %p97 = scmp.lt.s32.totalorder %s96, 15
    %s98 = scalar_select %p97, %s96, 15
    %s99 = sadd.s32 %s26, 1
    %s100 = smul.u32 %s99, 8
    %p101 = scmp.lt.s32.totalorder %s100, 15
    %s102 = scalar_select %p101, %s100, 15
    %s103 = ssub.s32 %s18, %s30
    %s104 = ssub.s32 %s98, %s102
    %s105 = sor.u32 %s103, %s104
    %p106 = scmp.eq.s32.totalorder %s105, 0
    %s108 = sadd.s32 %s107, 1
    %s109 = scalar_select %p106, %s107, %s108
    %p112 = pneg %p106
    %p113 = scmp.eq.s32.totalorder %s11, 3
    %p114 = por %p112, %p113
    %p115 = scmp.ne.s32.totalorder %s107, %s110
    %p116 = scmp.eq.s32.totalorder %s11, 0
    %p117 = por %p115, %p116
    %p118 = scmp.ne.s32.totalorder %s107, %s110
    %p119 = scmp.eq.s32.totalorder %s16, 3
    %p120 = por %p118, %p119
    %p121 = scmp.ne.s32.totalorder %s110, %s111
    %p122 = scmp.eq.s32.totalorder %s16, 0
    %p123 = por %p121, %p122
    %p124 = scmp.ne.s32.totalorder %s110, %s111
    %p125 = scmp.eq.s32.totalorder %s17, 3
    %p126 = por %p124, %p125
    %p128 = scmp.ne.s32.totalorder %s111, %s127
    %p129 = scmp.eq.s32.totalorder %s17, 0
    %p130 = por %p128, %p129
    %s132 = sadd.s32 %s131, 1
    %p135 = scmp.eq.s32.totalorder %s11, 3
    %p136 = scmp.ne.s32.totalorder %s131, %s133
    %p137 = scmp.eq.s32.totalorder %s11, 0
    %p138 = por %p136, %p137
    %p139 = scmp.ne.s32.totalorder %s131, %s133
    %p140 = scmp.eq.s32.totalorder %s16, 3
    %p141 = por %p139, %p140
    %p142 = scmp.ne.s32.totalorder %s133, %s134
    %p143 = scmp.eq.s32.totalorder %s16, 0
    %p144 = por %p142, %p143
    %p145 = scmp.ne.s32.totalorder %s133, %s134
    %p146 = scmp.eq.s32.totalorder %s17, 3
    %p147 = por %p145, %p146
    %p149 = scmp.ne.s32.totalorder %s134, %s148
    %p150 = scmp.eq.s32.totalorder %s17, 0
    %p151 = por %p149, %p150
    %s153 = sadd.s32 %s152, 1
    %p156 = scmp.eq.s32.totalorder %s11, 3
    %p157 = scmp.ne.s32.totalorder %s152, %s154
    %p158 = scmp.eq.s32.totalorder %s11, 0
    %p159 = por %p157, %p158
    %p160 = scmp.ne.s32.totalorder %s152, %s154
    %p161 = scmp.eq.s32.totalorder %s16, 3
    %p162 = por %p160, %p161
    %p163 = scmp.ne.s32.totalorder %s154, %s155
    %p164 = scmp.eq.s32.totalorder %s16, 0
    %p165 = por %p163, %p164
    %p166 = scmp.ne.s32.totalorder %s154, %s155
    %p167 = scmp.eq.s32.totalorder %s17, 3
    %p168 = por %p166, %p167
    %p170 = scmp.ne.s32.totalorder %s155, %s169
    %p171 = scmp.eq.s32.totalorder %s17, 0
    %p172 = por %p170, %p171
    %s173 = ssub.s32 %s18, %s30
    %s174 = ssub.s32 %s19, %s26
    %s175 = sor.u32 %s173, %s174
    %p176 = scmp.eq.s32.totalorder %s175, 0
    %s178 = sadd.s32 %s177, 1
    %s179 = scalar_select %p176, %s177, %s178
    %p182 = pneg %p176
    %p183 = scmp.eq.s32.totalorder %s11, 3
    %p184 = por %p182, %p183
    %p185 = scmp.ne.s32.totalorder %s177, %s180
    %p186 = scmp.eq.s32.totalorder %s11, 0
    %p187 = por %p185, %p186
    %p188 = scmp.ne.s32.totalorder %s177, %s180
    %p189 = scmp.eq.s32.totalorder %s16, 3
    %p190 = por %p188, %p189
    %p191 = scmp.ne.s32.totalorder %s180, %s181
    %p192 = scmp.eq.s32.totalorder %s16, 0
    %p193 = por %p191, %p192
    %p194 = scmp.ne.s32.totalorder %s180, %s181
    %p195 = scmp.eq.s32.totalorder %s17, 3
    %p196 = por %p194, %p195
    %p198 = scmp.ne.s32.totalorder %s181, %s197
    %p199 = scmp.eq.s32.totalorder %s17, 0
    %p200 = por %p198, %p199
    %p201 = scmp.le.s32.totalorder 1, %s11
    %p202 = scmp.lt.s32.totalorder %s11, 5
    %p203 = pnand %p201, %p202
    %p204 = pneg %p203
    // Predicated region
    $region9: #{music_cnn_forward.4} parent=5 // pred_check
      _
    $region10: #{music_cnn_forward.4} parent=5 // pred_check_branch
      %206 = sbr.rel (%p203) target = $region12
    $region11: #{music_cnn_forward.4} parent=5 // pred_region
      %s207 = ssub.s32 %s11, 1
      // Predicated region
      $region13: #{music_cnn_forward.4} parent=11 // pred_check
        %p208 = pneg %p144
      $region14: #{music_cnn_forward.4} parent=11 // pred_check_branch
        %210 = sbr.rel (%p208) target = $region16
      $region15: #{music_cnn_forward.4} parent=11 // pred_region
        _
      $region16: #{music_cnn_forward.4} parent=11 // pred_fallthru
        _
      // Predicated region
      $region17: #{music_cnn_forward.4} parent=11 // pred_check
        %p211 = pneg %p165
      $region18: #{music_cnn_forward.4} parent=11 // pred_check_branch
        %213 = sbr.rel (%p211) target = $region20
      $region19: #{music_cnn_forward.4} parent=11 // pred_region
        _
      $region20: #{music_cnn_forward.4} parent=11 // pred_fallthru
        _
    $region12: #{music_cnn_forward.4} parent=5 // pred_fallthru
      _
    %p214 = scmp.lt.s32.totalorder %s11, 4
    // Predicated region
    $region21: #{music_cnn_forward.4} parent=5 // pred_check
      %p215 = pneg %p214
    $region22: #{music_cnn_forward.4} parent=5 // pred_check_branch
      %217 = sbr.rel (%p215) target = $region24
    $region23: #{music_cnn_forward.4} parent=5 // pred_region
      // Predicated region
      $region25: #{music_cnn_forward.4} parent=23 // pred_check
        %p218 = pneg %p53
      $region26: #{music_cnn_forward.4} parent=23 // pred_check_branch
        %220 = sbr.rel (%p218) target = $region28
      $region27: #{music_cnn_forward.4} parent=23 // pred_region
        %s221 = smul.u32 %s19, 8
        %s222 = ssub.s32 %s221, 1
        %p223 = scmp.gt.s32.totalorder %s222, 0
        %s224 = scalar_select %p223, %s222, 0
        %p225 = scmp.lt.s32.totalorder %s18, 1
        %s226 = scalar_select %p225, %s18, 1
        %p227 = scmp.lt.s32.totalorder %s224, 15
        %s228 = scalar_select %p227, %s224, 15
        %s229 = smul.addr %s228, 2
        %s230 = smul.addr %s226, 32
        %s231 = sadd.s32 %s229, %s230
        %s232 = smul.addr %s231, 8
        %s233 = scalar_lea.vmem %s0, %s232
        %s234 = smul.u32 %s19, 8
        %s235 = ssub.s32 %s234, 1
        %p236 = scmp.gt.s32.totalorder %s235, 0
        %s237 = scalar_select %p236, %s235, 0
      $region28: #{music_cnn_forward.4} parent=23 // pred_fallthru
        _
      // Predicated region
      $region29: #{music_cnn_forward.4} parent=23 // pred_check
        %p238 = pneg %p81
      $region30: #{music_cnn_forward.4} parent=23 // pred_check_branch
        %240 = sbr.rel (%p238) target = $region32
      $region31: #{music_cnn_forward.4} parent=23 // pred_region
        %s241 = smul.u32 8, %s19
        %p242 = scmp.lt.s32.totalorder %s18, 1
        %s243 = scalar_select %p242, %s18, 1
        %p244 = scmp.lt.s32.totalorder %s241, 15
        %s245 = scalar_select %p244, %s241, 15
        %s246 = smul.addr %s245, 2
        %s247 = smul.addr %s243, 32
        %s248 = sadd.s32 %s246, %s247
        %s249 = smul.addr %s248, 8
        %s250 = scalar_lea.vmem %s1, %s249
        %s251 = smul.u32 8, %s19
      $region32: #{music_cnn_forward.4} parent=23 // pred_fallthru
        _
      // Predicated region
      $region33: #{music_cnn_forward.4} parent=23 // pred_check
        %p252 = pneg %p117
      $region34: #{music_cnn_forward.4} parent=23 // pred_check_branch
        %254 = sbr.rel (%p252) target = $region36
      $region35: #{music_cnn_forward.4} parent=23 // pred_region
        %s255 = sadd.s32 %s19, 1
        %s256 = smul.u32 %s255, 8
        %p257 = scmp.lt.s32.totalorder %s256, 15
        %s258 = scalar_select %p257, %s256, 15
        %p259 = scmp.lt.s32.totalorder %s18, 1
        %s260 = scalar_select %p259, %s18, 1
        %p261 = scmp.lt.s32.totalorder %s258, 15
        %s262 = scalar_select %p261, %s258, 15
        %s263 = smul.addr %s262, 2
        %s264 = smul.addr %s260, 32
        %s265 = sadd.s32 %s263, %s264
        %s266 = smul.addr %s265, 8
        %s267 = scalar_lea.vmem %s2, %s266
        %s268 = sadd.s32 %s19, 1
        %s269 = smul.u32 %s268, 8
        %p270 = scmp.lt.s32.totalorder %s269, 15
        %s271 = scalar_select %p270, %s269, 15
      $region36: #{music_cnn_forward.4} parent=23 // pred_fallthru
        _
    $region24: #{music_cnn_forward.4} parent=5 // pred_fallthru
      _
    %p272 = scmp.le.s32.totalorder 1, %s11
    %p273 = scmp.lt.s32.totalorder %s11, 5
    %p274 = pnand %p272, %p273
    %p275 = pneg %p274
    // Predicated region
    $region37: #{music_cnn_forward.4} parent=5 // pred_check
      _
    $region38: #{music_cnn_forward.4} parent=5 // pred_check_branch
      %277 = sbr.rel (%p274) target = $region40
    $region39: #{music_cnn_forward.4} parent=5 // pred_region
      %s278 = ssub.s32 %s11, 1
      %s279 = smul.u32 %s21, 8
      %s280 = ssub.s32 %s279, 1
      %p281 = scmp.gt.s32.totalorder %s280, 0
      %s282 = scalar_select %p281, %s280, 0
      %p283 = scmp.lt.s32.totalorder %s20, 1
      %s284 = scalar_select %p283, %s20, 1
      %p285 = scmp.lt.s32.totalorder %s282, 15
      %s286 = scalar_select %p285, %s282, 15
      %s287 = smul.addr %s286, 2
      %s288 = smul.addr %s284, 32
      %s289 = sadd.s32 %s287, %s288
      %s290 = smul.addr %s289, 8
      %s291 = scalar_lea.vmem %s0, %s290
      %p292 = pneg %p59
      %p293 = pneg %p56
      %s294 = smul.u32 8, %s21
      %p295 = scmp.lt.s32.totalorder %s20, 1
      %s296 = scalar_select %p295, %s20, 1
      %p297 = scmp.lt.s32.totalorder %s294, 15
      %s298 = scalar_select %p297, %s294, 15
      %s299 = smul.addr %s298, 2
      %s300 = smul.addr %s296, 32
      %s301 = sadd.s32 %s299, %s300
      %s302 = smul.addr %s301, 8
      %s303 = scalar_lea.vmem %s1, %s302
      %p304 = pneg %p87
      %p305 = pneg %p84
      %s306 = sadd.s32 %s21, 1
      %s307 = smul.u32 %s306, 8
      %p308 = scmp.lt.s32.totalorder %s307, 15
      %s309 = scalar_select %p308, %s307, 15
      %p310 = scmp.lt.s32.totalorder %s20, 1
      %s311 = scalar_select %p310, %s20, 1
      %p312 = scmp.lt.s32.totalorder %s309, 15
      %s313 = scalar_select %p312, %s309, 15
      %s314 = smul.addr %s313, 2
      %s315 = smul.addr %s311, 32
      %s316 = sadd.s32 %s314, %s315
      %s317 = smul.addr %s316, 8
      %s318 = scalar_lea.vmem %s2, %s317
      %p319 = pneg %p123
      %p320 = pneg %p120
      %p321 = pneg %p144
      %p322 = pneg %p141
      %p323 = pneg %p165
      %p324 = pneg %p162
      %p325 = pneg %p193
      %p326 = pneg %p190
      %s327 = smul.u32 4, %s21
      %p328 = scmp.lt.s32.totalorder %s20, 1
      %s329 = scalar_select %p328, %s20, 1
      %p330 = scmp.lt.s32.totalorder %s327, 7
      %s331 = scalar_select %p330, %s327, 7
      %s332 = smul.addr %s329, 8
      %s333 = sadd.s32 %s331, %s332
      %s334 = smul.addr %s333, 8
      %s335 = scalar_lea.vmem %s5, %s334
      %s336 = smul.u32 %s21, 8
      %s337 = ssub.s32 %s336, 1
      %p338 = scmp.gt.s32.totalorder %s337, 0
      %s339 = scalar_select %p338, %s337, 0
      %p340 = scmp.lt.s32.totalorder %s20, 1
      %s341 = scalar_select %p340, %s20, 1
      %p342 = scmp.lt.s32.totalorder %s339, 15
      %s343 = scalar_select %p342, %s339, 15
      %s344 = smul.addr %s343, 2
      %s345 = smul.addr %s341, 32
      %s346 = sadd.s32 %s344, %s345
      %s347 = smul.addr %s346, 8
      %s348 = scalar_lea.vmem %s0, %s347
      %s349 = smul.u32 %s21, 8
      %s350 = ssub.s32 %s349, 1
      %p351 = scmp.gt.s32.totalorder %s350, 0
      %s352 = scalar_select %p351, %s350, 0
      %s353 = smul.u32 8, %s21
      %p354 = scmp.lt.s32.totalorder %s20, 1
      %s355 = scalar_select %p354, %s20, 1
      %p356 = scmp.lt.s32.totalorder %s353, 15
      %s357 = scalar_select %p356, %s353, 15
      %s358 = smul.addr %s357, 2
      %s359 = smul.addr %s355, 32
      %s360 = sadd.s32 %s358, %s359
      %s361 = smul.addr %s360, 8
      %s362 = scalar_lea.vmem %s1, %s361
      %s363 = smul.u32 8, %s21
      %s364 = sadd.s32 %s21, 1
      %s365 = smul.u32 %s364, 8
      %p366 = scmp.lt.s32.totalorder %s365, 15
      %s367 = scalar_select %p366, %s365, 15
      %p368 = scmp.lt.s32.totalorder %s20, 1
      %s369 = scalar_select %p368, %s20, 1
      %p370 = scmp.lt.s32.totalorder %s367, 15
      %s371 = scalar_select %p370, %s367, 15
      %s372 = smul.addr %s371, 2
      %s373 = smul.addr %s369, 32
      %s374 = sadd.s32 %s372, %s373
      %s375 = smul.addr %s374, 8
      %s376 = scalar_lea.vmem %s2, %s375
      %s377 = sadd.s32 %s21, 1
      %s378 = smul.u32 %s377, 8
      %p379 = scmp.lt.s32.totalorder %s378, 15
      %s380 = scalar_select %p379, %s378, 15
      %s381 = smul.u32 4, %s21
      %p382 = scmp.lt.s32.totalorder %s20, 1
      %s383 = scalar_select %p382, %s20, 1
      %p384 = scmp.lt.s32.totalorder %s381, 7
      %s385 = scalar_select %p384, %s381, 7
      %s386 = smul.addr %s383, 8
      %s387 = sadd.s32 %s385, %s386
      %s388 = smul.addr %s387, 8
      %s389 = scalar_lea.vmem %s5, %s388
      %s390 = smul.u32 4, %s21
      %vm391 = vcmask 7168
      %392 = vst.msk [vmem:[#allocation2] sm:$0xff] %vm391, 0.0
      %393 = vst.msk [vmem:[#allocation2 + $0x8] sm:$0xff] %vm391, 0.0
      %vm394 = vcmask 1024
      %395 = vst.msk [vmem:[#allocation2 + $0x10] sm:$0x3] %vm394, 0.0
      %396 = vst.msk [vmem:[#allocation2 + $0x18] sm:$0xff] %vm391, 0.0
      %397 = vst.msk [vmem:[#allocation2 + $0x20] sm:$0xff] %vm391, 0.0
      %398 = vst.msk [vmem:[#allocation2 + $0x28] sm:$0x3] %vm394, 0.0
      %399 = vst.msk [vmem:[#allocation2 + $0x30] sm:$0xff] %vm391, 0.0
      %400 = vst.msk [vmem:[#allocation2 + $0x38] sm:$0xff] %vm391, 0.0
      %401 = vst.msk [vmem:[#allocation2 + $0x40] sm:$0x3] %vm394, 0.0
      %402 = vst.msk [vmem:[#allocation2 + $0x48] sm:$0xff] %vm391, 0.0
      %403 = vst.msk [vmem:[#allocation2 + $0x50] sm:$0xff] %vm391, 0.0
      %404 = vst.msk [vmem:[#allocation2 + $0x58] sm:$0x3] %vm394, 0.0
      %405 = vst.msk [vmem:[#allocation2 + $0x60] sm:$0xff] %vm391, 0.0
      %406 = vst.msk [vmem:[#allocation2 + $0x68] sm:$0xff] %vm391, 0.0
      %407 = vst.msk [vmem:[#allocation2 + $0x70] sm:$0x3] %vm394, 0.0
      %408 = vst.msk [vmem:[#allocation2 + $0x78] sm:$0xff] %vm391, 0.0
      %409 = vst.msk [vmem:[#allocation2 + $0x80] sm:$0xff] %vm391, 0.0
      %410 = vst.msk [vmem:[#allocation2 + $0x88] sm:$0x3] %vm394, 0.0
      %411 = vst.msk [vmem:[#allocation2 + $0x90] sm:$0xff] %vm391, 0.0
      %412 = vst.msk [vmem:[#allocation2 + $0x98] sm:$0xff] %vm391, 0.0
      %413 = vst.msk [vmem:[#allocation2 + $0xa0] sm:$0x3] %vm394, 0.0
      %414 = vst.msk [vmem:[#allocation2 + $0xa8] sm:$0xff] %vm391, 0.0
      %415 = vst.msk [vmem:[#allocation2 + $0xb0] sm:$0xff] %vm391, 0.0
      %416 = vst.msk [vmem:[#allocation2 + $0xb8] sm:$0x3] %vm394, 0.0
      %417 = vst.msk [vmem:[#allocation2 + $0xc0] sm:$0xff] %vm391, 0.0
      %418 = vst.msk [vmem:[#allocation2 + $0xc8] sm:$0xff] %vm391, 0.0
      %419 = vst.msk [vmem:[#allocation2 + $0xd0] sm:$0x3] %vm394, 0.0
      %420 = vst.msk [vmem:[#allocation2 + $0xd8] sm:$0xff] %vm391, 0.0
      %421 = vst.msk [vmem:[#allocation2 + $0xe0] sm:$0xff] %vm391, 0.0
      %422 = vst.msk [vmem:[#allocation2 + $0xe8] sm:$0x3] %vm394, 0.0
      %v423 = vld [vmem:[%s362] sm:$0xff]
      %v424 = vld [vmem:[%s362 + $0x8] sm:$0xff]
      %v425 = vld [vmem:[%s362 + $0x10] sm:$0xff]
      %v426 = vld [vmem:[%s362 + $0x18] sm:$0xff]
      %v427 = vld [vmem:[%s362 + $0x20] sm:$0xff]
      %v428 = vld [vmem:[%s362 + $0x28] sm:$0xff]
      %v429 = vld [vmem:[%s362 + $0x30] sm:$0xff]
      %v430 = vld [vmem:[%s362 + $0x38] sm:$0xff]
      %v431 = vld [vmem:[%s362 + $0x40] sm:$0xff]
      %v432 = vld [vmem:[%s362 + $0x48] sm:$0xff]
      %v433 = vld [vmem:[%s362 + $0x50] sm:$0xff]
      %v434 = vld [vmem:[%s362 + $0x58] sm:$0xff]
      %v435 = vld [vmem:[%s362 + $0x60] sm:$0xff]
      %v436 = vld [vmem:[%s362 + $0x68] sm:$0xff]
      %v437 = vld [vmem:[%s362 + $0x70] sm:$0xff]
      %v438 = vld [vmem:[%s362 + $0x78] sm:$0xff]
      %s439 = scalar_lea.vmem [#allocation2], 24
      %440 = vst.msk [vmem:[%s439 + $0x1] sm:$0xff] %vm391, %v423
      %441 = vst.msk [vmem:[%s439 + $0x9] sm:$0xff] %vm391, %v424
      %442 = vst.msk [vmem:[%s439 + $0x19] sm:$0xff] %vm391, %v425
      %443 = vst.msk [vmem:[%s439 + $0x21] sm:$0xff] %vm391, %v426
      %444 = vst.msk [vmem:[%s439 + $0x31] sm:$0xff] %vm391, %v427
      %445 = vst.msk [vmem:[%s439 + $0x39] sm:$0xff] %vm391, %v428
      %446 = vst.msk [vmem:[%s439 + $0x49] sm:$0xff] %vm391, %v429
      %447 = vst.msk [vmem:[%s439 + $0x51] sm:$0xff] %vm391, %v430
      %448 = vst.msk [vmem:[%s439 + $0x61] sm:$0xff] %vm391, %v431
      %449 = vst.msk [vmem:[%s439 + $0x69] sm:$0xff] %vm391, %v432
      %450 = vst.msk [vmem:[%s439 + $0x79] sm:$0xff] %vm391, %v433
      %451 = vst.msk [vmem:[%s439 + $0x81] sm:$0xff] %vm391, %v434
      %452 = vst.msk [vmem:[%s439 + $0x91] sm:$0xff] %vm391, %v435
      %453 = vst.msk [vmem:[%s439 + $0x99] sm:$0xff] %vm391, %v436
      %454 = vst.msk [vmem:[%s439 + $0xa9] sm:$0xff] %vm391, %v437
      %455 = vst.msk [vmem:[%s439 + $0xb1] sm:$0xff] %vm391, %v438
      %p456 = scmp.gt.s32.totalorder %s21, 0
      // Predicated region
      $region41: #{music_cnn_forward.4} parent=39 // pred_check
        %p457 = pneg %p456
      $region42: #{music_cnn_forward.4} parent=39 // pred_check_branch
        %459 = sbr.rel (%p457) target = $region44
      $region43: #{music_cnn_forward.4} parent=39 // pred_region
        %v460 = vld [vmem:[%s348] sm:$0xff]
        %v461 = vld [vmem:[%s348 + $0x8] sm:$0xff]
        %462 = vst.msk [vmem:[#allocation2 + $0x1] sm:$0xff] %vm391, %v460
        %463 = vst.msk [vmem:[#allocation2 + $0x9] sm:$0xff] %vm391, %v461
      $region44: #{music_cnn_forward.4} parent=39 // pred_fallthru
        _
      %p464 = scmp.lt.s32.totalorder %s21, 1
      // Predicated region
      $region45: #{music_cnn_forward.4} parent=39 // pred_check
        %p465 = pneg %p464
      $region46: #{music_cnn_forward.4} parent=39 // pred_check_branch
        %467 = sbr.rel (%p465) target = $region48
      $region47: #{music_cnn_forward.4} parent=39 // pred_region
        %v468 = vld [vmem:[%s376] sm:$0xff]
        %v469 = vld [vmem:[%s376 + $0x8] sm:$0xff]
        %s470 = scalar_lea.vmem [#allocation2], 216
        %471 = vst.msk [vmem:[%s470 + $0x1] sm:$0xff] %vm391, %v468
        %472 = vst.msk [vmem:[%s470 + $0x9] sm:$0xff] %vm391, %v469
      $region48: #{music_cnn_forward.4} parent=39 // pred_fallthru
        _
      %v473 = vld [vmem:[%s4] sm:$0x1]
      %v475 = vlaneseq
      %v476 = vshrl.u32 %v475, 7
      %v477 = vsub.s32 0, %v476
      %v478 = vrot.slane %v473, %v477
      loop: start=0, step=1, limit=4
      $region49: #{music_cnn_forward.4} parent=39 // loop_pre_header
        _
      $region50: #{music_cnn_forward.4} parent=39 // loop_header
        %s481 = sphi 0, %s485
        %p482 = scmp.ge.s32.totalorder %s481, 4
      $region51: #{music_cnn_forward.4} parent=39 // loop_header_branch
        %484 = sbr.rel (%p482) target = $region55
      $region52: #{music_cnn_forward.4} parent=39 // loop_body
        %s486 = smul.u32 %s481, 2
        %s487 = smul.u32 %s486, 24
        %s488 = scalar_lea.vmem [#allocation2], %s487
        %v489 = vld [vmem:[%s488] sm:$0xff]
        %v490 = vld [vmem:[%s488 + $0x8] sm:$0xff]
        %v491 = vld [vmem:[%s488 + $0x10] sm:$0x3]
        %v492 = vld [vmem:[%s3] sm:$0x1]
        %494 = vset.pattern.permute.xlu0 0
        %495 = vperm.xlu0 %494, %v489
        %v496 = vpop.permute.xlu0 %495
        %499 = vset.pattern.permute.xlu0 0
        %500 = vperm.xlu0 %499, %v490
        %v501 = vpop.permute.xlu0 %500
        %v503 = vlaneseq
        %v504 = vshrl.u32 %v503, 7
        %v505 = vsub.s32 0, %v504
        %v506 = vrot.slane %v492, %v505
        %v507 = vmul.f32 %v496, %v506
        %v508 = vmul.f32 %v501, %v506
        %v509 = vadd.f32 %v478, %v507
        %v510 = vadd.f32 %v478, %v508
        %v511 = vld [vmem:[%s3 + $0x1] sm:$0x1]
        %513 = vset.pattern.permute.xlu0 0
        %514 = vperm.xlu0 %513, %v491
        %v515 = vpop.permute.xlu0 %514
        %v517 = vlaneseq
        %v518 = vshrl.u32 %v517, 7
        %v519 = vsub.s32 0, %v518
        %v520 = vrot.slane %v511, %v519
        %v521 = vmul.f32 %v496, %v520
        %v522 = vmul.f32 %v501, %v520
        %v523 = vmul.f32 %v515, %v520
        %vm527 = vcmask 1046528
        %v528 = vrot.slane %v521, 1
        %v529 = vrot.slane %v522, 1
        %v530 = vsel %vm527, %v528, %v529
        %v531 = vrot.slane %v523, 1
        %v532 = vsel %vm527, %v529, %v531
        %v535 = vadd.f32 %v509, %v530
        %v536 = vadd.f32 %v510, %v532
        %v537 = vld [vmem:[%s3 + $0x2] sm:$0x1]
        %v538 = vlaneseq
        %v539 = vshrl.u32 %v538, 7
        %v540 = vsub.s32 0, %v539
        %v541 = vrot.slane %v537, %v540
        %v542 = vmul.f32 %v496, %v541
        %v543 = vmul.f32 %v501, %v541
        %v544 = vmul.f32 %v515, %v541
        %vm548 = vcmask 1045504
        %v549 = vrot.slane %v542, 2
        %v550 = vrot.slane %v543, 2
        %v551 = vsel %vm548, %v549, %v550
        %v552 = vrot.slane %v544, 2
        %v553 = vsel %vm548, %v550, %v552
        %v556 = vadd.f32 %v535, %v551
        %v557 = vadd.f32 %v536, %v553
        %s558 = sadd.s32 %s486, 1
        %s559 = smul.u32 %s558, 24
        %s560 = scalar_lea.vmem [#allocation2], %s559
        %v561 = vld [vmem:[%s560] sm:$0xff]
        %v562 = vld [vmem:[%s560 + $0x8] sm:$0xff]
        %v563 = vld [vmem:[%s560 + $0x10] sm:$0x3]
        %s564 = scalar_lea.vmem %s3, 4
        %v565 = vld [vmem:[%s564] sm:$0x1]
        %567 = vset.pattern.permute.xlu0 0
        %568 = vperm.xlu0 %567, %v561
        %v569 = vpop.permute.xlu0 %568
        %572 = vset.pattern.permute.xlu0 0
        %573 = vperm.xlu0 %572, %v562
        %v574 = vpop.permute.xlu0 %573
        %v576 = vlaneseq
        %v577 = vshrl.u32 %v576, 7
        %v578 = vsub.s32 0, %v577
        %v579 = vrot.slane %v565, %v578
        %v580 = vmul.f32 %v569, %v579
        %v581 = vmul.f32 %v574, %v579
        %v582 = vadd.f32 %v556, %v580
        %v583 = vadd.f32 %v557, %v581
        %v584 = vld [vmem:[%s564 + $0x1] sm:$0x1]
        %586 = vset.pattern.permute.xlu0 0
        %587 = vperm.xlu0 %586, %v563
        %v588 = vpop.permute.xlu0 %587
        %v590 = vlaneseq
        %v591 = vshrl.u32 %v590, 7
        %v592 = vsub.s32 0, %v591
        %v593 = vrot.slane %v584, %v592
        %v594 = vmul.f32 %v569, %v593
        %v595 = vmul.f32 %v574, %v593
        %v596 = vmul.f32 %v588, %v593
        %v600 = vrot.slane %v594, 1
        %v601 = vrot.slane %v595, 1
        %v602 = vsel %vm527, %v600, %v601
        %v603 = vrot.slane %v596, 1
        %v604 = vsel %vm527, %v601, %v603
        %v607 = vadd.f32 %v582, %v602
        %v608 = vadd.f32 %v583, %v604
        %v609 = vld [vmem:[%s564 + $0x2] sm:$0x1]
        %v610 = vlaneseq
        %v611 = vshrl.u32 %v610, 7
        %v612 = vsub.s32 0, %v611
        %v613 = vrot.slane %v609, %v612
        %v614 = vmul.f32 %v569, %v613
        %v615 = vmul.f32 %v574, %v613
        %v616 = vmul.f32 %v588, %v613
        %v620 = vrot.slane %v614, 2
        %v621 = vrot.slane %v615, 2
        %v622 = vsel %vm548, %v620, %v621
        %v623 = vrot.slane %v616, 2
        %v624 = vsel %vm548, %v621, %v623
        %v627 = vadd.f32 %v607, %v622
        %v628 = vadd.f32 %v608, %v624
        %s629 = sadd.s32 %s486, 2
        %s630 = smul.u32 %s629, 24
        %s631 = scalar_lea.vmem [#allocation2], %s630
        %v632 = vld [vmem:[%s631] sm:$0xff]
        %v633 = vld [vmem:[%s631 + $0x8] sm:$0xff]
        %v634 = vld [vmem:[%s631 + $0x10] sm:$0x3]
        %s635 = scalar_lea.vmem %s3, 8
        %v636 = vld [vmem:[%s635] sm:$0x1]
        %638 = vset.pattern.permute.xlu0 0
        %639 = vperm.xlu0 %638, %v632
        %v640 = vpop.permute.xlu0 %639
        %643 = vset.pattern.permute.xlu0 0
        %644 = vperm.xlu0 %643, %v633
        %v645 = vpop.permute.xlu0 %644
        %v647 = vlaneseq
        %v648 = vshrl.u32 %v647, 7
        %v649 = vsub.s32 0, %v648
        %v650 = vrot.slane %v636, %v649
        %v651 = vmul.f32 %v640, %v650
        %v652 = vmul.f32 %v645, %v650
        %v653 = vadd.f32 %v627, %v651
        %v654 = vadd.f32 %v628, %v652
        %v655 = vld [vmem:[%s635 + $0x1] sm:$0x1]
        %657 = vset.pattern.permute.xlu0 0
        %658 = vperm.xlu0 %657, %v634
        %v659 = vpop.permute.xlu0 %658
        %v661 = vlaneseq
        %v662 = vshrl.u32 %v661, 7
        %v663 = vsub.s32 0, %v662
        %v664 = vrot.slane %v655, %v663
        %v665 = vmul.f32 %v640, %v664
        %v666 = vmul.f32 %v645, %v664
        %v667 = vmul.f32 %v659, %v664
        %v671 = vrot.slane %v665, 1
        %v672 = vrot.slane %v666, 1
        %v673 = vsel %vm527, %v671, %v672
        %v674 = vrot.slane %v667, 1
        %v675 = vsel %vm527, %v672, %v674
        %v678 = vadd.f32 %v653, %v673
        %v679 = vadd.f32 %v654, %v675
        %v680 = vld [vmem:[%s635 + $0x2] sm:$0x1]
        %v681 = vlaneseq
        %v682 = vshrl.u32 %v681, 7
        %v683 = vsub.s32 0, %v682
        %v684 = vrot.slane %v680, %v683
        %v685 = vmul.f32 %v640, %v684
        %v686 = vmul.f32 %v645, %v684
        %v687 = vmul.f32 %v659, %v684
        %v691 = vrot.slane %v685, 2
        %v692 = vrot.slane %v686, 2
        %v693 = vsel %vm548, %v691, %v692
        %v694 = vrot.slane %v687, 2
        %v695 = vsel %vm548, %v692, %v694
        %v698 = vadd.f32 %v678, %v693
        %v699 = vadd.f32 %v679, %v695
        %v700 = vmul.f32 %v569, %v506
        %v701 = vmul.f32 %v574, %v506
        %v702 = vadd.f32 %v478, %v700
        %v703 = vadd.f32 %v478, %v701
        %v704 = vmul.f32 %v569, %v520
        %v705 = vmul.f32 %v574, %v520
        %v706 = vmul.f32 %v588, %v520
        %v710 = vrot.slane %v704, 1
        %v711 = vrot.slane %v705, 1
        %v712 = vsel %vm527, %v710, %v711
        %v713 = vrot.slane %v706, 1
        %v714 = vsel %vm527, %v711, %v713
        %v717 = vadd.f32 %v702, %v712
        %v718 = vadd.f32 %v703, %v714
        %v719 = vmul.f32 %v569, %v541
        %v720 = vmul.f32 %v574, %v541
        %v721 = vmul.f32 %v588, %v541
        %v725 = vrot.slane %v719, 2
        %v726 = vrot.slane %v720, 2
        %v727 = vsel %vm548, %v725, %v726
        %v728 = vrot.slane %v721, 2
        %v729 = vsel %vm548, %v726, %v728
        %v732 = vadd.f32 %v717, %v727
        %v733 = vadd.f32 %v718, %v729
        %v734 = vmul.f32 %v640, %v579
        %v735 = vmul.f32 %v645, %v579
        %v736 = vadd.f32 %v732, %v734
        %v737 = vadd.f32 %v733, %v735
        %v738 = vmul.f32 %v640, %v593
        %v739 = vmul.f32 %v645, %v593
        %v740 = vmul.f32 %v659, %v593
        %v744 = vrot.slane %v738, 1
        %v745 = vrot.slane %v739, 1
        %v746 = vsel %vm527, %v744, %v745
        %v747 = vrot.slane %v740, 1
        %v748 = vsel %vm527, %v745, %v747
        %v751 = vadd.f32 %v736, %v746
        %v752 = vadd.f32 %v737, %v748
        %v753 = vmul.f32 %v640, %v613
        %v754 = vmul.f32 %v645, %v613
        %v755 = vmul.f32 %v659, %v613
        %v759 = vrot.slane %v753, 2
        %v760 = vrot.slane %v754, 2
        %v761 = vsel %vm548, %v759, %v760
        %v762 = vrot.slane %v755, 2
        %v763 = vsel %vm548, %v760, %v762
        %v766 = vadd.f32 %v751, %v761
        %v767 = vadd.f32 %v752, %v763
        %s768 = sadd.s32 %s486, 3
        %s769 = smul.u32 %s768, 24
        %s770 = scalar_lea.vmem [#allocation2], %s769
        %v771 = vld [vmem:[%s770] sm:$0xff]
        %v772 = vld [vmem:[%s770 + $0x8] sm:$0xff]
        %v773 = vld [vmem:[%s770 + $0x10] sm:$0x3]
        %775 = vset.pattern.permute.xlu0 0
        %776 = vperm.xlu0 %775, %v771
        %v777 = vpop.permute.xlu0 %776
        %780 = vset.pattern.permute.xlu0 0
        %781 = vperm.xlu0 %780, %v772
        %v782 = vpop.permute.xlu0 %781
        %v784 = vmul.f32 %v777, %v650
        %v785 = vmul.f32 %v782, %v650
        %v786 = vadd.f32 %v766, %v784
        %v787 = vadd.f32 %v767, %v785
        %789 = vset.pattern.permute.xlu0 0
        %790 = vperm.xlu0 %789, %v773
        %v791 = vpop.permute.xlu0 %790
        %v793 = vmul.f32 %v777, %v664
        %v794 = vmul.f32 %v782, %v664
        %v795 = vmul.f32 %v791, %v664
        %v799 = vrot.slane %v793, 1
        %v800 = vrot.slane %v794, 1
        %v801 = vsel %vm527, %v799, %v800
        %v802 = vrot.slane %v795, 1
        %v803 = vsel %vm527, %v800, %v802
        %v806 = vadd.f32 %v786, %v801
        %v807 = vadd.f32 %v787, %v803
        %v808 = vmul.f32 %v777, %v684
        %v809 = vmul.f32 %v782, %v684
        %v810 = vmul.f32 %v791, %v684
        %v814 = vrot.slane %v808, 2
        %v815 = vrot.slane %v809, 2
        %v816 = vsel %vm548, %v814, %v815
        %v817 = vrot.slane %v810, 2
        %v818 = vsel %vm548, %v815, %v817
        %v821 = vadd.f32 %v806, %v816
        %v822 = vadd.f32 %v807, %v818
        %v823 = vmax.f32 %v698, %v821
        %v824 = vmax.f32 %v699, %v822
        %v825 = vmax.f32 %v823, 0.0
        %v826 = vmax.f32 %v824, 0.0
        %vm827 = vcmask 523264
        %828 = vst.msk [vmem:[#allocation3] sm:$0xff] %vm827, %v825
        %829 = vst.msk [vmem:[#allocation3 + $0x8] sm:$0xff] %vm827, %v826
        %v830 = vld [vmem:[#allocation3] ss:$2 sm:$0xff]
        %s831 = scalar_lea.vmem [#allocation3], 1
        %v832 = vld [vmem:[%s831] ss:$2 sm:$0xff]
        %v833 = vmax.f32 %v830, %v832
        %s834 = smul.u32 %s481, 8
        %s835 = scalar_lea.vmem %s389, %s834
        %836 = vst.msk [vmem:[%s835] sm:$0xff] %vm827, %v833
      $region53: #{music_cnn_forward.4} parent=39 // loop_footer
        %s485 = sadd.s32 1, %s481
      $region54: #{music_cnn_forward.4} parent=39 // loop_footer_branch
        %480 = sbr.rel target = $region50
      $region55: #{music_cnn_forward.4} parent=39 // loop_exit
        _
      %s837 = smul.u32 4, %s21
      %p838 = scmp.lt.s32.totalorder %s20, 1
      %s839 = scalar_select %p838, %s20, 1
      %p840 = scmp.lt.s32.totalorder %s837, 7
      %s841 = scalar_select %p840, %s837, 7
      %s842 = smul.addr %s839, 8
      %s843 = sadd.s32 %s841, %s842
      %s844 = smul.addr %s843, 8
      %s845 = scalar_lea.vmem %s5, %s844
      // Predicated region
      $region56: #{music_cnn_forward.4} parent=39 // pred_check
        %p846 = pneg %p190
      $region57: #{music_cnn_forward.4} parent=39 // pred_check_branch
        %848 = sbr.rel (%p846) target = $region59
      $region58: #{music_cnn_forward.4} parent=39 // pred_region
        %s849 = smul.u32 4, %s21
      $region59: #{music_cnn_forward.4} parent=39 // pred_fallthru
        _
    $region40: #{music_cnn_forward.4} parent=5 // pred_fallthru
      _
    %p850 = scmp.le.s32.totalorder 2, %s11
    // Predicated region
    $region60: #{music_cnn_forward.4} parent=5 // pred_check
      %p851 = pneg %p850
    $region61: #{music_cnn_forward.4} parent=5 // pred_check_branch
      %853 = sbr.rel (%p851) target = $region63
    $region62: #{music_cnn_forward.4} parent=5 // pred_region
      %s854 = ssub.s32 %s11, 2
      // Predicated region
      $region64: #{music_cnn_forward.4} parent=62 // pred_check
        %p855 = pneg %p196
      $region65: #{music_cnn_forward.4} parent=62 // pred_check_branch
        %857 = sbr.rel (%p855) target = $region67
      $region66: #{music_cnn_forward.4} parent=62 // pred_region
        %s858 = smul.u32 4, %s23
        %p859 = scmp.lt.s32.totalorder %s22, 1
        %s860 = scalar_select %p859, %s22, 1
        %p861 = scmp.lt.s32.totalorder %s858, 7
        %s862 = scalar_select %p861, %s858, 7
        %s863 = smul.addr %s860, 8
        %s864 = sadd.s32 %s862, %s863
        %s865 = smul.addr %s864, 8
        %s866 = scalar_lea.vmem %s5, %s865
      $region67: #{music_cnn_forward.4} parent=62 // pred_fallthru
        _
    $region63: #{music_cnn_forward.4} parent=5 // pred_fallthru
      _
  $region6: #{music_cnn_forward.4} parent=0 // loop_footer
    %s15 = sadd.s32 1, %s11
  $region7: #{music_cnn_forward.4} parent=0 // loop_footer_branch
    %10 = sbr.rel target = $region3
  $region8: #{music_cnn_forward.4} parent=0 // loop_exit
    _

// kernel: music_cnn_forward.7
$region0: #{music_cnn_forward.7}
  #allocation0 [shape = 'u32[]', space=smem, size = 0x4, offset = 0x4, fixed_abs, tag = 'smem constant byte address 0x4 - core index']
  #allocation1 [shape = 'u32[144,128]{1,0:T(1,128)}', space=vmem, size = 0x12000, scoped, tag = 'internal scratch']
  #allocation2 [shape = 'f32[2,256]{1,0:T(2,128)}', space=vmem, size = 0x800, scoped, tag = 'scratch operand']
  %s0 = inlined_call_operand.vmem [shape: f32[2,128], index: 0, kind: input, shape index: {}]
  %s1 = inlined_call_operand.vmem [shape: f32[128,256], index: 1, kind: input, shape index: {}]
  %s2 = inlined_call_operand.vmem [shape: f32[1,256], index: 2, kind: input, shape index: {}]
  %s3 = inlined_call_operand.vmem [shape: f32[256,10], index: 3, kind: input, shape index: {}]
  %s4 = inlined_call_operand.vmem [shape: f32[1,10], index: 4, kind: input, shape index: {}]
  %s5 = inlined_call_operand.hbm [shape: f32[2,10], index: 5, kind: output, shape index: {}]
  %s6 = sld [smem:[#allocation0]]
  $region38: #{music_cnn_forward.7} parent=0
    _
  %s8 = ssub.s32 1, %s6
  %s9 = scalar_select 0, %s8, %s6
  $region1: #{music_cnn_forward.7} parent=0
    #allocation3 [shape = 'u8[1024]{0}', space=vmem, size = 0x400, scoped, tag = 'output window, operand 0, single buffered']
    #allocation4 [shape = 's32[1]{0}', space=sflag, size = 0x4, scoped, tag = 'scoped memory for music_cnn_forward.7']
    %10 = vsyncpa [#allocation4], 0
    // Predicated region
    $region2: #{music_cnn_forward.7} parent=1 // pred_check
      _
    $region3: #{music_cnn_forward.7} parent=1 // pred_check_branch
      %12 = sbr.rel (0) target = $region5
    $region4: #{music_cnn_forward.7} parent=1 // pred_region
      _
    $region5: #{music_cnn_forward.7} parent=1 // pred_fallthru
      _
    // Predicated region
    $region6: #{music_cnn_forward.7} parent=1 // pred_check
      _
    $region7: #{music_cnn_forward.7} parent=1 // pred_check_branch
      %14 = sbr.rel (0) target = $region9
    $region8: #{music_cnn_forward.7} parent=1 // pred_region
      _
    $region9: #{music_cnn_forward.7} parent=1 // pred_fallthru
      _
    // Predicated region
    $region10: #{music_cnn_forward.7} parent=1 // pred_check
      _
    $region11: #{music_cnn_forward.7} parent=1 // pred_check_branch
      %16 = sbr.rel (0) target = $region13
    $region12: #{music_cnn_forward.7} parent=1 // pred_region
      _
    $region13: #{music_cnn_forward.7} parent=1 // pred_fallthru
      _
    // Predicated region
    $region14: #{music_cnn_forward.7} parent=1 // pred_check
      _
    $region15: #{music_cnn_forward.7} parent=1 // pred_check_branch
      %18 = sbr.rel (0) target = $region17
    $region16: #{music_cnn_forward.7} parent=1 // pred_region
      _
    $region17: #{music_cnn_forward.7} parent=1 // pred_fallthru
      _
    // Predicated region
    $region18: #{music_cnn_forward.7} parent=1 // pred_check
      _
    $region19: #{music_cnn_forward.7} parent=1 // pred_check_branch
      %20 = sbr.rel (0) target = $region21
    $region20: #{music_cnn_forward.7} parent=1 // pred_region
      _
    $region21: #{music_cnn_forward.7} parent=1 // pred_fallthru
      _
    %p21 = scmp.eq.s32.totalorder 0, 0
    // Predicated region
    $region22: #{music_cnn_forward.7} parent=1 // pred_check
      %p22 = pneg %p21
    $region23: #{music_cnn_forward.7} parent=1 // pred_check_branch
      %24 = sbr.rel (%p22) target = $region25
    $region24: #{music_cnn_forward.7} parent=1 // pred_region
      %25 = vst [vmem:[#allocation2] sm:$0xf] 0.0
    $region25: #{music_cnn_forward.7} parent=1 // pred_fallthru
      _
    %v26 = vld [vmem:[#allocation2] sm:$0xf]
    %v27 = vld [vmem:[%s0] sm:$0x3]
    %v28 = vld [vmem:[%s1] sm:$0xff]
    %v29 = vld [vmem:[%s1 + $0x8] sm:$0xff]
    %v30 = vld [vmem:[%s1 + $0x10] sm:$0xff]
    %v31 = vld [vmem:[%s1 + $0x18] sm:$0xff]
    %v32 = vld [vmem:[%s1 + $0x20] sm:$0xff]
    %v33 = vld [vmem:[%s1 + $0x28] sm:$0xff]
    %v34 = vld [vmem:[%s1 + $0x30] sm:$0xff]
    %v35 = vld [vmem:[%s1 + $0x38] sm:$0xff]
    %v36 = vld [vmem:[%s1 + $0x40] sm:$0xff]
    %v37 = vld [vmem:[%s1 + $0x48] sm:$0xff]
    %v38 = vld [vmem:[%s1 + $0x50] sm:$0xff]
    %v39 = vld [vmem:[%s1 + $0x58] sm:$0xff]
    %v40 = vld [vmem:[%s1 + $0x60] sm:$0xff]
    %v41 = vld [vmem:[%s1 + $0x68] sm:$0xff]
    %v42 = vld [vmem:[%s1 + $0x70] sm:$0xff]
    %v43 = vld [vmem:[%s1 + $0x78] sm:$0xff]
    %v44 = vld [vmem:[%s1 + $0x80] sm:$0xff]
    %v45 = vld [vmem:[%s1 + $0x88] sm:$0xff]
    %v46 = vld [vmem:[%s1 + $0x90] sm:$0xff]
    %v47 = vld [vmem:[%s1 + $0x98] sm:$0xff]
    %v48 = vld [vmem:[%s1 + $0xa0] sm:$0xff]
    %v49 = vld [vmem:[%s1 + $0xa8] sm:$0xff]
    %v50 = vld [vmem:[%s1 + $0xb0] sm:$0xff]
    %v51 = vld [vmem:[%s1 + $0xb8] sm:$0xff]
    %v52 = vld [vmem:[%s1 + $0xc0] sm:$0xff]
    %v53 = vld [vmem:[%s1 + $0xc8] sm:$0xff]
    %v54 = vld [vmem:[%s1 + $0xd0] sm:$0xff]
    %v55 = vld [vmem:[%s1 + $0xd8] sm:$0xff]
    %v56 = vld [vmem:[%s1 + $0xe0] sm:$0xff]
    %v57 = vld [vmem:[%s1 + $0xe8] sm:$0xff]
    %v58 = vld [vmem:[%s1 + $0xf0] sm:$0xff]
    %v59 = vld [vmem:[%s1 + $0xf8] sm:$0xff]
    %60 = vmatprep.subr.mxu0 %v29
    %61 = vmatpush1.msra.mxu0 %v28
    %62 = vmatprep.subr.mxu0 %v31
    %63 = vmatpush1.msra.mxu0 %v30
    %64 = vmatprep.subr.mxu0 %v33
    %65 = vmatpush1.msra.mxu0 %v32
    %66 = vmatprep.subr.mxu0 %v35
    %67 = vmatpush1.msra.mxu0 %v34
    %68 = vmatprep.subr.mxu0 %v37
    %69 = vmatpush1.msra.mxu0 %v36
    %70 = vmatprep.subr.mxu0 %v39
    %71 = vmatpush1.msra.mxu0 %v38
    %72 = vmatprep.subr.mxu0 %v41
    %73 = vmatpush1.msra.mxu0 %v40
    %74 = vmatprep.subr.mxu0 %v43
    %75 = vmatpush1.msra.mxu0 %v42
    %76 = vmatprep.subr.mxu0 %v45
    %77 = vmatpush1.msra.mxu0 %v44
    %78 = vmatprep.subr.mxu0 %v47
    %79 = vmatpush1.msra.mxu0 %v46
    %80 = vmatprep.subr.mxu0 %v49
    %81 = vmatpush1.msra.mxu0 %v48
    %82 = vmatprep.subr.mxu0 %v51
    %83 = vmatpush1.msra.mxu0 %v50
    %84 = vmatprep.subr.mxu0 %v53
    %85 = vmatpush1.msra.mxu0 %v52
    %86 = vmatprep.subr.mxu0 %v55
    %87 = vmatpush1.msra.mxu0 %v54
    %88 = vmatprep.subr.mxu0 %v57
    %89 = vmatpush1.msra.mxu0 %v56
    %90 = vmatprep.subr.mxu0 %v59
    %91 = vmatpush1.msra.mxu0 %v58
    %92 = vmatprep.subr.mxu0 0.0
    %93 = vmatpush1.msra.mxu0 0.0
    %94 = vmatprep.subr.mxu0 0.0
    %95 = vmatpush1.msra.mxu0 0.0
    %96 = vmatprep.subr.mxu0 0.0
    %97 = vmatpush1.msra.mxu0 0.0
    %98 = vmatprep.subr.mxu0 0.0
    %99 = vmatpush1.msra.mxu0 0.0
    %100 = vmatprep.subr.mxu0 0.0
    %101 = vmatpush1.msra.mxu0 0.0
    %102 = vmatprep.subr.mxu0 0.0
    %103 = vmatpush1.msra.mxu0 0.0
    %104 = vmatprep.subr.mxu0 0.0
    %105 = vmatpush1.msra.mxu0 0.0
    %106 = vmatprep.subr.mxu0 0.0
    %107 = vmatpush1.msra.mxu0 0.0
    %108 = vmatprep.subr.mxu0 0.0
    %109 = vmatpush1.msra.mxu0 0.0
    %110 = vmatprep.subr.mxu0 0.0
    %111 = vmatpush1.msra.mxu0 0.0
    %112 = vmatprep.subr.mxu0 0.0
    %113 = vmatpush1.msra.mxu0 0.0
    %114 = vmatprep.subr.mxu0 0.0
    %115 = vmatpush1.msra.mxu0 0.0
    %116 = vmatprep.subr.mxu0 0.0
    %117 = vmatpush1.msra.mxu0 0.0
    %118 = vmatprep.subr.mxu0 0.0
    %119 = vmatpush1.msra.mxu0 0.0
    %120 = vmatprep.subr.mxu0 0.0
    %121 = vmatpush1.msra.mxu0 0.0
    %122 = vmatprep.subr.mxu0 0.0
    %123 = vmatpush1.msra.mxu0 0.0
    %124 = vmatprep.mubr.f32.mxu0 0.0
    %125 = vmatmul.mubr.f32.gmra.mrb[0].mxu0 %v27
    %v126 = vpop.f32.mrb[0].mxu0
    %v127 = vadd.f32 0.0, %v126
    %v128 = vpop.f32.mrb[0].mxu0
    %v129 = vadd.f32 0.0, %v128
    %130 = vdwg.mxu0
    %v133 = vcombine.low %v127, %v129
    %v135 = vunpack.c.l.s4 1983009808
    %v136 = vunpack.c.0.s8 %v135
    %v137 = vlaneseq
    %v138 = vshrl.u32 %v137, 7
    %v139 = vsub.s32 %v136, %v138
    %v140 = vrot.slane %v133, %v139
    %v142 = vadd.f32 %v26, %v140
    %143 = vst [vmem:[#allocation2] sm:$0xf] %v142
    // Predicated region
    $region26: #{music_cnn_forward.7} parent=1 // pred_check
      %p144 = pneg %p21
    $region27: #{music_cnn_forward.7} parent=1 // pred_check_branch
      %146 = sbr.rel (%p144) target = $region29
    $region28: #{music_cnn_forward.7} parent=1 // pred_region
      %v147 = vld [vmem:[#allocation2] sm:$0xf]
      %v148 = vld [vmem:[%s2] sm:$0x3]
      %v150 = vlaneseq
      %v151 = vshrl.u32 %v150, 7
      %v152 = vsub.s32 0, %v151
      %v153 = vrot.slane %v148, %v152
      %v154 = vlaneseq
      %v155 = vshrl.u32 %v154, 7
      %v156 = vsub.s32 1, %v155
      %v157 = vrot.slane %v148, %v156
      %v158 = vcombine.low %v153, %v157
      %v160 = vunpack.c.l.s4 1983009808
      %v161 = vunpack.c.0.s8 %v160
      %v162 = vlaneseq
      %v163 = vshrl.u32 %v162, 7
      %v164 = vsub.s32 %v161, %v163
      %v165 = vrot.slane %v158, %v164
      %v167 = vadd.f32 %v147, %v165
      %v168 = vmax.f32 %v167, 0.0
      %v169 = vld [vmem:[%s3] sm:$0xff]
      %v170 = vld [vmem:[%s3 + $0x8] sm:$0xff]
      %v171 = vld [vmem:[%s3 + $0x10] sm:$0xff]
      %v172 = vld [vmem:[%s3 + $0x18] sm:$0xff]
      %v173 = vld [vmem:[%s3 + $0x20] sm:$0xff]
      %v174 = vld [vmem:[%s3 + $0x28] sm:$0xff]
      %v175 = vld [vmem:[%s3 + $0x30] sm:$0xff]
      %v176 = vld [vmem:[%s3 + $0x38] sm:$0xff]
      %v177 = vld [vmem:[%s3 + $0x40] sm:$0xff]
      %v178 = vld [vmem:[%s3 + $0x48] sm:$0xff]
      %v179 = vld [vmem:[%s3 + $0x50] sm:$0xff]
      %v180 = vld [vmem:[%s3 + $0x58] sm:$0xff]
      %v181 = vld [vmem:[%s3 + $0x60] sm:$0xff]
      %v182 = vld [vmem:[%s3 + $0x68] sm:$0xff]
      %v183 = vld [vmem:[%s3 + $0x70] sm:$0xff]
      %v184 = vld [vmem:[%s3 + $0x78] sm:$0xff]
      %v185 = vld [vmem:[%s3 + $0x80] sm:$0xff]
      %v186 = vld [vmem:[%s3 + $0x88] sm:$0xff]
      %v187 = vld [vmem:[%s3 + $0x90] sm:$0xff]
      %v188 = vld [vmem:[%s3 + $0x98] sm:$0xff]
      %v189 = vld [vmem:[%s3 + $0xa0] sm:$0xff]
      %v190 = vld [vmem:[%s3 + $0xa8] sm:$0xff]
      %v191 = vld [vmem:[%s3 + $0xb0] sm:$0xff]
      %v192 = vld [vmem:[%s3 + $0xb8] sm:$0xff]
      %v193 = vld [vmem:[%s3 + $0xc0] sm:$0xff]
      %v194 = vld [vmem:[%s3 + $0xc8] sm:$0xff]
      %v195 = vld [vmem:[%s3 + $0xd0] sm:$0xff]
      %v196 = vld [vmem:[%s3 + $0xd8] sm:$0xff]
      %v197 = vld [vmem:[%s3 + $0xe0] sm:$0xff]
      %v198 = vld [vmem:[%s3 + $0xe8] sm:$0xff]
      %v199 = vld [vmem:[%s3 + $0xf0] sm:$0xff]
      %v200 = vld [vmem:[%s3 + $0xf8] sm:$0xff]
      %v201 = vld [vmem:[%s4] sm:$0x1]
      %v203 = vlaneseq
      %v204 = vshrl.u32 %v203, 7
      %v205 = vsub.s32 0, %v204
      %v206 = vrot.slane %v201, %v205
      %v210 = vunpack.c.l.s4 1983009808
      %v211 = vunpack.c.0.s8 %v210
      %v212 = vlaneseq
      %v213 = vshrl.u32 %v212, 7
      %v214 = vsub.s32 %v211, %v213
      %v215 = vrot.slane %v168, %v214
      %v216 = vcombine.high %v215, %v215
      %219 = vmatprep.subr.mxu0 0.0
      %220 = vmatpush1.msra.mxu0 %v169
      %221 = vmatprep.subr.mxu0 0.0
      %222 = vmatpush1.msra.mxu0 %v170
      %223 = vmatprep.subr.mxu0 0.0
      %224 = vmatpush1.msra.mxu0 %v171
      %225 = vmatprep.subr.mxu0 0.0
      %226 = vmatpush1.msra.mxu0 %v172
      %227 = vmatprep.subr.mxu0 0.0
      %228 = vmatpush1.msra.mxu0 %v173
      %229 = vmatprep.subr.mxu0 0.0
      %230 = vmatpush1.msra.mxu0 %v174
      %231 = vmatprep.subr.mxu0 0.0
      %232 = vmatpush1.msra.mxu0 %v175
      %233 = vmatprep.subr.mxu0 0.0
      %234 = vmatpush1.msra.mxu0 %v176
      %235 = vmatprep.subr.mxu0 0.0
      %236 = vmatpush1.msra.mxu0 %v177
      %237 = vmatprep.subr.mxu0 0.0
      %238 = vmatpush1.msra.mxu0 %v178
      %239 = vmatprep.subr.mxu0 0.0
      %240 = vmatpush1.msra.mxu0 %v179
      %241 = vmatprep.subr.mxu0 0.0
      %242 = vmatpush1.msra.mxu0 %v180
      %243 = vmatprep.subr.mxu0 0.0
      %244 = vmatpush1.msra.mxu0 %v181
      %245 = vmatprep.subr.mxu0 0.0
      %246 = vmatpush1.msra.mxu0 %v182
      %247 = vmatprep.subr.mxu0 0.0
      %248 = vmatpush1.msra.mxu0 %v183
      %249 = vmatprep.subr.mxu0 0.0
      %250 = vmatpush1.msra.mxu0 %v184
      %251 = vmatprep.subr.mxu0 0.0
      %252 = vmatpush1.msra.mxu0 %v185
      %253 = vmatprep.subr.mxu0 0.0
      %254 = vmatpush1.msra.mxu0 %v186
      %255 = vmatprep.subr.mxu0 0.0
      %256 = vmatpush1.msra.mxu0 %v187
      %257 = vmatprep.subr.mxu0 0.0
      %258 = vmatpush1.msra.mxu0 %v188
      %259 = vmatprep.subr.mxu0 0.0
      %260 = vmatpush1.msra.mxu0 %v189
      %261 = vmatprep.subr.mxu0 0.0
      %262 = vmatpush1.msra.mxu0 %v190
      %263 = vmatprep.subr.mxu0 0.0
      %264 = vmatpush1.msra.mxu0 %v191
      %265 = vmatprep.subr.mxu0 0.0
      %266 = vmatpush1.msra.mxu0 %v192
      %267 = vmatprep.subr.mxu0 0.0
      %268 = vmatpush1.msra.mxu0 %v193
      %269 = vmatprep.subr.mxu0 0.0
      %270 = vmatpush1.msra.mxu0 %v194
      %271 = vmatprep.subr.mxu0 0.0
      %272 = vmatpush1.msra.mxu0 %v195
      %273 = vmatprep.subr.mxu0 0.0
      %274 = vmatpush1.msra.mxu0 %v196
      %275 = vmatprep.subr.mxu0 0.0
      %276 = vmatpush1.msra.mxu0 %v197
      %277 = vmatprep.subr.mxu0 0.0
      %278 = vmatpush1.msra.mxu0 %v198
      %279 = vmatprep.subr.mxu0 0.0
      %280 = vmatpush1.msra.mxu0 %v199
      %281 = vmatprep.subr.mxu0 0.0
      %282 = vmatpush1.msra.mxu0 %v200
      %283 = vmatprep.mubr.f32.mxu0 %v216
      %284 = vmatmul.mubr.f32.gmra.mrb[0].mxu0 %v215
      %v285 = vpop.f32.mrb[0].mxu0
      %v286 = vadd.f32 %v206, %v285
      %v287 = vpop.f32.mrb[0].mxu0
      %288 = vdwg.mxu0
      %vm289 = vcmask 74752
      %290 = vst.msk [vmem:[#allocation3] sm:$0x3] %vm289, %v286
    $region29: #{music_cnn_forward.7} parent=1 // pred_fallthru
      _
    // Predicated region
    $region30: #{music_cnn_forward.7} parent=1 // pred_check
      _
    $region31: #{music_cnn_forward.7} parent=1 // pred_check_branch
      %292 = sbr.rel (0) target = $region33
    $region32: #{music_cnn_forward.7} parent=1 // pred_region
      %s294 = ssub.s32 32, 32
      %295 = vsyncadd [#allocation4], %s294
      %s297 = sshll.u32 [#allocation3], 4
      %s298 = int_to_ptr.vmem [resolvable:$true] %s297
      %300 = dma.vmem_to_hbm [thread:$0]  %s298, 32, %s5, [#allocation4]
    $region33: #{music_cnn_forward.7} parent=1 // pred_fallthru
      _
    // Predicated region
    $region34: #{music_cnn_forward.7} parent=1 // pred_check
      _
    $region35: #{music_cnn_forward.7} parent=1 // pred_check_branch
      %302 = sbr.rel (0) target = $region37
    $region36: #{music_cnn_forward.7} parent=1 // pred_region
      %303 = dma.done [#allocation4], 32
    $region37: #{music_cnn_forward.7} parent=1 // pred_fallthru
      _
    %304 = vsyncpa [#allocation4], 1

// kernel: music_cnn_forward.5
$region0: #{music_cnn_forward.5}
  #allocation0 [shape = 'u32[]', space=smem, size = 0x4, offset = 0x4, fixed_abs, tag = 'smem constant byte address 0x4 - core index']
  #allocation1 [shape = 'u32[144,128]{1,0:T(1,128)}', space=vmem, size = 0x12000, scoped, tag = 'internal scratch']
  #allocation2 [shape = 'f32[6,10,64]{2,1,0:T(8,128)}', space=vmem, size = 0xc000, scoped, tag = 'scratch operand']
  #allocation3 [shape = 'f32[8,32]{1,0:T(8,128)}', space=vmem, size = 0x1000, scoped, tag = 'scratch operand']
  %s0 = inlined_call_operand.vmem [shape: f32[2,8,8,64], index: 0, kind: input, shape index: {}, may-alias: {0,1,2}]
  %s1 = inlined_call_operand.vmem [shape: f32[2,8,8,64], index: 1, kind: input, shape index: {}, may-alias: {0,1,2}]
  %s2 = inlined_call_operand.vmem [shape: f32[2,8,8,64], index: 2, kind: input, shape index: {}, may-alias: {0,1,2}]
  %s3 = inlined_call_operand.vmem [shape: f32[3,192,32], index: 3, kind: input, shape index: {}]
  %s4 = inlined_call_operand.vmem [shape: f32[1,32], index: 4, kind: input, shape index: {}]
  %s5 = inlined_call_operand.vmem [shape: f32[2,4,4,32], index: 5, kind: output, shape index: {}]
  %s6 = sld [smem:[#allocation0]]
  $region68: #{music_cnn_forward.5} parent=0
    _
  %s8 = ssub.s32 1, %s6
  %s9 = scalar_select 0, %s8, %s6
  loop: start=0, step=1, limit=6
  $region2: #{music_cnn_forward.5} parent=0 // loop_pre_header
    _
  $region3: #{music_cnn_forward.5} parent=0 // loop_header
    %s11 = sphi 0, %s15
    %p12 = scmp.ge.s32.totalorder %s11, 6
    %s18 = sphi 0, %s30
    %s19 = sphi 0, %s26
    %s20 = sphi 0, %s18
    %s21 = sphi 0, %s19
    %s22 = sphi 0, %s20
    %s23 = sphi 0, %s21
    %s43 = sphi 0, %s45
    %s46 = sphi 0, %s43
    %s47 = sphi 0, %s46
    %s63 = sphi 0, %s47
    %s71 = sphi 0, %s73
    %s74 = sphi 0, %s71
    %s75 = sphi 0, %s74
    %s91 = sphi 0, %s75
    %s107 = sphi 0, %s109
    %s110 = sphi 0, %s107
    %s111 = sphi 0, %s110
    %s127 = sphi 0, %s111
    %s131 = sphi 0, %s131
    %s133 = sphi 0, %s131
    %s134 = sphi 0, %s133
    %s148 = sphi 0, %s134
    %s152 = sphi 0, %s152
    %s154 = sphi 0, %s152
    %s155 = sphi 0, %s154
    %s169 = sphi 0, %s155
    %s177 = sphi 0, %s179
    %s180 = sphi 0, %s177
    %s181 = sphi 0, %s180
    %s197 = sphi 0, %s181
  $region4: #{music_cnn_forward.5} parent=0 // loop_header_branch
    %14 = sbr.rel (%p12) target = $region8
  $region5: #{music_cnn_forward.5} parent=0 // loop_body
    %s16 = ssub.s32 %s11, 1
    %s17 = ssub.s32 %s11, 2
    %s24 = sadd.s32 1, %s19
    %p25 = scmp.ge.s32.totalorder %s24, 2
    %s26 = scalar_select %p25, 0, %s24
    %s27 = sadd.s32 1, %s18
    %s28 = scalar_select %p25, %s27, %s18
    %p29 = scmp.ge.s32.totalorder %s28, 2
    %s30 = scalar_select %p29, 0, %s28
    %s31 = smul.u32 %s19, 4
    %s32 = ssub.s32 %s31, 1
    %p33 = scmp.gt.s32.totalorder %s32, 0
    %s34 = scalar_select %p33, %s32, 0
    %s35 = smul.u32 %s26, 4
    %s36 = ssub.s32 %s35, 1
    %p37 = scmp.gt.s32.totalorder %s36, 0
    %s38 = scalar_select %p37, %s36, 0
    %s39 = ssub.s32 %s18, %s30
    %s40 = ssub.s32 %s34, %s38
    %s41 = sor.u32 %s39, %s40
    %p42 = scmp.eq.s32.totalorder %s41, 0
    %s44 = sadd.s32 %s43, 1
    %s45 = scalar_select %p42, %s43, %s44
    %p48 = pneg %p42
    %p49 = scmp.eq.s32.totalorder %s11, 3
    %p50 = por %p48, %p49
    %p51 = scmp.ne.s32.totalorder %s43, %s46
    %p52 = scmp.eq.s32.totalorder %s11, 0
    %p53 = por %p51, %p52
    %p54 = scmp.ne.s32.totalorder %s43, %s46
    %p55 = scmp.eq.s32.totalorder %s16, 3
    %p56 = por %p54, %p55
    %p57 = scmp.ne.s32.totalorder %s46, %s47
    %p58 = scmp.eq.s32.totalorder %s16, 0
    %p59 = por %p57, %p58
    %p60 = scmp.ne.s32.totalorder %s46, %s47
    %p61 = scmp.eq.s32.totalorder %s17, 3
    %p62 = por %p60, %p61
    %p64 = scmp.ne.s32.totalorder %s47, %s63
    %p65 = scmp.eq.s32.totalorder %s17, 0
    %p66 = por %p64, %p65
    %s67 = ssub.s32 %s18, %s30
    %s68 = ssub.s32 %s19, %s26
    %s69 = sor.u32 %s67, %s68
    %p70 = scmp.eq.s32.totalorder %s69, 0
    %s72 = sadd.s32 %s71, 1
    %s73 = scalar_select %p70, %s71, %s72
    %p76 = pneg %p70
    %p77 = scmp.eq.s32.totalorder %s11, 3
    %p78 = por %p76, %p77
    %p79 = scmp.ne.s32.totalorder %s71, %s74
    %p80 = scmp.eq.s32.totalorder %s11, 0
    %p81 = por %p79, %p80
    %p82 = scmp.ne.s32.totalorder %s71, %s74
    %p83 = scmp.eq.s32.totalorder %s16, 3
    %p84 = por %p82, %p83
    %p85 = scmp.ne.s32.totalorder %s74, %s75
    %p86 = scmp.eq.s32.totalorder %s16, 0
    %p87 = por %p85, %p86
    %p88 = scmp.ne.s32.totalorder %s74, %s75
    %p89 = scmp.eq.s32.totalorder %s17, 3
    %p90 = por %p88, %p89
    %p92 = scmp.ne.s32.totalorder %s75, %s91
    %p93 = scmp.eq.s32.totalorder %s17, 0
    %p94 = por %p92, %p93
    %s95 = sadd.s32 %s19, 1
    %s96 = smul.u32 %s95, 4
    %p97 = scmp.lt.s32.totalorder %s96, 7
    %s98 = scalar_select %p97, %s96, 7
    %s99 = sadd.s32 %s26, 1
    %s100 = smul.u32 %s99, 4
    %p101 = scmp.lt.s32.totalorder %s100, 7
    %s102 = scalar_select %p101, %s100, 7
    %s103 = ssub.s32 %s18, %s30
    %s104 = ssub.s32 %s98, %s102
    %s105 = sor.u32 %s103, %s104
    %p106 = scmp.eq.s32.totalorder %s105, 0
    %s108 = sadd.s32 %s107, 1
    %s109 = scalar_select %p106, %s107, %s108
    %p112 = pneg %p106
    %p113 = scmp.eq.s32.totalorder %s11, 3
    %p114 = por %p112, %p113
    %p115 = scmp.ne.s32.totalorder %s107, %s110
    %p116 = scmp.eq.s32.totalorder %s11, 0
    %p117 = por %p115, %p116
    %p118 = scmp.ne.s32.totalorder %s107, %s110
    %p119 = scmp.eq.s32.totalorder %s16, 3
    %p120 = por %p118, %p119
    %p121 = scmp.ne.s32.totalorder %s110, %s111
    %p122 = scmp.eq.s32.totalorder %s16, 0
    %p123 = por %p121, %p122
    %p124 = scmp.ne.s32.totalorder %s110, %s111
    %p125 = scmp.eq.s32.totalorder %s17, 3
    %p126 = por %p124, %p125
    %p128 = scmp.ne.s32.totalorder %s111, %s127
    %p129 = scmp.eq.s32.totalorder %s17, 0
    %p130 = por %p128, %p129
    %s132 = sadd.s32 %s131, 1
    %p135 = scmp.eq.s32.totalorder %s11, 3
    %p136 = scmp.ne.s32.totalorder %s131, %s133
    %p137 = scmp.eq.s32.totalorder %s11, 0
    %p138 = por %p136, %p137
    %p139 = scmp.ne.s32.totalorder %s131, %s133
    %p140 = scmp.eq.s32.totalorder %s16, 3
    %p141 = por %p139, %p140
    %p142 = scmp.ne.s32.totalorder %s133, %s134
    %p143 = scmp.eq.s32.totalorder %s16, 0
    %p144 = por %p142, %p143
    %p145 = scmp.ne.s32.totalorder %s133, %s134
    %p146 = scmp.eq.s32.totalorder %s17, 3
    %p147 = por %p145, %p146
    %p149 = scmp.ne.s32.totalorder %s134, %s148
    %p150 = scmp.eq.s32.totalorder %s17, 0
    %p151 = por %p149, %p150
    %s153 = sadd.s32 %s152, 1
    %p156 = scmp.eq.s32.totalorder %s11, 3
    %p157 = scmp.ne.s32.totalorder %s152, %s154
    %p158 = scmp.eq.s32.totalorder %s11, 0
    %p159 = por %p157, %p158
    %p160 = scmp.ne.s32.totalorder %s152, %s154
    %p161 = scmp.eq.s32.totalorder %s16, 3
    %p162 = por %p160, %p161
    %p163 = scmp.ne.s32.totalorder %s154, %s155
    %p164 = scmp.eq.s32.totalorder %s16, 0
    %p165 = por %p163, %p164
    %p166 = scmp.ne.s32.totalorder %s154, %s155
    %p167 = scmp.eq.s32.totalorder %s17, 3
    %p168 = por %p166, %p167
    %p170 = scmp.ne.s32.totalorder %s155, %s169
    %p171 = scmp.eq.s32.totalorder %s17, 0
    %p172 = por %p170, %p171
    %s173 = ssub.s32 %s18, %s30
    %s174 = ssub.s32 %s19, %s26
    %s175 = sor.u32 %s173, %s174
    %p176 = scmp.eq.s32.totalorder %s175, 0
    %s178 = sadd.s32 %s177, 1
    %s179 = scalar_select %p176, %s177, %s178
    %p182 = pneg %p176
    %p183 = scmp.eq.s32.totalorder %s11, 3
    %p184 = por %p182, %p183
    %p185 = scmp.ne.s32.totalorder %s177, %s180
    %p186 = scmp.eq.s32.totalorder %s11, 0
    %p187 = por %p185, %p186
    %p188 = scmp.ne.s32.totalorder %s177, %s180
    %p189 = scmp.eq.s32.totalorder %s16, 3
    %p190 = por %p188, %p189
    %p191 = scmp.ne.s32.totalorder %s180, %s181
    %p192 = scmp.eq.s32.totalorder %s16, 0
    %p193 = por %p191, %p192
    %p194 = scmp.ne.s32.totalorder %s180, %s181
    %p195 = scmp.eq.s32.totalorder %s17, 3
    %p196 = por %p194, %p195
    %p198 = scmp.ne.s32.totalorder %s181, %s197
    %p199 = scmp.eq.s32.totalorder %s17, 0
    %p200 = por %p198, %p199
    %p201 = scmp.le.s32.totalorder 1, %s11
    %p202 = scmp.lt.s32.totalorder %s11, 5
    %p203 = pnand %p201, %p202
    %p204 = pneg %p203
    // Predicated region
    $region9: #{music_cnn_forward.5} parent=5 // pred_check
      _
    $region10: #{music_cnn_forward.5} parent=5 // pred_check_branch
      %206 = sbr.rel (%p203) target = $region12
    $region11: #{music_cnn_forward.5} parent=5 // pred_region
      %s207 = ssub.s32 %s11, 1
      // Predicated region
      $region13: #{music_cnn_forward.5} parent=11 // pred_check
        %p208 = pneg %p144
      $region14: #{music_cnn_forward.5} parent=11 // pred_check_branch
        %210 = sbr.rel (%p208) target = $region16
      $region15: #{music_cnn_forward.5} parent=11 // pred_region
        _
      $region16: #{music_cnn_forward.5} parent=11 // pred_fallthru
        _
      // Predicated region
      $region17: #{music_cnn_forward.5} parent=11 // pred_check
        %p211 = pneg %p165
      $region18: #{music_cnn_forward.5} parent=11 // pred_check_branch
        %213 = sbr.rel (%p211) target = $region20
      $region19: #{music_cnn_forward.5} parent=11 // pred_region
        _
      $region20: #{music_cnn_forward.5} parent=11 // pred_fallthru
        _
    $region12: #{music_cnn_forward.5} parent=5 // pred_fallthru
      _
    %p214 = scmp.lt.s32.totalorder %s11, 4
    // Predicated region
    $region21: #{music_cnn_forward.5} parent=5 // pred_check
      %p215 = pneg %p214
    $region22: #{music_cnn_forward.5} parent=5 // pred_check_branch
      %217 = sbr.rel (%p215) target = $region24
    $region23: #{music_cnn_forward.5} parent=5 // pred_region
      // Predicated region
      $region25: #{music_cnn_forward.5} parent=23 // pred_check
        %p218 = pneg %p53
      $region26: #{music_cnn_forward.5} parent=23 // pred_check_branch
        %220 = sbr.rel (%p218) target = $region28
      $region27: #{music_cnn_forward.5} parent=23 // pred_region
        %s221 = smul.u32 %s19, 4
        %s222 = ssub.s32 %s221, 1
        %p223 = scmp.gt.s32.totalorder %s222, 0
        %s224 = scalar_select %p223, %s222, 0
        %p225 = scmp.lt.s32.totalorder %s18, 1
        %s226 = scalar_select %p225, %s18, 1
        %p227 = scmp.lt.s32.totalorder %s224, 7
        %s228 = scalar_select %p227, %s224, 7
        %s229 = smul.addr %s226, 8
        %s230 = sadd.s32 %s228, %s229
        %s231 = smul.addr %s230, 8
        %s232 = scalar_lea.vmem %s0, %s231
        %s233 = smul.u32 %s19, 4
        %s234 = ssub.s32 %s233, 1
        %p235 = scmp.gt.s32.totalorder %s234, 0
        %s236 = scalar_select %p235, %s234, 0
      $region28: #{music_cnn_forward.5} parent=23 // pred_fallthru
        _
      // Predicated region
      $region29: #{music_cnn_forward.5} parent=23 // pred_check
        %p237 = pneg %p81
      $region30: #{music_cnn_forward.5} parent=23 // pred_check_branch
        %239 = sbr.rel (%p237) target = $region32
      $region31: #{music_cnn_forward.5} parent=23 // pred_region
        %s240 = smul.u32 4, %s19
        %p241 = scmp.lt.s32.totalorder %s18, 1
        %s242 = scalar_select %p241, %s18, 1
        %p243 = scmp.lt.s32.totalorder %s240, 7
        %s244 = scalar_select %p243, %s240, 7
        %s245 = smul.addr %s242, 8
        %s246 = sadd.s32 %s244, %s245
        %s247 = smul.addr %s246, 8
        %s248 = scalar_lea.vmem %s1, %s247
        %s249 = smul.u32 4, %s19
      $region32: #{music_cnn_forward.5} parent=23 // pred_fallthru
        _
      // Predicated region
      $region33: #{music_cnn_forward.5} parent=23 // pred_check
        %p250 = pneg %p117
      $region34: #{music_cnn_forward.5} parent=23 // pred_check_branch
        %252 = sbr.rel (%p250) target = $region36
      $region35: #{music_cnn_forward.5} parent=23 // pred_region
        %s253 = sadd.s32 %s19, 1
        %s254 = smul.u32 %s253, 4
        %p255 = scmp.lt.s32.totalorder %s254, 7
        %s256 = scalar_select %p255, %s254, 7
        %p257 = scmp.lt.s32.totalorder %s18, 1
        %s258 = scalar_select %p257, %s18, 1
        %p259 = scmp.lt.s32.totalorder %s256, 7
        %s260 = scalar_select %p259, %s256, 7
        %s261 = smul.addr %s258, 8
        %s262 = sadd.s32 %s260, %s261
        %s263 = smul.addr %s262, 8
        %s264 = scalar_lea.vmem %s2, %s263
        %s265 = sadd.s32 %s19, 1
        %s266 = smul.u32 %s265, 4
        %p267 = scmp.lt.s32.totalorder %s266, 7
        %s268 = scalar_select %p267, %s266, 7
      $region36: #{music_cnn_forward.5} parent=23 // pred_fallthru
        _
    $region24: #{music_cnn_forward.5} parent=5 // pred_fallthru
      _
    %p269 = scmp.le.s32.totalorder 1, %s11
    %p270 = scmp.lt.s32.totalorder %s11, 5
    %p271 = pnand %p269, %p270
    %p272 = pneg %p271
    // Predicated region
    $region37: #{music_cnn_forward.5} parent=5 // pred_check
      _
    $region38: #{music_cnn_forward.5} parent=5 // pred_check_branch
      %274 = sbr.rel (%p271) target = $region40
    $region39: #{music_cnn_forward.5} parent=5 // pred_region
      %s275 = ssub.s32 %s11, 1
      %s276 = smul.u32 %s21, 4
      %s277 = ssub.s32 %s276, 1
      %p278 = scmp.gt.s32.totalorder %s277, 0
      %s279 = scalar_select %p278, %s277, 0
      %p280 = scmp.lt.s32.totalorder %s20, 1
      %s281 = scalar_select %p280, %s20, 1
      %p282 = scmp.lt.s32.totalorder %s279, 7
      %s283 = scalar_select %p282, %s279, 7
      %s284 = smul.addr %s281, 8
      %s285 = sadd.s32 %s283, %s284
      %s286 = smul.addr %s285, 8
      %s287 = scalar_lea.vmem %s0, %s286
      %p288 = pneg %p59
      %p289 = pneg %p56
      %s290 = smul.u32 4, %s21
      %p291 = scmp.lt.s32.totalorder %s20, 1
      %s292 = scalar_select %p291, %s20, 1
      %p293 = scmp.lt.s32.totalorder %s290, 7
      %s294 = scalar_select %p293, %s290, 7
      %s295 = smul.addr %s292, 8
      %s296 = sadd.s32 %s294, %s295
      %s297 = smul.addr %s296, 8
      %s298 = scalar_lea.vmem %s1, %s297
      %p299 = pneg %p87
      %p300 = pneg %p84
      %s301 = sadd.s32 %s21, 1
      %s302 = smul.u32 %s301, 4
      %p303 = scmp.lt.s32.totalorder %s302, 7
      %s304 = scalar_select %p303, %s302, 7
      %p305 = scmp.lt.s32.totalorder %s20, 1
      %s306 = scalar_select %p305, %s20, 1
      %p307 = scmp.lt.s32.totalorder %s304, 7
      %s308 = scalar_select %p307, %s304, 7
      %s309 = smul.addr %s306, 8
      %s310 = sadd.s32 %s308, %s309
      %s311 = smul.addr %s310, 8
      %s312 = scalar_lea.vmem %s2, %s311
      %p313 = pneg %p123
      %p314 = pneg %p120
      %p315 = pneg %p144
      %p316 = pneg %p141
      %p317 = pneg %p165
      %p318 = pneg %p162
      %p319 = pneg %p193
      %p320 = pneg %p190
      %s321 = smul.u32 2, %s21
      %p322 = scmp.lt.s32.totalorder %s20, 1
      %s323 = scalar_select %p322, %s20, 1
      %p324 = scmp.lt.s32.totalorder %s321, 3
      %s325 = scalar_select %p324, %s321, 3
      %s326 = smul.addr %s323, 4
      %s327 = sadd.s32 %s325, %s326
      %s328 = smul.addr %s327, 4
      %s329 = scalar_lea.vmem %s5, %s328
      %s330 = smul.u32 %s21, 4
      %s331 = ssub.s32 %s330, 1
      %p332 = scmp.gt.s32.totalorder %s331, 0
      %s333 = scalar_select %p332, %s331, 0
      %p334 = scmp.lt.s32.totalorder %s20, 1
      %s335 = scalar_select %p334, %s20, 1
      %p336 = scmp.lt.s32.totalorder %s333, 7
      %s337 = scalar_select %p336, %s333, 7
      %s338 = smul.addr %s335, 8
      %s339 = sadd.s32 %s337, %s338
      %s340 = smul.addr %s339, 8
      %s341 = scalar_lea.vmem %s0, %s340
      %s342 = smul.u32 %s21, 4
      %s343 = ssub.s32 %s342, 1
      %p344 = scmp.gt.s32.totalorder %s343, 0
      %s345 = scalar_select %p344, %s343, 0
      %s346 = smul.u32 4, %s21
      %p347 = scmp.lt.s32.totalorder %s20, 1
      %s348 = scalar_select %p347, %s20, 1
      %p349 = scmp.lt.s32.totalorder %s346, 7
      %s350 = scalar_select %p349, %s346, 7
      %s351 = smul.addr %s348, 8
      %s352 = sadd.s32 %s350, %s351
      %s353 = smul.addr %s352, 8
      %s354 = scalar_lea.vmem %s1, %s353
      %s355 = smul.u32 4, %s21
      %s356 = sadd.s32 %s21, 1
      %s357 = smul.u32 %s356, 4
      %p358 = scmp.lt.s32.totalorder %s357, 7
      %s359 = scalar_select %p358, %s357, 7
      %p360 = scmp.lt.s32.totalorder %s20, 1
      %s361 = scalar_select %p360, %s20, 1
      %p362 = scmp.lt.s32.totalorder %s359, 7
      %s363 = scalar_select %p362, %s359, 7
      %s364 = smul.addr %s361, 8
      %s365 = sadd.s32 %s363, %s364
      %s366 = smul.addr %s365, 8
      %s367 = scalar_lea.vmem %s2, %s366
      %s368 = sadd.s32 %s21, 1
      %s369 = smul.u32 %s368, 4
      %p370 = scmp.lt.s32.totalorder %s369, 7
      %s371 = scalar_select %p370, %s369, 7
      %s372 = smul.u32 2, %s21
      %p373 = scmp.lt.s32.totalorder %s20, 1
      %s374 = scalar_select %p373, %s20, 1
      %p375 = scmp.lt.s32.totalorder %s372, 3
      %s376 = scalar_select %p375, %s372, 3
      %s377 = smul.addr %s374, 4
      %s378 = sadd.s32 %s376, %s377
      %s379 = smul.addr %s378, 4
      %s380 = scalar_lea.vmem %s5, %s379
      %s381 = smul.u32 2, %s21
      %vm382 = vcmask 523264
      %383 = vst.msk [vmem:[#allocation2] sm:$0xff] %vm382, 0.0
      %vm384 = vcmask 517120
      %385 = vst.msk [vmem:[#allocation2 + $0x8] sm:$0x3] %vm384, 0.0
      %386 = vst.msk [vmem:[#allocation2 + $0x10] sm:$0xff] %vm382, 0.0
      %387 = vst.msk [vmem:[#allocation2 + $0x18] sm:$0x3] %vm384, 0.0
      %388 = vst.msk [vmem:[#allocation2 + $0x20] sm:$0xff] %vm382, 0.0
      %389 = vst.msk [vmem:[#allocation2 + $0x28] sm:$0x3] %vm384, 0.0
      %390 = vst.msk [vmem:[#allocation2 + $0x30] sm:$0xff] %vm382, 0.0
      %391 = vst.msk [vmem:[#allocation2 + $0x38] sm:$0x3] %vm384, 0.0
      %392 = vst.msk [vmem:[#allocation2 + $0x40] sm:$0xff] %vm382, 0.0
      %393 = vst.msk [vmem:[#allocation2 + $0x48] sm:$0x3] %vm384, 0.0
      %394 = vst.msk [vmem:[#allocation2 + $0x50] sm:$0xff] %vm382, 0.0
      %395 = vst.msk [vmem:[#allocation2 + $0x58] sm:$0x3] %vm384, 0.0
      %v396 = vld [vmem:[%s354] sm:$0xff]
      %v397 = vld [vmem:[%s354 + $0x8] sm:$0xff]
      %v398 = vld [vmem:[%s354 + $0x10] sm:$0xff]
      %v399 = vld [vmem:[%s354 + $0x18] sm:$0xff]
      %s400 = scalar_lea.vmem [#allocation2], 16
      %401 = vst.msk [vmem:[%s400 + $0x1] sm:$0xff] %vm382, %v396
      %402 = vst.msk [vmem:[%s400 + $0x11] sm:$0xff] %vm382, %v397
      %403 = vst.msk [vmem:[%s400 + $0x21] sm:$0xff] %vm382, %v398
      %404 = vst.msk [vmem:[%s400 + $0x31] sm:$0xff] %vm382, %v399
      %p405 = scmp.gt.s32.totalorder %s21, 0
      // Predicated region
      $region41: #{music_cnn_forward.5} parent=39 // pred_check
        %p406 = pneg %p405
      $region42: #{music_cnn_forward.5} parent=39 // pred_check_branch
        %408 = sbr.rel (%p406) target = $region44
      $region43: #{music_cnn_forward.5} parent=39 // pred_region
        %v409 = vld [vmem:[%s341] sm:$0xff]
        %410 = vst.msk [vmem:[#allocation2 + $0x1] sm:$0xff] %vm382, %v409
      $region44: #{music_cnn_forward.5} parent=39 // pred_fallthru
        _
      %p411 = scmp.lt.s32.totalorder %s21, 1
      // Predicated region
      $region45: #{music_cnn_forward.5} parent=39 // pred_check
        %p412 = pneg %p411
      $region46: #{music_cnn_forward.5} parent=39 // pred_check_branch
        %414 = sbr.rel (%p412) target = $region48
      $region47: #{music_cnn_forward.5} parent=39 // pred_region
        %v415 = vld [vmem:[%s367] sm:$0xff]
        %s416 = scalar_lea.vmem [#allocation2], 80
        %417 = vst.msk [vmem:[%s416 + $0x1] sm:$0xff] %vm382, %v415
      $region48: #{music_cnn_forward.5} parent=39 // pred_fallthru
        _
      %v418 = vld [vmem:[%s4] sm:$0x1]
      %v420 = vlaneseq
      %v421 = vshrl.u32 %v420, 7
      %v422 = vsub.s32 0, %v421
      %v423 = vrot.slane %v418, %v422
      loop: start=0, step=1, limit=2
      $region49: #{music_cnn_forward.5} parent=39 // loop_pre_header
        _
      $region50: #{music_cnn_forward.5} parent=39 // loop_header
        %s426 = sphi 0, %s430
        %p427 = scmp.ge.s32.totalorder %s426, 2
      $region51: #{music_cnn_forward.5} parent=39 // loop_header_branch
        %429 = sbr.rel (%p427) target = $region55
      $region52: #{music_cnn_forward.5} parent=39 // loop_body
        %s431 = smul.u32 %s426, 2
        %s432 = smul.u32 %s431, 16
        %s433 = scalar_lea.vmem [#allocation2], %s432
        %v434 = vld [vmem:[%s433] sm:$0xff]
        %v435 = vld [vmem:[%s433 + $0x8] sm:$0x3]
        %vm438 = vcmask 1046528
        %v439 = vrot.slane %v434, 1
        %v440 = vrot.slane %v435, 1
        %v441 = vsel %vm438, %v439, %v440
        %442 = vrot.lane.b32.xlu0 %v441, 64
        %v443 = vpop.permute.xlu0 %442
        %vm445 = vcmask 1045504
        %v446 = vrot.slane %v434, 2
        %v447 = vrot.slane %v435, 2
        %v448 = vsel %vm445, %v446, %v447
        %v449 = vsel %vm382, %v434, %v443
        %v450 = vld [vmem:[%s3] sm:$0xff]
        %v451 = vld [vmem:[%s3 + $0x8] sm:$0xff]
        %v452 = vld [vmem:[%s3 + $0x10] sm:$0xff]
        %v453 = vld [vmem:[%s3 + $0x18] sm:$0xff]
        %v454 = vld [vmem:[%s3 + $0x20] sm:$0xff]
        %v455 = vld [vmem:[%s3 + $0x28] sm:$0xff]
        %v456 = vld [vmem:[%s3 + $0x30] sm:$0xff]
        %v457 = vld [vmem:[%s3 + $0x38] sm:$0xff]
        %v458 = vld [vmem:[%s3 + $0x40] sm:$0xff]
        %v459 = vld [vmem:[%s3 + $0x48] sm:$0xff]
        %v460 = vld [vmem:[%s3 + $0x50] sm:$0xff]
        %v461 = vld [vmem:[%s3 + $0x58] sm:$0xff]
        %v462 = vld [vmem:[%s3 + $0x60] sm:$0xff]
        %v463 = vld [vmem:[%s3 + $0x68] sm:$0xff]
        %v464 = vld [vmem:[%s3 + $0x70] sm:$0xff]
        %v465 = vld [vmem:[%s3 + $0x78] sm:$0xff]
        %v466 = vld [vmem:[%s3 + $0x80] sm:$0xff]
        %v467 = vld [vmem:[%s3 + $0x88] sm:$0xff]
        %v468 = vld [vmem:[%s3 + $0x90] sm:$0xff]
        %v469 = vld [vmem:[%s3 + $0x98] sm:$0xff]
        %v470 = vld [vmem:[%s3 + $0xa0] sm:$0xff]
        %v471 = vld [vmem:[%s3 + $0xa8] sm:$0xff]
        %v472 = vld [vmem:[%s3 + $0xb0] sm:$0xff]
        %v473 = vld [vmem:[%s3 + $0xb8] sm:$0xff]
        %v474 = vsel %vm382, %v448, 0
        %476 = vmatprep.subr.mxu0 0.0
        %477 = vmatpush1.msra.mxu0 %v450
        %478 = vmatprep.subr.mxu0 0.0
        %479 = vmatpush1.msra.mxu0 %v451
        %480 = vmatprep.subr.mxu0 0.0
        %481 = vmatpush1.msra.mxu0 %v452
        %482 = vmatprep.subr.mxu0 0.0
        %483 = vmatpush1.msra.mxu0 %v453
        %484 = vmatprep.subr.mxu0 0.0
        %485 = vmatpush1.msra.mxu0 %v454
        %486 = vmatprep.subr.mxu0 0.0
        %487 = vmatpush1.msra.mxu0 %v455
        %488 = vmatprep.subr.mxu0 0.0
        %489 = vmatpush1.msra.mxu0 %v456
        %490 = vmatprep.subr.mxu0 0.0
        %491 = vmatpush1.msra.mxu0 %v457
        %492 = vmatprep.subr.mxu0 0.0
        %493 = vmatpush1.msra.mxu0 %v458
        %494 = vmatprep.subr.mxu0 0.0
        %495 = vmatpush1.msra.mxu0 %v459
        %496 = vmatprep.subr.mxu0 0.0
        %497 = vmatpush1.msra.mxu0 %v460
        %498 = vmatprep.subr.mxu0 0.0
        %499 = vmatpush1.msra.mxu0 %v461
        %500 = vmatprep.subr.mxu0 0.0
        %501 = vmatpush1.msra.mxu0 %v462
        %502 = vmatprep.subr.mxu0 0.0
        %503 = vmatpush1.msra.mxu0 %v463
        %504 = vmatprep.subr.mxu0 0.0
        %505 = vmatpush1.msra.mxu0 %v464
        %506 = vmatprep.subr.mxu0 0.0
        %507 = vmatpush1.msra.mxu0 %v465
        %508 = vmatprep.subr.mxu0 0.0
        %509 = vmatpush1.msra.mxu0 %v466
        %510 = vmatprep.subr.mxu0 0.0
        %511 = vmatpush1.msra.mxu0 %v467
        %512 = vmatprep.subr.mxu0 0.0
        %513 = vmatpush1.msra.mxu0 %v468
        %514 = vmatprep.subr.mxu0 0.0
        %515 = vmatpush1.msra.mxu0 %v469
        %516 = vmatprep.subr.mxu0 0.0
        %517 = vmatpush1.msra.mxu0 %v470
        %518 = vmatprep.subr.mxu0 0.0
        %519 = vmatpush1.msra.mxu0 %v471
        %520 = vmatprep.subr.mxu0 0.0
        %521 = vmatpush1.msra.mxu0 %v472
        %522 = vmatprep.subr.mxu0 0.0
        %523 = vmatpush1.msra.mxu0 %v473
        %524 = vmatprep.subr.mxu0 0.0
        %525 = vmatpush1.msra.mxu0 0.0
        %526 = vmatprep.subr.mxu0 0.0
        %527 = vmatpush1.msra.mxu0 0.0
        %528 = vmatprep.subr.mxu0 0.0
        %529 = vmatpush1.msra.mxu0 0.0
        %530 = vmatprep.subr.mxu0 0.0
        %531 = vmatpush1.msra.mxu0 0.0
        %532 = vmatprep.subr.mxu0 0.0
        %533 = vmatpush1.msra.mxu0 0.0
        %534 = vmatprep.subr.mxu0 0.0
        %535 = vmatpush1.msra.mxu0 0.0
        %536 = vmatprep.subr.mxu0 0.0
        %537 = vmatpush1.msra.mxu0 0.0
        %538 = vmatprep.subr.mxu0 0.0
        %539 = vmatpush1.msra.mxu0 0.0
        %540 = vmatprep.mubr.f32.mxu0 %v474
        %541 = vmatmul.mubr.f32.gmra.mrb[0].mxu0 %v449
        %v542 = vpop.f32.mrb[0].mxu0
        %v543 = vadd.f32 0.0, %v542
        %v544 = vpop.f32.mrb[0].mxu0
        %545 = vdwg.mxu0
        %v546 = vadd.f32 %v423, %v543
        %s547 = sadd.s32 %s431, 1
        %s548 = smul.u32 %s547, 16
        %s549 = scalar_lea.vmem [#allocation2], %s548
        %v550 = vld [vmem:[%s549] sm:$0xff]
        %v551 = vld [vmem:[%s549 + $0x8] sm:$0x3]
        %v554 = vrot.slane %v550, 1
        %v555 = vrot.slane %v551, 1
        %v556 = vsel %vm438, %v554, %v555
        %557 = vrot.lane.b32.xlu0 %v556, 64
        %v558 = vpop.permute.xlu0 %557
        %v560 = vrot.slane %v550, 2
        %v561 = vrot.slane %v551, 2
        %v562 = vsel %vm445, %v560, %v561
        %v563 = vsel %vm382, %v550, %v558
        %s564 = scalar_lea.vmem %s3, 192
        %v565 = vld [vmem:[%s564] sm:$0xff]
        %v566 = vld [vmem:[%s564 + $0x8] sm:$0xff]
        %v567 = vld [vmem:[%s564 + $0x10] sm:$0xff]
        %v568 = vld [vmem:[%s564 + $0x18] sm:$0xff]
        %v569 = vld [vmem:[%s564 + $0x20] sm:$0xff]
        %v570 = vld [vmem:[%s564 + $0x28] sm:$0xff]
        %v571 = vld [vmem:[%s564 + $0x30] sm:$0xff]
        %v572 = vld [vmem:[%s564 + $0x38] sm:$0xff]
        %v573 = vld [vmem:[%s564 + $0x40] sm:$0xff]
        %v574 = vld [vmem:[%s564 + $0x48] sm:$0xff]
        %v575 = vld [vmem:[%s564 + $0x50] sm:$0xff]
        %v576 = vld [vmem:[%s564 + $0x58] sm:$0xff]
        %v577 = vld [vmem:[%s564 + $0x60] sm:$0xff]
        %v578 = vld [vmem:[%s564 + $0x68] sm:$0xff]
        %v579 = vld [vmem:[%s564 + $0x70] sm:$0xff]
        %v580 = vld [vmem:[%s564 + $0x78] sm:$0xff]
        %v581 = vld [vmem:[%s564 + $0x80] sm:$0xff]
        %v582 = vld [vmem:[%s564 + $0x88] sm:$0xff]
        %v583 = vld [vmem:[%s564 + $0x90] sm:$0xff]
        %v584 = vld [vmem:[%s564 + $0x98] sm:$0xff]
        %v585 = vld [vmem:[%s564 + $0xa0] sm:$0xff]
        %v586 = vld [vmem:[%s564 + $0xa8] sm:$0xff]
        %v587 = vld [vmem:[%s564 + $0xb0] sm:$0xff]
        %v588 = vld [vmem:[%s564 + $0xb8] sm:$0xff]
        %v589 = vsel %vm382, %v562, 0
        %591 = vmatprep.subr.mxu0 0.0
        %592 = vmatpush1.msra.mxu0 %v565
        %593 = vmatprep.subr.mxu0 0.0
        %594 = vmatpush1.msra.mxu0 %v566
        %595 = vmatprep.subr.mxu0 0.0
        %596 = vmatpush1.msra.mxu0 %v567
        %597 = vmatprep.subr.mxu0 0.0
        %598 = vmatpush1.msra.mxu0 %v568
        %599 = vmatprep.subr.mxu0 0.0
        %600 = vmatpush1.msra.mxu0 %v569
        %601 = vmatprep.subr.mxu0 0.0
        %602 = vmatpush1.msra.mxu0 %v570
        %603 = vmatprep.subr.mxu0 0.0
        %604 = vmatpush1.msra.mxu0 %v571
        %605 = vmatprep.subr.mxu0 0.0
        %606 = vmatpush1.msra.mxu0 %v572
        %607 = vmatprep.subr.mxu0 0.0
        %608 = vmatpush1.msra.mxu0 %v573
        %609 = vmatprep.subr.mxu0 0.0
        %610 = vmatpush1.msra.mxu0 %v574
        %611 = vmatprep.subr.mxu0 0.0
        %612 = vmatpush1.msra.mxu0 %v575
        %613 = vmatprep.subr.mxu0 0.0
        %614 = vmatpush1.msra.mxu0 %v576
        %615 = vmatprep.subr.mxu0 0.0
        %616 = vmatpush1.msra.mxu0 %v577
        %617 = vmatprep.subr.mxu0 0.0
        %618 = vmatpush1.msra.mxu0 %v578
        %619 = vmatprep.subr.mxu0 0.0
        %620 = vmatpush1.msra.mxu0 %v579
        %621 = vmatprep.subr.mxu0 0.0
        %622 = vmatpush1.msra.mxu0 %v580
        %623 = vmatprep.subr.mxu0 0.0
        %624 = vmatpush1.msra.mxu0 %v581
        %625 = vmatprep.subr.mxu0 0.0
        %626 = vmatpush1.msra.mxu0 %v582
        %627 = vmatprep.subr.mxu0 0.0
        %628 = vmatpush1.msra.mxu0 %v583
        %629 = vmatprep.subr.mxu0 0.0
        %630 = vmatpush1.msra.mxu0 %v584
        %631 = vmatprep.subr.mxu0 0.0
        %632 = vmatpush1.msra.mxu0 %v585
        %633 = vmatprep.subr.mxu0 0.0
        %634 = vmatpush1.msra.mxu0 %v586
        %635 = vmatprep.subr.mxu0 0.0
        %636 = vmatpush1.msra.mxu0 %v587
        %637 = vmatprep.subr.mxu0 0.0
        %638 = vmatpush1.msra.mxu0 %v588
        %639 = vmatprep.subr.mxu0 0.0
        %640 = vmatpush1.msra.mxu0 0.0
        %641 = vmatprep.subr.mxu0 0.0
        %642 = vmatpush1.msra.mxu0 0.0
        %643 = vmatprep.subr.mxu0 0.0
        %644 = vmatpush1.msra.mxu0 0.0
        %645 = vmatprep.subr.mxu0 0.0
        %646 = vmatpush1.msra.mxu0 0.0
        %647 = vmatprep.subr.mxu0 0.0
        %648 = vmatpush1.msra.mxu0 0.0
        %649 = vmatprep.subr.mxu0 0.0
        %650 = vmatpush1.msra.mxu0 0.0
        %651 = vmatprep.subr.mxu0 0.0
        %652 = vmatpush1.msra.mxu0 0.0
        %653 = vmatprep.subr.mxu0 0.0
        %654 = vmatpush1.msra.mxu0 0.0
        %655 = vmatprep.mubr.f32.mxu0 %v589
        %656 = vmatmul.mubr.f32.gmra.mrb[0].mxu0 %v563
        %v657 = vpop.f32.mrb[0].mxu0
        %v658 = vadd.f32 0.0, %v657
        %v659 = vpop.f32.mrb[0].mxu0
        %660 = vdwg.mxu0
        %v661 = vadd.f32 %v546, %v658
        %s662 = sadd.s32 %s431, 2
        %s663 = smul.u32 %s662, 16
        %s664 = scalar_lea.vmem [#allocation2], %s663
        %v665 = vld [vmem:[%s664] sm:$0xff]
        %v666 = vld [vmem:[%s664 + $0x8] sm:$0x3]
        %v669 = vrot.slane %v665, 1
        %v670 = vrot.slane %v666, 1
        %v671 = vsel %vm438, %v669, %v670
        %672 = vrot.lane.b32.xlu0 %v671, 64
        %v673 = vpop.permute.xlu0 %672
        %v675 = vrot.slane %v665, 2
        %v676 = vrot.slane %v666, 2
        %v677 = vsel %vm445, %v675, %v676
        %v678 = vsel %vm382, %v665, %v673
        %s679 = scalar_lea.vmem %s3, 384
        %v680 = vld [vmem:[%s679] sm:$0xff]
        %v681 = vld [vmem:[%s679 + $0x8] sm:$0xff]
        %v682 = vld [vmem:[%s679 + $0x10] sm:$0xff]
        %v683 = vld [vmem:[%s679 + $0x18] sm:$0xff]
        %v684 = vld [vmem:[%s679 + $0x20] sm:$0xff]
        %v685 = vld [vmem:[%s679 + $0x28] sm:$0xff]
        %v686 = vld [vmem:[%s679 + $0x30] sm:$0xff]
        %v687 = vld [vmem:[%s679 + $0x38] sm:$0xff]
        %v688 = vld [vmem:[%s679 + $0x40] sm:$0xff]
        %v689 = vld [vmem:[%s679 + $0x48] sm:$0xff]
        %v690 = vld [vmem:[%s679 + $0x50] sm:$0xff]
        %v691 = vld [vmem:[%s679 + $0x58] sm:$0xff]
        %v692 = vld [vmem:[%s679 + $0x60] sm:$0xff]
        %v693 = vld [vmem:[%s679 + $0x68] sm:$0xff]
        %v694 = vld [vmem:[%s679 + $0x70] sm:$0xff]
        %v695 = vld [vmem:[%s679 + $0x78] sm:$0xff]
        %v696 = vld [vmem:[%s679 + $0x80] sm:$0xff]
        %v697 = vld [vmem:[%s679 + $0x88] sm:$0xff]
        %v698 = vld [vmem:[%s679 + $0x90] sm:$0xff]
        %v699 = vld [vmem:[%s679 + $0x98] sm:$0xff]
        %v700 = vld [vmem:[%s679 + $0xa0] sm:$0xff]
        %v701 = vld [vmem:[%s679 + $0xa8] sm:$0xff]
        %v702 = vld [vmem:[%s679 + $0xb0] sm:$0xff]
        %v703 = vld [vmem:[%s679 + $0xb8] sm:$0xff]
        %v704 = vsel %vm382, %v677, 0
        %706 = vmatprep.subr.mxu0 0.0
        %707 = vmatpush1.msra.mxu0 %v680
        %708 = vmatprep.subr.mxu0 0.0
        %709 = vmatpush1.msra.mxu0 %v681
        %710 = vmatprep.subr.mxu0 0.0
        %711 = vmatpush1.msra.mxu0 %v682
        %712 = vmatprep.subr.mxu0 0.0
        %713 = vmatpush1.msra.mxu0 %v683
        %714 = vmatprep.subr.mxu0 0.0
        %715 = vmatpush1.msra.mxu0 %v684
        %716 = vmatprep.subr.mxu0 0.0
        %717 = vmatpush1.msra.mxu0 %v685
        %718 = vmatprep.subr.mxu0 0.0
        %719 = vmatpush1.msra.mxu0 %v686
        %720 = vmatprep.subr.mxu0 0.0
        %721 = vmatpush1.msra.mxu0 %v687
        %722 = vmatprep.subr.mxu0 0.0
        %723 = vmatpush1.msra.mxu0 %v688
        %724 = vmatprep.subr.mxu0 0.0
        %725 = vmatpush1.msra.mxu0 %v689
        %726 = vmatprep.subr.mxu0 0.0
        %727 = vmatpush1.msra.mxu0 %v690
        %728 = vmatprep.subr.mxu0 0.0
        %729 = vmatpush1.msra.mxu0 %v691
        %730 = vmatprep.subr.mxu0 0.0
        %731 = vmatpush1.msra.mxu0 %v692
        %732 = vmatprep.subr.mxu0 0.0
        %733 = vmatpush1.msra.mxu0 %v693
        %734 = vmatprep.subr.mxu0 0.0
        %735 = vmatpush1.msra.mxu0 %v694
        %736 = vmatprep.subr.mxu0 0.0
        %737 = vmatpush1.msra.mxu0 %v695
        %738 = vmatprep.subr.mxu0 0.0
        %739 = vmatpush1.msra.mxu0 %v696
        %740 = vmatprep.subr.mxu0 0.0
        %741 = vmatpush1.msra.mxu0 %v697
        %742 = vmatprep.subr.mxu0 0.0
        %743 = vmatpush1.msra.mxu0 %v698
        %744 = vmatprep.subr.mxu0 0.0
        %745 = vmatpush1.msra.mxu0 %v699
        %746 = vmatprep.subr.mxu0 0.0
        %747 = vmatpush1.msra.mxu0 %v700
        %748 = vmatprep.subr.mxu0 0.0
        %749 = vmatpush1.msra.mxu0 %v701
        %750 = vmatprep.subr.mxu0 0.0
        %751 = vmatpush1.msra.mxu0 %v702
        %752 = vmatprep.subr.mxu0 0.0
        %753 = vmatpush1.msra.mxu0 %v703
        %754 = vmatprep.subr.mxu0 0.0
        %755 = vmatpush1.msra.mxu0 0.0
        %756 = vmatprep.subr.mxu0 0.0
        %757 = vmatpush1.msra.mxu0 0.0
        %758 = vmatprep.subr.mxu0 0.0
        %759 = vmatpush1.msra.mxu0 0.0
        %760 = vmatprep.subr.mxu0 0.0
        %761 = vmatpush1.msra.mxu0 0.0
        %762 = vmatprep.subr.mxu0 0.0
        %763 = vmatpush1.msra.mxu0 0.0
        %764 = vmatprep.subr.mxu0 0.0
        %765 = vmatpush1.msra.mxu0 0.0
        %766 = vmatprep.subr.mxu0 0.0
        %767 = vmatpush1.msra.mxu0 0.0
        %768 = vmatprep.subr.mxu0 0.0
        %769 = vmatpush1.msra.mxu0 0.0
        %770 = vmatprep.mubr.f32.mxu0 %v704
        %771 = vmatmul.mubr.f32.gmra.mrb[0].mxu0 %v678
        %v772 = vpop.f32.mrb[0].mxu0
        %v773 = vadd.f32 0.0, %v772
        %v774 = vpop.f32.mrb[0].mxu0
        %775 = vdwg.mxu0
        %v776 = vadd.f32 %v661, %v773
        %777 = vmatprep.subr.mxu0 0.0
        %778 = vmatpush1.msra.mxu0 %v450
        %779 = vmatprep.subr.mxu0 0.0
        %780 = vmatpush1.msra.mxu0 %v451
        %781 = vmatprep.subr.mxu0 0.0
        %782 = vmatpush1.msra.mxu0 %v452
        %783 = vmatprep.subr.mxu0 0.0
        %784 = vmatpush1.msra.mxu0 %v453
        %785 = vmatprep.subr.mxu0 0.0
        %786 = vmatpush1.msra.mxu0 %v454
        %787 = vmatprep.subr.mxu0 0.0
        %788 = vmatpush1.msra.mxu0 %v455
        %789 = vmatprep.subr.mxu0 0.0
        %790 = vmatpush1.msra.mxu0 %v456
        %791 = vmatprep.subr.mxu0 0.0
        %792 = vmatpush1.msra.mxu0 %v457
        %793 = vmatprep.subr.mxu0 0.0
        %794 = vmatpush1.msra.mxu0 %v458
        %795 = vmatprep.subr.mxu0 0.0
        %796 = vmatpush1.msra.mxu0 %v459
        %797 = vmatprep.subr.mxu0 0.0
        %798 = vmatpush1.msra.mxu0 %v460
        %799 = vmatprep.subr.mxu0 0.0
        %800 = vmatpush1.msra.mxu0 %v461
        %801 = vmatprep.subr.mxu0 0.0
        %802 = vmatpush1.msra.mxu0 %v462
        %803 = vmatprep.subr.mxu0 0.0
        %804 = vmatpush1.msra.mxu0 %v463
        %805 = vmatprep.subr.mxu0 0.0
        %806 = vmatpush1.msra.mxu0 %v464
        %807 = vmatprep.subr.mxu0 0.0
        %808 = vmatpush1.msra.mxu0 %v465
        %809 = vmatprep.subr.mxu0 0.0
        %810 = vmatpush1.msra.mxu0 %v466
        %811 = vmatprep.subr.mxu0 0.0
        %812 = vmatpush1.msra.mxu0 %v467
        %813 = vmatprep.subr.mxu0 0.0
        %814 = vmatpush1.msra.mxu0 %v468
        %815 = vmatprep.subr.mxu0 0.0
        %816 = vmatpush1.msra.mxu0 %v469
        %817 = vmatprep.subr.mxu0 0.0
        %818 = vmatpush1.msra.mxu0 %v470
        %819 = vmatprep.subr.mxu0 0.0
        %820 = vmatpush1.msra.mxu0 %v471
        %821 = vmatprep.subr.mxu0 0.0
        %822 = vmatpush1.msra.mxu0 %v472
        %823 = vmatprep.subr.mxu0 0.0
        %824 = vmatpush1.msra.mxu0 %v473
        %825 = vmatprep.subr.mxu0 0.0
        %826 = vmatpush1.msra.mxu0 0.0
        %827 = vmatprep.subr.mxu0 0.0
        %828 = vmatpush1.msra.mxu0 0.0
        %829 = vmatprep.subr.mxu0 0.0
        %830 = vmatpush1.msra.mxu0 0.0
        %831 = vmatprep.subr.mxu0 0.0
        %832 = vmatpush1.msra.mxu0 0.0
        %833 = vmatprep.subr.mxu0 0.0
        %834 = vmatpush1.msra.mxu0 0.0
        %835 = vmatprep.subr.mxu0 0.0
        %836 = vmatpush1.msra.mxu0 0.0
        %837 = vmatprep.subr.mxu0 0.0
        %838 = vmatpush1.msra.mxu0 0.0
        %839 = vmatprep.subr.mxu0 0.0
        %840 = vmatpush1.msra.mxu0 0.0
        %841 = vmatprep.mubr.f32.mxu0 %v589
        %842 = vmatmul.mubr.f32.gmra.mrb[0].mxu0 %v563
        %v843 = vpop.f32.mrb[0].mxu0
        %v844 = vadd.f32 0.0, %v843
        %v845 = vpop.f32.mrb[0].mxu0
        %846 = vdwg.mxu0
        %v847 = vadd.f32 %v423, %v844
        %848 = vmatprep.subr.mxu0 0.0
        %849 = vmatpush1.msra.mxu0 %v565
        %850 = vmatprep.subr.mxu0 0.0
        %851 = vmatpush1.msra.mxu0 %v566
        %852 = vmatprep.subr.mxu0 0.0
        %853 = vmatpush1.msra.mxu0 %v567
        %854 = vmatprep.subr.mxu0 0.0
        %855 = vmatpush1.msra.mxu0 %v568
        %856 = vmatprep.subr.mxu0 0.0
        %857 = vmatpush1.msra.mxu0 %v569
        %858 = vmatprep.subr.mxu0 0.0
        %859 = vmatpush1.msra.mxu0 %v570
        %860 = vmatprep.subr.mxu0 0.0
        %861 = vmatpush1.msra.mxu0 %v571
        %862 = vmatprep.subr.mxu0 0.0
        %863 = vmatpush1.msra.mxu0 %v572
        %864 = vmatprep.subr.mxu0 0.0
        %865 = vmatpush1.msra.mxu0 %v573
        %866 = vmatprep.subr.mxu0 0.0
        %867 = vmatpush1.msra.mxu0 %v574
        %868 = vmatprep.subr.mxu0 0.0
        %869 = vmatpush1.msra.mxu0 %v575
        %870 = vmatprep.subr.mxu0 0.0
        %871 = vmatpush1.msra.mxu0 %v576
        %872 = vmatprep.subr.mxu0 0.0
        %873 = vmatpush1.msra.mxu0 %v577
        %874 = vmatprep.subr.mxu0 0.0
        %875 = vmatpush1.msra.mxu0 %v578
        %876 = vmatprep.subr.mxu0 0.0
        %877 = vmatpush1.msra.mxu0 %v579
        %878 = vmatprep.subr.mxu0 0.0
        %879 = vmatpush1.msra.mxu0 %v580
        %880 = vmatprep.subr.mxu0 0.0
        %881 = vmatpush1.msra.mxu0 %v581
        %882 = vmatprep.subr.mxu0 0.0
        %883 = vmatpush1.msra.mxu0 %v582
        %884 = vmatprep.subr.mxu0 0.0
        %885 = vmatpush1.msra.mxu0 %v583
        %886 = vmatprep.subr.mxu0 0.0
        %887 = vmatpush1.msra.mxu0 %v584
        %888 = vmatprep.subr.mxu0 0.0
        %889 = vmatpush1.msra.mxu0 %v585
        %890 = vmatprep.subr.mxu0 0.0
        %891 = vmatpush1.msra.mxu0 %v586
        %892 = vmatprep.subr.mxu0 0.0
        %893 = vmatpush1.msra.mxu0 %v587
        %894 = vmatprep.subr.mxu0 0.0
        %895 = vmatpush1.msra.mxu0 %v588
        %896 = vmatprep.subr.mxu0 0.0
        %897 = vmatpush1.msra.mxu0 0.0
        %898 = vmatprep.subr.mxu0 0.0
        %899 = vmatpush1.msra.mxu0 0.0
        %900 = vmatprep.subr.mxu0 0.0
        %901 = vmatpush1.msra.mxu0 0.0
        %902 = vmatprep.subr.mxu0 0.0
        %903 = vmatpush1.msra.mxu0 0.0
        %904 = vmatprep.subr.mxu0 0.0
        %905 = vmatpush1.msra.mxu0 0.0
        %906 = vmatprep.subr.mxu0 0.0
        %907 = vmatpush1.msra.mxu0 0.0
        %908 = vmatprep.subr.mxu0 0.0
        %909 = vmatpush1.msra.mxu0 0.0
        %910 = vmatprep.subr.mxu0 0.0
        %911 = vmatpush1.msra.mxu0 0.0
        %912 = vmatprep.mubr.f32.mxu0 %v704
        %913 = vmatmul.mubr.f32.gmra.mrb[0].mxu0 %v678
        %v914 = vpop.f32.mrb[0].mxu0
        %v915 = vadd.f32 0.0, %v914
        %v916 = vpop.f32.mrb[0].mxu0
        %917 = vdwg.mxu0
        %v918 = vadd.f32 %v847, %v915
        %s919 = sadd.s32 %s431, 3
        %s920 = smul.u32 %s919, 16
        %s921 = scalar_lea.vmem [#allocation2], %s920
        %v922 = vld [vmem:[%s921] sm:$0xff]
        %v923 = vld [vmem:[%s921 + $0x8] sm:$0x3]
        %v926 = vrot.slane %v922, 1
        %v927 = vrot.slane %v923, 1
        %v928 = vsel %vm438, %v926, %v927
        %929 = vrot.lane.b32.xlu0 %v928, 64
        %v930 = vpop.permute.xlu0 %929
        %v932 = vrot.slane %v922, 2
        %v933 = vrot.slane %v923, 2
        %v934 = vsel %vm445, %v932, %v933
        %v935 = vsel %vm382, %v922, %v930
        %v936 = vsel %vm382, %v934, 0
        %938 = vmatprep.subr.mxu0 0.0
        %939 = vmatpush1.msra.mxu0 %v680
        %940 = vmatprep.subr.mxu0 0.0
        %941 = vmatpush1.msra.mxu0 %v681
        %942 = vmatprep.subr.mxu0 0.0
        %943 = vmatpush1.msra.mxu0 %v682
        %944 = vmatprep.subr.mxu0 0.0
        %945 = vmatpush1.msra.mxu0 %v683
        %946 = vmatprep.subr.mxu0 0.0
        %947 = vmatpush1.msra.mxu0 %v684
        %948 = vmatprep.subr.mxu0 0.0
        %949 = vmatpush1.msra.mxu0 %v685
        %950 = vmatprep.subr.mxu0 0.0
        %951 = vmatpush1.msra.mxu0 %v686
        %952 = vmatprep.subr.mxu0 0.0
        %953 = vmatpush1.msra.mxu0 %v687
        %954 = vmatprep.subr.mxu0 0.0
        %955 = vmatpush1.msra.mxu0 %v688
        %956 = vmatprep.subr.mxu0 0.0
        %957 = vmatpush1.msra.mxu0 %v689
        %958 = vmatprep.subr.mxu0 0.0
        %959 = vmatpush1.msra.mxu0 %v690
        %960 = vmatprep.subr.mxu0 0.0
        %961 = vmatpush1.msra.mxu0 %v691
        %962 = vmatprep.subr.mxu0 0.0
        %963 = vmatpush1.msra.mxu0 %v692
        %964 = vmatprep.subr.mxu0 0.0
        %965 = vmatpush1.msra.mxu0 %v693
        %966 = vmatprep.subr.mxu0 0.0
        %967 = vmatpush1.msra.mxu0 %v694
        %968 = vmatprep.subr.mxu0 0.0
        %969 = vmatpush1.msra.mxu0 %v695
        %970 = vmatprep.subr.mxu0 0.0
        %971 = vmatpush1.msra.mxu0 %v696
        %972 = vmatprep.subr.mxu0 0.0
        %973 = vmatpush1.msra.mxu0 %v697
        %974 = vmatprep.subr.mxu0 0.0
        %975 = vmatpush1.msra.mxu0 %v698
        %976 = vmatprep.subr.mxu0 0.0
        %977 = vmatpush1.msra.mxu0 %v699
        %978 = vmatprep.subr.mxu0 0.0
        %979 = vmatpush1.msra.mxu0 %v700
        %980 = vmatprep.subr.mxu0 0.0
        %981 = vmatpush1.msra.mxu0 %v701
        %982 = vmatprep.subr.mxu0 0.0
        %983 = vmatpush1.msra.mxu0 %v702
        %984 = vmatprep.subr.mxu0 0.0
        %985 = vmatpush1.msra.mxu0 %v703
        %986 = vmatprep.subr.mxu0 0.0
        %987 = vmatpush1.msra.mxu0 0.0
        %988 = vmatprep.subr.mxu0 0.0
        %989 = vmatpush1.msra.mxu0 0.0
        %990 = vmatprep.subr.mxu0 0.0
        %991 = vmatpush1.msra.mxu0 0.0
        %992 = vmatprep.subr.mxu0 0.0
        %993 = vmatpush1.msra.mxu0 0.0
        %994 = vmatprep.subr.mxu0 0.0
        %995 = vmatpush1.msra.mxu0 0.0
        %996 = vmatprep.subr.mxu0 0.0
        %997 = vmatpush1.msra.mxu0 0.0
        %998 = vmatprep.subr.mxu0 0.0
        %999 = vmatpush1.msra.mxu0 0.0
        %1000 = vmatprep.subr.mxu0 0.0
        %1001 = vmatpush1.msra.mxu0 0.0
        %1002 = vmatprep.mubr.f32.mxu0 %v936
        %1003 = vmatmul.mubr.f32.gmra.mrb[0].mxu0 %v935
        %v1004 = vpop.f32.mrb[0].mxu0
        %v1005 = vadd.f32 0.0, %v1004
        %v1006 = vpop.f32.mrb[0].mxu0
        %1007 = vdwg.mxu0
        %v1008 = vadd.f32 %v918, %v1005
        %v1009 = vmax.f32 %v776, %v1008
        %v1010 = vmax.f32 %v1009, 0.0
        %vm1011 = vcmask 261120
        %1012 = vst.msk [vmem:[#allocation3] sm:$0xff] %vm1011, %v1010
        %v1013 = vld [vmem:[#allocation3] ss:$2 sm:$0xf]
        %s1014 = scalar_lea.vmem [#allocation3], 1
        %v1015 = vld [vmem:[%s1014] ss:$2 sm:$0xf]
        %v1016 = vmax.f32 %v1013, %v1015
        %s1017 = smul.u32 %s426, 4
        %s1018 = scalar_lea.vmem %s380, %s1017
        %vm1019 = vcmask 257024
        %1020 = vst.msk [vmem:[%s1018] sm:$0xf] %vm1019, %v1016
      $region53: #{music_cnn_forward.5} parent=39 // loop_footer
        %s430 = sadd.s32 1, %s426
      $region54: #{music_cnn_forward.5} parent=39 // loop_footer_branch
        %425 = sbr.rel target = $region50
      $region55: #{music_cnn_forward.5} parent=39 // loop_exit
        _
      %s1021 = smul.u32 2, %s21
      %p1022 = scmp.lt.s32.totalorder %s20, 1
      %s1023 = scalar_select %p1022, %s20, 1
      %p1024 = scmp.lt.s32.totalorder %s1021, 3
      %s1025 = scalar_select %p1024, %s1021, 3
      %s1026 = smul.addr %s1023, 4
      %s1027 = sadd.s32 %s1025, %s1026
      %s1028 = smul.addr %s1027, 4
      %s1029 = scalar_lea.vmem %s5, %s1028
      // Predicated region
      $region56: #{music_cnn_forward.5} parent=39 // pred_check
        %p1030 = pneg %p190
      $region57: #{music_cnn_forward.5} parent=39 // pred_check_branch
        %1032 = sbr.rel (%p1030) target = $region59
      $region58: #{music_cnn_forward.5} parent=39 // pred_region
        %s1033 = smul.u32 2, %s21
      $region59: #{music_cnn_forward.5} parent=39 // pred_fallthru
        _
    $region40: #{music_cnn_forward.5} parent=5 // pred_fallthru
      _
    %p1034 = scmp.le.s32.totalorder 2, %s11
    // Predicated region
    $region60: #{music_cnn_forward.5} parent=5 // pred_check
      %p1035 = pneg %p1034
    $region61: #{music_cnn_forward.5} parent=5 // pred_check_branch
      %1037 = sbr.rel (%p1035) target = $region63
    $region62: #{music_cnn_forward.5} parent=5 // pred_region
      %s1038 = ssub.s32 %s11, 2
      // Predicated region
      $region64: #{music_cnn_forward.5} parent=62 // pred_check
        %p1039 = pneg %p196
      $region65: #{music_cnn_forward.5} parent=62 // pred_check_branch
        %1041 = sbr.rel (%p1039) target = $region67
      $region66: #{music_cnn_forward.5} parent=62 // pred_region
        %s1042 = smul.u32 2, %s23
        %p1043 = scmp.lt.s32.totalorder %s22, 1
        %s1044 = scalar_select %p1043, %s22, 1
        %p1045 = scmp.lt.s32.totalorder %s1042, 3
        %s1046 = scalar_select %p1045, %s1042, 3
        %s1047 = smul.addr %s1044, 4
        %s1048 = sadd.s32 %s1046, %s1047
        %s1049 = smul.addr %s1048, 4
        %s1050 = scalar_lea.vmem %s5, %s1049
      $region67: #{music_cnn_forward.5} parent=62 // pred_fallthru
        _
    $region63: #{music_cnn_forward.5} parent=5 // pred_fallthru
      _
  $region6: #{music_cnn_forward.5} parent=0 // loop_footer
    %s15 = sadd.s32 1, %s11
  $region7: #{music_cnn_forward.5} parent=0 // loop_footer_branch
    %10 = sbr.rel target = $region3
  $region8: #{music_cnn_forward.5} parent=0 // loop_exit
    _

// kernel: music_cnn_forward.6
$region0: #{music_cnn_forward.6}
  #allocation0 [shape = 'u32[]', space=smem, size = 0x4, offset = 0x4, fixed_abs, tag = 'smem constant byte address 0x4 - core index']
  #allocation1 [shape = 'u32[144,128]{1,0:T(1,128)}', space=vmem, size = 0x12000, scoped, tag = 'internal scratch']
  #allocation2 [shape = 'f32[4,6,32]{2,1,0:T(8,128)}', space=vmem, size = 0x4000, scoped, tag = 'scratch operand']
  #allocation3 [shape = 'f32[4,32]{1,0:T(4,128)}', space=vmem, size = 0x800, scoped, tag = 'scratch operand']
  %s0 = inlined_call_operand.vmem [shape: f32[2,4,4,32], index: 0, kind: input, shape index: {}, may-alias: {0,1,2}]
  %s1 = inlined_call_operand.vmem [shape: f32[2,4,4,32], index: 1, kind: input, shape index: {}, may-alias: {0,1,2}]
  %s2 = inlined_call_operand.vmem [shape: f32[2,4,4,32], index: 2, kind: input, shape index: {}, may-alias: {0,1,2}]
  %s3 = inlined_call_operand.vmem [shape: f32[3,96,32], index: 3, kind: input, shape index: {}]
  %s4 = inlined_call_operand.vmem [shape: f32[1,32], index: 4, kind: input, shape index: {}]
  %s5 = inlined_call_operand.vmem [shape: f32[2,2,2,32], index: 5, kind: output, shape index: {}]
  %s6 = sld [smem:[#allocation0]]
  $region61: #{music_cnn_forward.6} parent=0
    _
  %s8 = ssub.s32 1, %s6
  %s9 = scalar_select 0, %s8, %s6
  loop: start=0, step=1, limit=6
  $region2: #{music_cnn_forward.6} parent=0 // loop_pre_header
    _
  $region3: #{music_cnn_forward.6} parent=0 // loop_header
    %s11 = sphi 0, %s15
    %p12 = scmp.ge.s32.totalorder %s11, 6
    %s18 = sphi 0, %s30
    %s19 = sphi 0, %s26
    %s20 = sphi 0, %s18
    %s21 = sphi 0, %s19
    %s22 = sphi 0, %s20
    %s23 = sphi 0, %s21
    %s43 = sphi 0, %s45
    %s46 = sphi 0, %s43
    %s47 = sphi 0, %s46
    %s63 = sphi 0, %s47
    %s71 = sphi 0, %s73
    %s74 = sphi 0, %s71
    %s75 = sphi 0, %s74
    %s91 = sphi 0, %s75
    %s107 = sphi 0, %s109
    %s110 = sphi 0, %s107
    %s111 = sphi 0, %s110
    %s127 = sphi 0, %s111
    %s131 = sphi 0, %s131
    %s133 = sphi 0, %s131
    %s134 = sphi 0, %s133
    %s148 = sphi 0, %s134
    %s152 = sphi 0, %s152
    %s154 = sphi 0, %s152
    %s155 = sphi 0, %s154
    %s169 = sphi 0, %s155
    %s177 = sphi 0, %s179
    %s180 = sphi 0, %s177
    %s181 = sphi 0, %s180
    %s197 = sphi 0, %s181
  $region4: #{music_cnn_forward.6} parent=0 // loop_header_branch
    %14 = sbr.rel (%p12) target = $region8
  $region5: #{music_cnn_forward.6} parent=0 // loop_body
    %s16 = ssub.s32 %s11, 1
    %s17 = ssub.s32 %s11, 2
    %s24 = sadd.s32 1, %s19
    %p25 = scmp.ge.s32.totalorder %s24, 2
    %s26 = scalar_select %p25, 0, %s24
    %s27 = sadd.s32 1, %s18
    %s28 = scalar_select %p25, %s27, %s18
    %p29 = scmp.ge.s32.totalorder %s28, 2
    %s30 = scalar_select %p29, 0, %s28
    %s31 = smul.u32 %s19, 2
    %s32 = ssub.s32 %s31, 1
    %p33 = scmp.gt.s32.totalorder %s32, 0
    %s34 = scalar_select %p33, %s32, 0
    %s35 = smul.u32 %s26, 2
    %s36 = ssub.s32 %s35, 1
    %p37 = scmp.gt.s32.totalorder %s36, 0
    %s38 = scalar_select %p37, %s36, 0
    %s39 = ssub.s32 %s18, %s30
    %s40 = ssub.s32 %s34, %s38
    %s41 = sor.u32 %s39, %s40
    %p42 = scmp.eq.s32.totalorder %s41, 0
    %s44 = sadd.s32 %s43, 1
    %s45 = scalar_select %p42, %s43, %s44
    %p48 = pneg %p42
    %p49 = scmp.eq.s32.totalorder %s11, 3
    %p50 = por %p48, %p49
    %p51 = scmp.ne.s32.totalorder %s43, %s46
    %p52 = scmp.eq.s32.totalorder %s11, 0
    %p53 = por %p51, %p52
    %p54 = scmp.ne.s32.totalorder %s43, %s46
    %p55 = scmp.eq.s32.totalorder %s16, 3
    %p56 = por %p54, %p55
    %p57 = scmp.ne.s32.totalorder %s46, %s47
    %p58 = scmp.eq.s32.totalorder %s16, 0
    %p59 = por %p57, %p58
    %p60 = scmp.ne.s32.totalorder %s46, %s47
    %p61 = scmp.eq.s32.totalorder %s17, 3
    %p62 = por %p60, %p61
    %p64 = scmp.ne.s32.totalorder %s47, %s63
    %p65 = scmp.eq.s32.totalorder %s17, 0
    %p66 = por %p64, %p65
    %s67 = ssub.s32 %s18, %s30
    %s68 = ssub.s32 %s19, %s26
    %s69 = sor.u32 %s67, %s68
    %p70 = scmp.eq.s32.totalorder %s69, 0
    %s72 = sadd.s32 %s71, 1
    %s73 = scalar_select %p70, %s71, %s72
    %p76 = pneg %p70
    %p77 = scmp.eq.s32.totalorder %s11, 3
    %p78 = por %p76, %p77
    %p79 = scmp.ne.s32.totalorder %s71, %s74
    %p80 = scmp.eq.s32.totalorder %s11, 0
    %p81 = por %p79, %p80
    %p82 = scmp.ne.s32.totalorder %s71, %s74
    %p83 = scmp.eq.s32.totalorder %s16, 3
    %p84 = por %p82, %p83
    %p85 = scmp.ne.s32.totalorder %s74, %s75
    %p86 = scmp.eq.s32.totalorder %s16, 0
    %p87 = por %p85, %p86
    %p88 = scmp.ne.s32.totalorder %s74, %s75
    %p89 = scmp.eq.s32.totalorder %s17, 3
    %p90 = por %p88, %p89
    %p92 = scmp.ne.s32.totalorder %s75, %s91
    %p93 = scmp.eq.s32.totalorder %s17, 0
    %p94 = por %p92, %p93
    %s95 = sadd.s32 %s19, 1
    %s96 = smul.u32 %s95, 2
    %p97 = scmp.lt.s32.totalorder %s96, 3
    %s98 = scalar_select %p97, %s96, 3
    %s99 = sadd.s32 %s26, 1
    %s100 = smul.u32 %s99, 2
    %p101 = scmp.lt.s32.totalorder %s100, 3
    %s102 = scalar_select %p101, %s100, 3
    %s103 = ssub.s32 %s18, %s30
    %s104 = ssub.s32 %s98, %s102
    %s105 = sor.u32 %s103, %s104
    %p106 = scmp.eq.s32.totalorder %s105, 0
    %s108 = sadd.s32 %s107, 1
    %s109 = scalar_select %p106, %s107, %s108
    %p112 = pneg %p106
    %p113 = scmp.eq.s32.totalorder %s11, 3
    %p114 = por %p112, %p113
    %p115 = scmp.ne.s32.totalorder %s107, %s110
    %p116 = scmp.eq.s32.totalorder %s11, 0
    %p117 = por %p115, %p116
    %p118 = scmp.ne.s32.totalorder %s107, %s110
    %p119 = scmp.eq.s32.totalorder %s16, 3
    %p120 = por %p118, %p119
    %p121 = scmp.ne.s32.totalorder %s110, %s111
    %p122 = scmp.eq.s32.totalorder %s16, 0
    %p123 = por %p121, %p122
    %p124 = scmp.ne.s32.totalorder %s110, %s111
    %p125 = scmp.eq.s32.totalorder %s17, 3
    %p126 = por %p124, %p125
    %p128 = scmp.ne.s32.totalorder %s111, %s127
    %p129 = scmp.eq.s32.totalorder %s17, 0
    %p130 = por %p128, %p129
    %s132 = sadd.s32 %s131, 1
    %p135 = scmp.eq.s32.totalorder %s11, 3
    %p136 = scmp.ne.s32.totalorder %s131, %s133
    %p137 = scmp.eq.s32.totalorder %s11, 0
    %p138 = por %p136, %p137
    %p139 = scmp.ne.s32.totalorder %s131, %s133
    %p140 = scmp.eq.s32.totalorder %s16, 3
    %p141 = por %p139, %p140
    %p142 = scmp.ne.s32.totalorder %s133, %s134
    %p143 = scmp.eq.s32.totalorder %s16, 0
    %p144 = por %p142, %p143
    %p145 = scmp.ne.s32.totalorder %s133, %s134
    %p146 = scmp.eq.s32.totalorder %s17, 3
    %p147 = por %p145, %p146
    %p149 = scmp.ne.s32.totalorder %s134, %s148
    %p150 = scmp.eq.s32.totalorder %s17, 0
    %p151 = por %p149, %p150
    %s153 = sadd.s32 %s152, 1
    %p156 = scmp.eq.s32.totalorder %s11, 3
    %p157 = scmp.ne.s32.totalorder %s152, %s154
    %p158 = scmp.eq.s32.totalorder %s11, 0
    %p159 = por %p157, %p158
    %p160 = scmp.ne.s32.totalorder %s152, %s154
    %p161 = scmp.eq.s32.totalorder %s16, 3
    %p162 = por %p160, %p161
    %p163 = scmp.ne.s32.totalorder %s154, %s155
    %p164 = scmp.eq.s32.totalorder %s16, 0
    %p165 = por %p163, %p164
    %p166 = scmp.ne.s32.totalorder %s154, %s155
    %p167 = scmp.eq.s32.totalorder %s17, 3
    %p168 = por %p166, %p167
    %p170 = scmp.ne.s32.totalorder %s155, %s169
    %p171 = scmp.eq.s32.totalorder %s17, 0
    %p172 = por %p170, %p171
    %s173 = ssub.s32 %s18, %s30
    %s174 = ssub.s32 %s19, %s26
    %s175 = sor.u32 %s173, %s174
    %p176 = scmp.eq.s32.totalorder %s175, 0
    %s178 = sadd.s32 %s177, 1
    %s179 = scalar_select %p176, %s177, %s178
    %p182 = pneg %p176
    %p183 = scmp.eq.s32.totalorder %s11, 3
    %p184 = por %p182, %p183
    %p185 = scmp.ne.s32.totalorder %s177, %s180
    %p186 = scmp.eq.s32.totalorder %s11, 0
    %p187 = por %p185, %p186
    %p188 = scmp.ne.s32.totalorder %s177, %s180
    %p189 = scmp.eq.s32.totalorder %s16, 3
    %p190 = por %p188, %p189
    %p191 = scmp.ne.s32.totalorder %s180, %s181
    %p192 = scmp.eq.s32.totalorder %s16, 0
    %p193 = por %p191, %p192
    %p194 = scmp.ne.s32.totalorder %s180, %s181
    %p195 = scmp.eq.s32.totalorder %s17, 3
    %p196 = por %p194, %p195
    %p198 = scmp.ne.s32.totalorder %s181, %s197
    %p199 = scmp.eq.s32.totalorder %s17, 0
    %p200 = por %p198, %p199
    %p201 = scmp.le.s32.totalorder 1, %s11
    %p202 = scmp.lt.s32.totalorder %s11, 5
    %p203 = pnand %p201, %p202
    %p204 = pneg %p203
    // Predicated region
    $region9: #{music_cnn_forward.6} parent=5 // pred_check
      _
    $region10: #{music_cnn_forward.6} parent=5 // pred_check_branch
      %206 = sbr.rel (%p203) target = $region12
    $region11: #{music_cnn_forward.6} parent=5 // pred_region
      %s207 = ssub.s32 %s11, 1
      // Predicated region
      $region13: #{music_cnn_forward.6} parent=11 // pred_check
        %p208 = pneg %p144
      $region14: #{music_cnn_forward.6} parent=11 // pred_check_branch
        %210 = sbr.rel (%p208) target = $region16
      $region15: #{music_cnn_forward.6} parent=11 // pred_region
        _
      $region16: #{music_cnn_forward.6} parent=11 // pred_fallthru
        _
      // Predicated region
      $region17: #{music_cnn_forward.6} parent=11 // pred_check
        %p211 = pneg %p165
      $region18: #{music_cnn_forward.6} parent=11 // pred_check_branch
        %213 = sbr.rel (%p211) target = $region20
      $region19: #{music_cnn_forward.6} parent=11 // pred_region
        _
      $region20: #{music_cnn_forward.6} parent=11 // pred_fallthru
        _
    $region12: #{music_cnn_forward.6} parent=5 // pred_fallthru
      _
    %p214 = scmp.lt.s32.totalorder %s11, 4
    // Predicated region
    $region21: #{music_cnn_forward.6} parent=5 // pred_check
      %p215 = pneg %p214
    $region22: #{music_cnn_forward.6} parent=5 // pred_check_branch
      %217 = sbr.rel (%p215) target = $region24
    $region23: #{music_cnn_forward.6} parent=5 // pred_region
      // Predicated region
      $region25: #{music_cnn_forward.6} parent=23 // pred_check
        %p218 = pneg %p53
      $region26: #{music_cnn_forward.6} parent=23 // pred_check_branch
        %220 = sbr.rel (%p218) target = $region28
      $region27: #{music_cnn_forward.6} parent=23 // pred_region
        %s221 = smul.u32 %s19, 2
        %s222 = ssub.s32 %s221, 1
        %p223 = scmp.gt.s32.totalorder %s222, 0
        %s224 = scalar_select %p223, %s222, 0
        %p225 = scmp.lt.s32.totalorder %s18, 1
        %s226 = scalar_select %p225, %s18, 1
        %p227 = scmp.lt.s32.totalorder %s224, 3
        %s228 = scalar_select %p227, %s224, 3
        %s229 = smul.addr %s226, 4
        %s230 = sadd.s32 %s228, %s229
        %s231 = smul.addr %s230, 4
        %s232 = scalar_lea.vmem %s0, %s231
        %s233 = smul.u32 %s19, 2
        %s234 = ssub.s32 %s233, 1
        %p235 = scmp.gt.s32.totalorder %s234, 0
        %s236 = scalar_select %p235, %s234, 0
      $region28: #{music_cnn_forward.6} parent=23 // pred_fallthru
        _
      // Predicated region
      $region29: #{music_cnn_forward.6} parent=23 // pred_check
        %p237 = pneg %p81
      $region30: #{music_cnn_forward.6} parent=23 // pred_check_branch
        %239 = sbr.rel (%p237) target = $region32
      $region31: #{music_cnn_forward.6} parent=23 // pred_region
        %s240 = smul.u32 2, %s19
        %p241 = scmp.lt.s32.totalorder %s18, 1
        %s242 = scalar_select %p241, %s18, 1
        %p243 = scmp.lt.s32.totalorder %s240, 3
        %s244 = scalar_select %p243, %s240, 3
        %s245 = smul.addr %s242, 4
        %s246 = sadd.s32 %s244, %s245
        %s247 = smul.addr %s246, 4
        %s248 = scalar_lea.vmem %s1, %s247
        %s249 = smul.u32 2, %s19
      $region32: #{music_cnn_forward.6} parent=23 // pred_fallthru
        _
      // Predicated region
      $region33: #{music_cnn_forward.6} parent=23 // pred_check
        %p250 = pneg %p117
      $region34: #{music_cnn_forward.6} parent=23 // pred_check_branch
        %252 = sbr.rel (%p250) target = $region36
      $region35: #{music_cnn_forward.6} parent=23 // pred_region
        %s253 = sadd.s32 %s19, 1
        %s254 = smul.u32 %s253, 2
        %p255 = scmp.lt.s32.totalorder %s254, 3
        %s256 = scalar_select %p255, %s254, 3
        %p257 = scmp.lt.s32.totalorder %s18, 1
        %s258 = scalar_select %p257, %s18, 1
        %p259 = scmp.lt.s32.totalorder %s256, 3
        %s260 = scalar_select %p259, %s256, 3
        %s261 = smul.addr %s258, 4
        %s262 = sadd.s32 %s260, %s261
        %s263 = smul.addr %s262, 4
        %s264 = scalar_lea.vmem %s2, %s263
        %s265 = sadd.s32 %s19, 1
        %s266 = smul.u32 %s265, 2
        %p267 = scmp.lt.s32.totalorder %s266, 3
        %s268 = scalar_select %p267, %s266, 3
      $region36: #{music_cnn_forward.6} parent=23 // pred_fallthru
        _
    $region24: #{music_cnn_forward.6} parent=5 // pred_fallthru
      _
    %p269 = scmp.le.s32.totalorder 1, %s11
    %p270 = scmp.lt.s32.totalorder %s11, 5
    %p271 = pnand %p269, %p270
    %p272 = pneg %p271
    // Predicated region
    $region37: #{music_cnn_forward.6} parent=5 // pred_check
      _
    $region38: #{music_cnn_forward.6} parent=5 // pred_check_branch
      %274 = sbr.rel (%p271) target = $region40
    $region39: #{music_cnn_forward.6} parent=5 // pred_region
      %s275 = ssub.s32 %s11, 1
      %s276 = smul.u32 %s21, 2
      %s277 = ssub.s32 %s276, 1
      %p278 = scmp.gt.s32.totalorder %s277, 0
      %s279 = scalar_select %p278, %s277, 0
      %p280 = scmp.lt.s32.totalorder %s20, 1
      %s281 = scalar_select %p280, %s20, 1
      %p282 = scmp.lt.s32.totalorder %s279, 3
      %s283 = scalar_select %p282, %s279, 3
      %s284 = smul.addr %s281, 4
      %s285 = sadd.s32 %s283, %s284
      %s286 = smul.addr %s285, 4
      %s287 = scalar_lea.vmem %s0, %s286
      %p288 = pneg %p59
      %p289 = pneg %p56
      %s290 = smul.u32 2, %s21
      %p291 = scmp.lt.s32.totalorder %s20, 1
      %s292 = scalar_select %p291, %s20, 1
      %p293 = scmp.lt.s32.totalorder %s290, 3
      %s294 = scalar_select %p293, %s290, 3
      %s295 = smul.addr %s292, 4
      %s296 = sadd.s32 %s294, %s295
      %s297 = smul.addr %s296, 4
      %s298 = scalar_lea.vmem %s1, %s297
      %p299 = pneg %p87
      %p300 = pneg %p84
      %s301 = sadd.s32 %s21, 1
      %s302 = smul.u32 %s301, 2
      %p303 = scmp.lt.s32.totalorder %s302, 3
      %s304 = scalar_select %p303, %s302, 3
      %p305 = scmp.lt.s32.totalorder %s20, 1
      %s306 = scalar_select %p305, %s20, 1
      %p307 = scmp.lt.s32.totalorder %s304, 3
      %s308 = scalar_select %p307, %s304, 3
      %s309 = smul.addr %s306, 4
      %s310 = sadd.s32 %s308, %s309
      %s311 = smul.addr %s310, 4
      %s312 = scalar_lea.vmem %s2, %s311
      %p313 = pneg %p123
      %p314 = pneg %p120
      %p315 = pneg %p144
      %p316 = pneg %p141
      %p317 = pneg %p165
      %p318 = pneg %p162
      %p319 = pneg %p193
      %p320 = pneg %p190
      %p321 = scmp.lt.s32.totalorder %s20, 1
      %s322 = scalar_select %p321, %s20, 1
      %p323 = scmp.lt.s32.totalorder %s21, 1
      %s324 = scalar_select %p323, %s21, 1
      %s325 = smul.addr %s322, 2
      %s326 = sadd.s32 %s324, %s325
      %s327 = smul.addr %s326, 2
      %s328 = scalar_lea.vmem %s5, %s327
      %s329 = smul.u32 %s21, 2
      %s330 = ssub.s32 %s329, 1
      %p331 = scmp.gt.s32.totalorder %s330, 0
      %s332 = scalar_select %p331, %s330, 0
      %p333 = scmp.lt.s32.totalorder %s20, 1
      %s334 = scalar_select %p333, %s20, 1
      %p335 = scmp.lt.s32.totalorder %s332, 3
      %s336 = scalar_select %p335, %s332, 3
      %s337 = smul.addr %s334, 4
      %s338 = sadd.s32 %s336, %s337
      %s339 = smul.addr %s338, 4
      %s340 = scalar_lea.vmem %s0, %s339
      %s341 = smul.u32 %s21, 2
      %s342 = ssub.s32 %s341, 1
      %p343 = scmp.gt.s32.totalorder %s342, 0
      %s344 = scalar_select %p343, %s342, 0
      %s345 = smul.u32 2, %s21
      %p346 = scmp.lt.s32.totalorder %s20, 1
      %s347 = scalar_select %p346, %s20, 1
      %p348 = scmp.lt.s32.totalorder %s345, 3
      %s349 = scalar_select %p348, %s345, 3
      %s350 = smul.addr %s347, 4
      %s351 = sadd.s32 %s349, %s350
      %s352 = smul.addr %s351, 4
      %s353 = scalar_lea.vmem %s1, %s352
      %s354 = smul.u32 2, %s21
      %s355 = sadd.s32 %s21, 1
      %s356 = smul.u32 %s355, 2
      %p357 = scmp.lt.s32.totalorder %s356, 3
      %s358 = scalar_select %p357, %s356, 3
      %p359 = scmp.lt.s32.totalorder %s20, 1
      %s360 = scalar_select %p359, %s20, 1
      %p361 = scmp.lt.s32.totalorder %s358, 3
      %s362 = scalar_select %p361, %s358, 3
      %s363 = smul.addr %s360, 4
      %s364 = sadd.s32 %s362, %s363
      %s365 = smul.addr %s364, 4
      %s366 = scalar_lea.vmem %s2, %s365
      %s367 = sadd.s32 %s21, 1
      %s368 = smul.u32 %s367, 2
      %p369 = scmp.lt.s32.totalorder %s368, 3
      %s370 = scalar_select %p369, %s368, 3
      %p371 = scmp.lt.s32.totalorder %s20, 1
      %s372 = scalar_select %p371, %s20, 1
      %p373 = scmp.lt.s32.totalorder %s21, 1
      %s374 = scalar_select %p373, %s21, 1
      %s375 = smul.addr %s372, 2
      %s376 = sadd.s32 %s374, %s375
      %s377 = smul.addr %s376, 2
      %s378 = scalar_lea.vmem %s5, %s377
      %vm379 = vcmask 259072
      %380 = vst.msk [vmem:[#allocation2] sm:$0x3f] %vm379, 0.0
      %381 = vst.msk [vmem:[#allocation2 + $0x8] sm:$0x3f] %vm379, 0.0
      %382 = vst.msk [vmem:[#allocation2 + $0x10] sm:$0x3f] %vm379, 0.0
      %383 = vst.msk [vmem:[#allocation2 + $0x18] sm:$0x3f] %vm379, 0.0
      %v384 = vld [vmem:[%s353] sm:$0xf]
      %v385 = vld [vmem:[%s353 + $0x4] sm:$0xf]
      %s386 = scalar_lea.vmem [#allocation2], 8
      %vm387 = vcmask 257024
      %388 = vst.msk [vmem:[%s386 + $0x1] sm:$0xf] %vm387, %v384
      %389 = vst.msk [vmem:[%s386 + $0x9] sm:$0xf] %vm387, %v385
      %p390 = scmp.gt.s32.totalorder %s21, 0
      // Predicated region
      $region41: #{music_cnn_forward.6} parent=39 // pred_check
        %p391 = pneg %p390
      $region42: #{music_cnn_forward.6} parent=39 // pred_check_branch
        %393 = sbr.rel (%p391) target = $region44
      $region43: #{music_cnn_forward.6} parent=39 // pred_region
        %v394 = vld [vmem:[%s340] sm:$0xf]
        %395 = vst.msk [vmem:[#allocation2 + $0x1] sm:$0xf] %vm387, %v394
      $region44: #{music_cnn_forward.6} parent=39 // pred_fallthru
        _
      %p396 = scmp.lt.s32.totalorder %s21, 1
      // Predicated region
      $region45: #{music_cnn_forward.6} parent=39 // pred_check
        %p397 = pneg %p396
      $region46: #{music_cnn_forward.6} parent=39 // pred_check_branch
        %399 = sbr.rel (%p397) target = $region48
      $region47: #{music_cnn_forward.6} parent=39 // pred_region
        %v400 = vld [vmem:[%s366] sm:$0xf]
        %s401 = scalar_lea.vmem [#allocation2], 24
        %402 = vst.msk [vmem:[%s401 + $0x1] sm:$0xf] %vm387, %v400
      $region48: #{music_cnn_forward.6} parent=39 // pred_fallthru
        _
      %v403 = vld [vmem:[%s4] sm:$0x1]
      %v405 = vlaneseq
      %v406 = vshrl.u32 %v405, 7
      %v407 = vsub.s32 0, %v406
      %v408 = vrot.slane %v403, %v407
      %v410 = vld [vmem:[#allocation2] sm:$0x3f]
      %v412 = vrot.slane %v410, 1
      %413 = vrot.lane.b32.xlu0 %v412, 32
      %v414 = vpop.permute.xlu0 %413
      %v416 = vrot.slane %v410, 2
      %417 = vrot.lane.b32.xlu0 %v416, 64
      %v418 = vpop.permute.xlu0 %417
      %vm420 = vcmask 261120
      %v421 = vsel %vm420, %v410, %v414
      %vm422 = vcmask 523264
      %v423 = vsel %vm422, %v421, %v418
      %v424 = vld [vmem:[%s3] sm:$0xff]
      %v425 = vld [vmem:[%s3 + $0x8] sm:$0xff]
      %v426 = vld [vmem:[%s3 + $0x10] sm:$0xff]
      %v427 = vld [vmem:[%s3 + $0x18] sm:$0xff]
      %v428 = vld [vmem:[%s3 + $0x20] sm:$0xff]
      %v429 = vld [vmem:[%s3 + $0x28] sm:$0xff]
      %v430 = vld [vmem:[%s3 + $0x30] sm:$0xff]
      %v431 = vld [vmem:[%s3 + $0x38] sm:$0xff]
      %v432 = vld [vmem:[%s3 + $0x40] sm:$0xff]
      %v433 = vld [vmem:[%s3 + $0x48] sm:$0xff]
      %v434 = vld [vmem:[%s3 + $0x50] sm:$0xff]
      %v435 = vld [vmem:[%s3 + $0x58] sm:$0xff]
      %vm436 = vcmask 785408
      %v438 = vsel %vm436, %v423, 0
      %440 = vmatprep.subr.mxu0 0.0
      %441 = vmatpush1.msra.mxu0 %v424
      %442 = vmatprep.subr.mxu0 0.0
      %443 = vmatpush1.msra.mxu0 %v425
      %444 = vmatprep.subr.mxu0 0.0
      %445 = vmatpush1.msra.mxu0 %v426
      %446 = vmatprep.subr.mxu0 0.0
      %447 = vmatpush1.msra.mxu0 %v427
      %448 = vmatprep.subr.mxu0 0.0
      %449 = vmatpush1.msra.mxu0 %v428
      %450 = vmatprep.subr.mxu0 0.0
      %451 = vmatpush1.msra.mxu0 %v429
      %452 = vmatprep.subr.mxu0 0.0
      %453 = vmatpush1.msra.mxu0 %v430
      %454 = vmatprep.subr.mxu0 0.0
      %455 = vmatpush1.msra.mxu0 %v431
      %456 = vmatprep.subr.mxu0 0.0
      %457 = vmatpush1.msra.mxu0 %v432
      %458 = vmatprep.subr.mxu0 0.0
      %459 = vmatpush1.msra.mxu0 %v433
      %460 = vmatprep.subr.mxu0 0.0
      %461 = vmatpush1.msra.mxu0 %v434
      %462 = vmatprep.subr.mxu0 0.0
      %463 = vmatpush1.msra.mxu0 %v435
      %464 = vmatprep.subr.mxu0 0.0
      %465 = vmatpush1.msra.mxu0 0.0
      %466 = vmatprep.subr.mxu0 0.0
      %467 = vmatpush1.msra.mxu0 0.0
      %468 = vmatprep.subr.mxu0 0.0
      %469 = vmatpush1.msra.mxu0 0.0
      %470 = vmatprep.subr.mxu0 0.0
      %471 = vmatpush1.msra.mxu0 0.0
      %472 = vmatprep.subr.mxu0 0.0
      %473 = vmatpush1.msra.mxu0 0.0
      %474 = vmatprep.subr.mxu0 0.0
      %475 = vmatpush1.msra.mxu0 0.0
      %476 = vmatprep.subr.mxu0 0.0
      %477 = vmatpush1.msra.mxu0 0.0
      %478 = vmatprep.subr.mxu0 0.0
      %479 = vmatpush1.msra.mxu0 0.0
      %480 = vmatprep.subr.mxu0 0.0
      %481 = vmatpush1.msra.mxu0 0.0
      %482 = vmatprep.subr.mxu0 0.0
      %483 = vmatpush1.msra.mxu0 0.0
      %484 = vmatprep.subr.mxu0 0.0
      %485 = vmatpush1.msra.mxu0 0.0
      %486 = vmatprep.subr.mxu0 0.0
      %487 = vmatpush1.msra.mxu0 0.0
      %488 = vmatprep.subr.mxu0 0.0
      %489 = vmatpush1.msra.mxu0 0.0
      %490 = vmatprep.subr.mxu0 0.0
      %491 = vmatpush1.msra.mxu0 0.0
      %492 = vmatprep.subr.mxu0 0.0
      %493 = vmatpush1.msra.mxu0 0.0
      %494 = vmatprep.subr.mxu0 0.0
      %495 = vmatpush1.msra.mxu0 0.0
      %496 = vmatprep.subr.mxu0 0.0
      %497 = vmatpush1.msra.mxu0 0.0
      %498 = vmatprep.subr.mxu0 0.0
      %499 = vmatpush1.msra.mxu0 0.0
      %500 = vmatprep.subr.mxu0 0.0
      %501 = vmatpush1.msra.mxu0 0.0
      %502 = vmatprep.subr.mxu0 0.0
      %503 = vmatpush1.msra.mxu0 0.0
      %504 = vmatprep.mubr.f32.mxu0 0.0
      %505 = vmatmul.mubr.f32.gmra.mrb[0].mxu0 %v438
      %v506 = vpop.f32.mrb[0].mxu0
      %v507 = vadd.f32 0.0, %v506
      %v508 = vpop.f32.mrb[0].mxu0
      %509 = vdwg.mxu0
      %v510 = vadd.f32 %v408, %v507
      %v511 = vld [vmem:[%s386] sm:$0x3f]
      %v513 = vrot.slane %v511, 1
      %514 = vrot.lane.b32.xlu0 %v513, 32
      %v515 = vpop.permute.xlu0 %514
      %v517 = vrot.slane %v511, 2
      %518 = vrot.lane.b32.xlu0 %v517, 64
      %v519 = vpop.permute.xlu0 %518
      %v521 = vsel %vm420, %v511, %v515
      %v522 = vsel %vm422, %v521, %v519
      %s523 = scalar_lea.vmem %s3, 96
      %v524 = vld [vmem:[%s523] sm:$0xff]
      %v525 = vld [vmem:[%s523 + $0x8] sm:$0xff]
      %v526 = vld [vmem:[%s523 + $0x10] sm:$0xff]
      %v527 = vld [vmem:[%s523 + $0x18] sm:$0xff]
      %v528 = vld [vmem:[%s523 + $0x20] sm:$0xff]
      %v529 = vld [vmem:[%s523 + $0x28] sm:$0xff]
      %v530 = vld [vmem:[%s523 + $0x30] sm:$0xff]
      %v531 = vld [vmem:[%s523 + $0x38] sm:$0xff]
      %v532 = vld [vmem:[%s523 + $0x40] sm:$0xff]
      %v533 = vld [vmem:[%s523 + $0x48] sm:$0xff]
      %v534 = vld [vmem:[%s523 + $0x50] sm:$0xff]
      %v535 = vld [vmem:[%s523 + $0x58] sm:$0xff]
      %v537 = vsel %vm436, %v522, 0
      %539 = vmatprep.subr.mxu0 0.0
      %540 = vmatpush1.msra.mxu0 %v524
      %541 = vmatprep.subr.mxu0 0.0
      %542 = vmatpush1.msra.mxu0 %v525
      %543 = vmatprep.subr.mxu0 0.0
      %544 = vmatpush1.msra.mxu0 %v526
      %545 = vmatprep.subr.mxu0 0.0
      %546 = vmatpush1.msra.mxu0 %v527
      %547 = vmatprep.subr.mxu0 0.0
      %548 = vmatpush1.msra.mxu0 %v528
      %549 = vmatprep.subr.mxu0 0.0
      %550 = vmatpush1.msra.mxu0 %v529
      %551 = vmatprep.subr.mxu0 0.0
      %552 = vmatpush1.msra.mxu0 %v530
      %553 = vmatprep.subr.mxu0 0.0
      %554 = vmatpush1.msra.mxu0 %v531
      %555 = vmatprep.subr.mxu0 0.0
      %556 = vmatpush1.msra.mxu0 %v532
      %557 = vmatprep.subr.mxu0 0.0
      %558 = vmatpush1.msra.mxu0 %v533
      %559 = vmatprep.subr.mxu0 0.0
      %560 = vmatpush1.msra.mxu0 %v534
      %561 = vmatprep.subr.mxu0 0.0
      %562 = vmatpush1.msra.mxu0 %v535
      %563 = vmatprep.subr.mxu0 0.0
      %564 = vmatpush1.msra.mxu0 0.0
      %565 = vmatprep.subr.mxu0 0.0
      %566 = vmatpush1.msra.mxu0 0.0
      %567 = vmatprep.subr.mxu0 0.0
      %568 = vmatpush1.msra.mxu0 0.0
      %569 = vmatprep.subr.mxu0 0.0
      %570 = vmatpush1.msra.mxu0 0.0
      %571 = vmatprep.subr.mxu0 0.0
      %572 = vmatpush1.msra.mxu0 0.0
      %573 = vmatprep.subr.mxu0 0.0
      %574 = vmatpush1.msra.mxu0 0.0
      %575 = vmatprep.subr.mxu0 0.0
      %576 = vmatpush1.msra.mxu0 0.0
      %577 = vmatprep.subr.mxu0 0.0
      %578 = vmatpush1.msra.mxu0 0.0
      %579 = vmatprep.subr.mxu0 0.0
      %580 = vmatpush1.msra.mxu0 0.0
      %581 = vmatprep.subr.mxu0 0.0
      %582 = vmatpush1.msra.mxu0 0.0
      %583 = vmatprep.subr.mxu0 0.0
      %584 = vmatpush1.msra.mxu0 0.0
      %585 = vmatprep.subr.mxu0 0.0
      %586 = vmatpush1.msra.mxu0 0.0
      %587 = vmatprep.subr.mxu0 0.0
      %588 = vmatpush1.msra.mxu0 0.0
      %589 = vmatprep.subr.mxu0 0.0
      %590 = vmatpush1.msra.mxu0 0.0
      %591 = vmatprep.subr.mxu0 0.0
      %592 = vmatpush1.msra.mxu0 0.0
      %593 = vmatprep.subr.mxu0 0.0
      %594 = vmatpush1.msra.mxu0 0.0
      %595 = vmatprep.subr.mxu0 0.0
      %596 = vmatpush1.msra.mxu0 0.0
      %597 = vmatprep.subr.mxu0 0.0
      %598 = vmatpush1.msra.mxu0 0.0
      %599 = vmatprep.subr.mxu0 0.0
      %600 = vmatpush1.msra.mxu0 0.0
      %601 = vmatprep.subr.mxu0 0.0
      %602 = vmatpush1.msra.mxu0 0.0
      %603 = vmatprep.mubr.f32.mxu0 0.0
      %604 = vmatmul.mubr.f32.gmra.mrb[0].mxu0 %v537
      %v605 = vpop.f32.mrb[0].mxu0
      %v606 = vadd.f32 0.0, %v605
      %v607 = vpop.f32.mrb[0].mxu0
      %608 = vdwg.mxu0
      %v609 = vadd.f32 %v510, %v606
      %s610 = scalar_lea.vmem [#allocation2], 16
      %v611 = vld [vmem:[%s610] sm:$0x3f]
      %v613 = vrot.slane %v611, 1
      %614 = vrot.lane.b32.xlu0 %v613, 32
      %v615 = vpop.permute.xlu0 %614
      %v617 = vrot.slane %v611, 2
      %618 = vrot.lane.b32.xlu0 %v617, 64
      %v619 = vpop.permute.xlu0 %618
      %v621 = vsel %vm420, %v611, %v615
      %v622 = vsel %vm422, %v621, %v619
      %s623 = scalar_lea.vmem %s3, 192
      %v624 = vld [vmem:[%s623] sm:$0xff]
      %v625 = vld [vmem:[%s623 + $0x8] sm:$0xff]
      %v626 = vld [vmem:[%s623 + $0x10] sm:$0xff]
      %v627 = vld [vmem:[%s623 + $0x18] sm:$0xff]
      %v628 = vld [vmem:[%s623 + $0x20] sm:$0xff]
      %v629 = vld [vmem:[%s623 + $0x28] sm:$0xff]
      %v630 = vld [vmem:[%s623 + $0x30] sm:$0xff]
      %v631 = vld [vmem:[%s623 + $0x38] sm:$0xff]
      %v632 = vld [vmem:[%s623 + $0x40] sm:$0xff]
      %v633 = vld [vmem:[%s623 + $0x48] sm:$0xff]
      %v634 = vld [vmem:[%s623 + $0x50] sm:$0xff]
      %v635 = vld [vmem:[%s623 + $0x58] sm:$0xff]
      %v637 = vsel %vm436, %v622, 0
      %639 = vmatprep.subr.mxu0 0.0
      %640 = vmatpush1.msra.mxu0 %v624
      %641 = vmatprep.subr.mxu0 0.0
      %642 = vmatpush1.msra.mxu0 %v625
      %643 = vmatprep.subr.mxu0 0.0
      %644 = vmatpush1.msra.mxu0 %v626
      %645 = vmatprep.subr.mxu0 0.0
      %646 = vmatpush1.msra.mxu0 %v627
      %647 = vmatprep.subr.mxu0 0.0
      %648 = vmatpush1.msra.mxu0 %v628
      %649 = vmatprep.subr.mxu0 0.0
      %650 = vmatpush1.msra.mxu0 %v629
      %651 = vmatprep.subr.mxu0 0.0
      %652 = vmatpush1.msra.mxu0 %v630
      %653 = vmatprep.subr.mxu0 0.0
      %654 = vmatpush1.msra.mxu0 %v631
      %655 = vmatprep.subr.mxu0 0.0
      %656 = vmatpush1.msra.mxu0 %v632
      %657 = vmatprep.subr.mxu0 0.0
      %658 = vmatpush1.msra.mxu0 %v633
      %659 = vmatprep.subr.mxu0 0.0
      %660 = vmatpush1.msra.mxu0 %v634
      %661 = vmatprep.subr.mxu0 0.0
      %662 = vmatpush1.msra.mxu0 %v635
      %663 = vmatprep.subr.mxu0 0.0
      %664 = vmatpush1.msra.mxu0 0.0
      %665 = vmatprep.subr.mxu0 0.0
      %666 = vmatpush1.msra.mxu0 0.0
      %667 = vmatprep.subr.mxu0 0.0
      %668 = vmatpush1.msra.mxu0 0.0
      %669 = vmatprep.subr.mxu0 0.0
      %670 = vmatpush1.msra.mxu0 0.0
      %671 = vmatprep.subr.mxu0 0.0
      %672 = vmatpush1.msra.mxu0 0.0
      %673 = vmatprep.subr.mxu0 0.0
      %674 = vmatpush1.msra.mxu0 0.0
      %675 = vmatprep.subr.mxu0 0.0
      %676 = vmatpush1.msra.mxu0 0.0
      %677 = vmatprep.subr.mxu0 0.0
      %678 = vmatpush1.msra.mxu0 0.0
      %679 = vmatprep.subr.mxu0 0.0
      %680 = vmatpush1.msra.mxu0 0.0
      %681 = vmatprep.subr.mxu0 0.0
      %682 = vmatpush1.msra.mxu0 0.0
      %683 = vmatprep.subr.mxu0 0.0
      %684 = vmatpush1.msra.mxu0 0.0
      %685 = vmatprep.subr.mxu0 0.0
      %686 = vmatpush1.msra.mxu0 0.0
      %687 = vmatprep.subr.mxu0 0.0
      %688 = vmatpush1.msra.mxu0 0.0
      %689 = vmatprep.subr.mxu0 0.0
      %690 = vmatpush1.msra.mxu0 0.0
      %691 = vmatprep.subr.mxu0 0.0
      %692 = vmatpush1.msra.mxu0 0.0
      %693 = vmatprep.subr.mxu0 0.0
      %694 = vmatpush1.msra.mxu0 0.0
      %695 = vmatprep.subr.mxu0 0.0
      %696 = vmatpush1.msra.mxu0 0.0
      %697 = vmatprep.subr.mxu0 0.0
      %698 = vmatpush1.msra.mxu0 0.0
      %699 = vmatprep.subr.mxu0 0.0
      %700 = vmatpush1.msra.mxu0 0.0
      %701 = vmatprep.subr.mxu0 0.0
      %702 = vmatpush1.msra.mxu0 0.0
      %703 = vmatprep.mubr.f32.mxu0 0.0
      %704 = vmatmul.mubr.f32.gmra.mrb[0].mxu0 %v637
      %v705 = vpop.f32.mrb[0].mxu0
      %v706 = vadd.f32 0.0, %v705
      %v707 = vpop.f32.mrb[0].mxu0
      %708 = vdwg.mxu0
      %v709 = vadd.f32 %v609, %v706
      %710 = vmatprep.subr.mxu0 0.0
      %711 = vmatpush1.msra.mxu0 %v424
      %712 = vmatprep.subr.mxu0 0.0
      %713 = vmatpush1.msra.mxu0 %v425
      %714 = vmatprep.subr.mxu0 0.0
      %715 = vmatpush1.msra.mxu0 %v426
      %716 = vmatprep.subr.mxu0 0.0
      %717 = vmatpush1.msra.mxu0 %v427
      %718 = vmatprep.subr.mxu0 0.0
      %719 = vmatpush1.msra.mxu0 %v428
      %720 = vmatprep.subr.mxu0 0.0
      %721 = vmatpush1.msra.mxu0 %v429
      %722 = vmatprep.subr.mxu0 0.0
      %723 = vmatpush1.msra.mxu0 %v430
      %724 = vmatprep.subr.mxu0 0.0
      %725 = vmatpush1.msra.mxu0 %v431
      %726 = vmatprep.subr.mxu0 0.0
      %727 = vmatpush1.msra.mxu0 %v432
      %728 = vmatprep.subr.mxu0 0.0
      %729 = vmatpush1.msra.mxu0 %v433
      %730 = vmatprep.subr.mxu0 0.0
      %731 = vmatpush1.msra.mxu0 %v434
      %732 = vmatprep.subr.mxu0 0.0
      %733 = vmatpush1.msra.mxu0 %v435
      %734 = vmatprep.subr.mxu0 0.0
      %735 = vmatpush1.msra.mxu0 0.0
      %736 = vmatprep.subr.mxu0 0.0
      %737 = vmatpush1.msra.mxu0 0.0
      %738 = vmatprep.subr.mxu0 0.0
      %739 = vmatpush1.msra.mxu0 0.0
      %740 = vmatprep.subr.mxu0 0.0
      %741 = vmatpush1.msra.mxu0 0.0
      %742 = vmatprep.subr.mxu0 0.0
      %743 = vmatpush1.msra.mxu0 0.0
      %744 = vmatprep.subr.mxu0 0.0
      %745 = vmatpush1.msra.mxu0 0.0
      %746 = vmatprep.subr.mxu0 0.0
      %747 = vmatpush1.msra.mxu0 0.0
      %748 = vmatprep.subr.mxu0 0.0
      %749 = vmatpush1.msra.mxu0 0.0
      %750 = vmatprep.subr.mxu0 0.0
      %751 = vmatpush1.msra.mxu0 0.0
      %752 = vmatprep.subr.mxu0 0.0
      %753 = vmatpush1.msra.mxu0 0.0
      %754 = vmatprep.subr.mxu0 0.0
      %755 = vmatpush1.msra.mxu0 0.0
      %756 = vmatprep.subr.mxu0 0.0
      %757 = vmatpush1.msra.mxu0 0.0
      %758 = vmatprep.subr.mxu0 0.0
      %759 = vmatpush1.msra.mxu0 0.0
      %760 = vmatprep.subr.mxu0 0.0
      %761 = vmatpush1.msra.mxu0 0.0
      %762 = vmatprep.subr.mxu0 0.0
      %763 = vmatpush1.msra.mxu0 0.0
      %764 = vmatprep.subr.mxu0 0.0
      %765 = vmatpush1.msra.mxu0 0.0
      %766 = vmatprep.subr.mxu0 0.0
      %767 = vmatpush1.msra.mxu0 0.0
      %768 = vmatprep.subr.mxu0 0.0
      %769 = vmatpush1.msra.mxu0 0.0
      %770 = vmatprep.subr.mxu0 0.0
      %771 = vmatpush1.msra.mxu0 0.0
      %772 = vmatprep.subr.mxu0 0.0
      %773 = vmatpush1.msra.mxu0 0.0
      %774 = vmatprep.mubr.f32.mxu0 0.0
      %775 = vmatmul.mubr.f32.gmra.mrb[0].mxu0 %v537
      %v776 = vpop.f32.mrb[0].mxu0
      %v777 = vadd.f32 0.0, %v776
      %v778 = vpop.f32.mrb[0].mxu0
      %779 = vdwg.mxu0
      %v780 = vadd.f32 %v408, %v777
      %781 = vmatprep.subr.mxu0 0.0
      %782 = vmatpush1.msra.mxu0 %v524
      %783 = vmatprep.subr.mxu0 0.0
      %784 = vmatpush1.msra.mxu0 %v525
      %785 = vmatprep.subr.mxu0 0.0
      %786 = vmatpush1.msra.mxu0 %v526
      %787 = vmatprep.subr.mxu0 0.0
      %788 = vmatpush1.msra.mxu0 %v527
      %789 = vmatprep.subr.mxu0 0.0
      %790 = vmatpush1.msra.mxu0 %v528
      %791 = vmatprep.subr.mxu0 0.0
      %792 = vmatpush1.msra.mxu0 %v529
      %793 = vmatprep.subr.mxu0 0.0
      %794 = vmatpush1.msra.mxu0 %v530
      %795 = vmatprep.subr.mxu0 0.0
      %796 = vmatpush1.msra.mxu0 %v531
      %797 = vmatprep.subr.mxu0 0.0
      %798 = vmatpush1.msra.mxu0 %v532
      %799 = vmatprep.subr.mxu0 0.0
      %800 = vmatpush1.msra.mxu0 %v533
      %801 = vmatprep.subr.mxu0 0.0
      %802 = vmatpush1.msra.mxu0 %v534
      %803 = vmatprep.subr.mxu0 0.0
      %804 = vmatpush1.msra.mxu0 %v535
      %805 = vmatprep.subr.mxu0 0.0
      %806 = vmatpush1.msra.mxu0 0.0
      %807 = vmatprep.subr.mxu0 0.0
      %808 = vmatpush1.msra.mxu0 0.0
      %809 = vmatprep.subr.mxu0 0.0
      %810 = vmatpush1.msra.mxu0 0.0
      %811 = vmatprep.subr.mxu0 0.0
      %812 = vmatpush1.msra.mxu0 0.0
      %813 = vmatprep.subr.mxu0 0.0
      %814 = vmatpush1.msra.mxu0 0.0
      %815 = vmatprep.subr.mxu0 0.0
      %816 = vmatpush1.msra.mxu0 0.0
      %817 = vmatprep.subr.mxu0 0.0
      %818 = vmatpush1.msra.mxu0 0.0
      %819 = vmatprep.subr.mxu0 0.0
      %820 = vmatpush1.msra.mxu0 0.0
      %821 = vmatprep.subr.mxu0 0.0
      %822 = vmatpush1.msra.mxu0 0.0
      %823 = vmatprep.subr.mxu0 0.0
      %824 = vmatpush1.msra.mxu0 0.0
      %825 = vmatprep.subr.mxu0 0.0
      %826 = vmatpush1.msra.mxu0 0.0
      %827 = vmatprep.subr.mxu0 0.0
      %828 = vmatpush1.msra.mxu0 0.0
      %829 = vmatprep.subr.mxu0 0.0
      %830 = vmatpush1.msra.mxu0 0.0
      %831 = vmatprep.subr.mxu0 0.0
      %832 = vmatpush1.msra.mxu0 0.0
      %833 = vmatprep.subr.mxu0 0.0
      %834 = vmatpush1.msra.mxu0 0.0
      %835 = vmatprep.subr.mxu0 0.0
      %836 = vmatpush1.msra.mxu0 0.0
      %837 = vmatprep.subr.mxu0 0.0
      %838 = vmatpush1.msra.mxu0 0.0
      %839 = vmatprep.subr.mxu0 0.0
      %840 = vmatpush1.msra.mxu0 0.0
      %841 = vmatprep.subr.mxu0 0.0
      %842 = vmatpush1.msra.mxu0 0.0
      %843 = vmatprep.subr.mxu0 0.0
      %844 = vmatpush1.msra.mxu0 0.0
      %845 = vmatprep.mubr.f32.mxu0 0.0
      %846 = vmatmul.mubr.f32.gmra.mrb[0].mxu0 %v637
      %v847 = vpop.f32.mrb[0].mxu0
      %v848 = vadd.f32 0.0, %v847
      %v849 = vpop.f32.mrb[0].mxu0
      %850 = vdwg.mxu0
      %v851 = vadd.f32 %v780, %v848
      %s852 = scalar_lea.vmem [#allocation2], 24
      %v853 = vld [vmem:[%s852] sm:$0x3f]
      %v855 = vrot.slane %v853, 1
      %856 = vrot.lane.b32.xlu0 %v855, 32
      %v857 = vpop.permute.xlu0 %856
      %v859 = vrot.slane %v853, 2
      %860 = vrot.lane.b32.xlu0 %v859, 64
      %v861 = vpop.permute.xlu0 %860
      %v863 = vsel %vm420, %v853, %v857
      %v864 = vsel %vm422, %v863, %v861
      %v866 = vsel %vm436, %v864, 0
      %868 = vmatprep.subr.mxu0 0.0
      %869 = vmatpush1.msra.mxu0 %v624
      %870 = vmatprep.subr.mxu0 0.0
      %871 = vmatpush1.msra.mxu0 %v625
      %872 = vmatprep.subr.mxu0 0.0
      %873 = vmatpush1.msra.mxu0 %v626
      %874 = vmatprep.subr.mxu0 0.0
      %875 = vmatpush1.msra.mxu0 %v627
      %876 = vmatprep.subr.mxu0 0.0
      %877 = vmatpush1.msra.mxu0 %v628
      %878 = vmatprep.subr.mxu0 0.0
      %879 = vmatpush1.msra.mxu0 %v629
      %880 = vmatprep.subr.mxu0 0.0
      %881 = vmatpush1.msra.mxu0 %v630
      %882 = vmatprep.subr.mxu0 0.0
      %883 = vmatpush1.msra.mxu0 %v631
      %884 = vmatprep.subr.mxu0 0.0
      %885 = vmatpush1.msra.mxu0 %v632
      %886 = vmatprep.subr.mxu0 0.0
      %887 = vmatpush1.msra.mxu0 %v633
      %888 = vmatprep.subr.mxu0 0.0
      %889 = vmatpush1.msra.mxu0 %v634
      %890 = vmatprep.subr.mxu0 0.0
      %891 = vmatpush1.msra.mxu0 %v635
      %892 = vmatprep.subr.mxu0 0.0
      %893 = vmatpush1.msra.mxu0 0.0
      %894 = vmatprep.subr.mxu0 0.0
      %895 = vmatpush1.msra.mxu0 0.0
      %896 = vmatprep.subr.mxu0 0.0
      %897 = vmatpush1.msra.mxu0 0.0
      %898 = vmatprep.subr.mxu0 0.0
      %899 = vmatpush1.msra.mxu0 0.0
      %900 = vmatprep.subr.mxu0 0.0
      %901 = vmatpush1.msra.mxu0 0.0
      %902 = vmatprep.subr.mxu0 0.0
      %903 = vmatpush1.msra.mxu0 0.0
      %904 = vmatprep.subr.mxu0 0.0
      %905 = vmatpush1.msra.mxu0 0.0
      %906 = vmatprep.subr.mxu0 0.0
      %907 = vmatpush1.msra.mxu0 0.0
      %908 = vmatprep.subr.mxu0 0.0
      %909 = vmatpush1.msra.mxu0 0.0
      %910 = vmatprep.subr.mxu0 0.0
      %911 = vmatpush1.msra.mxu0 0.0
      %912 = vmatprep.subr.mxu0 0.0
      %913 = vmatpush1.msra.mxu0 0.0
      %914 = vmatprep.subr.mxu0 0.0
      %915 = vmatpush1.msra.mxu0 0.0
      %916 = vmatprep.subr.mxu0 0.0
      %917 = vmatpush1.msra.mxu0 0.0
      %918 = vmatprep.subr.mxu0 0.0
      %919 = vmatpush1.msra.mxu0 0.0
      %920 = vmatprep.subr.mxu0 0.0
      %921 = vmatpush1.msra.mxu0 0.0
      %922 = vmatprep.subr.mxu0 0.0
      %923 = vmatpush1.msra.mxu0 0.0
      %924 = vmatprep.subr.mxu0 0.0
      %925 = vmatpush1.msra.mxu0 0.0
      %926 = vmatprep.subr.mxu0 0.0
      %927 = vmatpush1.msra.mxu0 0.0
      %928 = vmatprep.subr.mxu0 0.0
      %929 = vmatpush1.msra.mxu0 0.0
      %930 = vmatprep.subr.mxu0 0.0
      %931 = vmatpush1.msra.mxu0 0.0
      %932 = vmatprep.mubr.f32.mxu0 0.0
      %933 = vmatmul.mubr.f32.gmra.mrb[0].mxu0 %v866
      %v934 = vpop.f32.mrb[0].mxu0
      %v935 = vadd.f32 0.0, %v934
      %v936 = vpop.f32.mrb[0].mxu0
      %937 = vdwg.mxu0
      %v938 = vadd.f32 %v851, %v935
      %v939 = vmax.f32 %v709, %v938
      %v940 = vmax.f32 %v939, 0.0
      %941 = vst.msk [vmem:[#allocation3] sm:$0xf] %vm387, %v940
      %v942 = vld [vmem:[#allocation3] ss:$2 sm:$0x3]
      %s943 = scalar_lea.vmem [#allocation3], 1
      %v944 = vld [vmem:[%s943] ss:$2 sm:$0x3]
      %v945 = vmax.f32 %v942, %v944
      %vm946 = vcmask 254976
      %947 = vst.msk [vmem:[%s378] sm:$0x3] %vm946, %v945
      %p948 = scmp.lt.s32.totalorder %s20, 1
      %s949 = scalar_select %p948, %s20, 1
      %p950 = scmp.lt.s32.totalorder %s21, 1
      %s951 = scalar_select %p950, %s21, 1
      %s952 = smul.addr %s949, 2
      %s953 = sadd.s32 %s951, %s952
      %s954 = smul.addr %s953, 2
      %s955 = scalar_lea.vmem %s5, %s954
      // Predicated region
      $region49: #{music_cnn_forward.6} parent=39 // pred_check
        %p956 = pneg %p190
      $region50: #{music_cnn_forward.6} parent=39 // pred_check_branch
        %958 = sbr.rel (%p956) target = $region52
      $region51: #{music_cnn_forward.6} parent=39 // pred_region
        _
      $region52: #{music_cnn_forward.6} parent=39 // pred_fallthru
        _
    $region40: #{music_cnn_forward.6} parent=5 // pred_fallthru
      _
    %p959 = scmp.le.s32.totalorder 2, %s11
    // Predicated region
    $region53: #{music_cnn_forward.6} parent=5 // pred_check
      %p960 = pneg %p959
    $region54: #{music_cnn_forward.6} parent=5 // pred_check_branch
      %962 = sbr.rel (%p960) target = $region56
    $region55: #{music_cnn_forward.6} parent=5 // pred_region
      %s963 = ssub.s32 %s11, 2
      // Predicated region
      $region57: #{music_cnn_forward.6} parent=55 // pred_check
        %p964 = pneg %p196
      $region58: #{music_cnn_forward.6} parent=55 // pred_check_branch
        %966 = sbr.rel (%p964) target = $region60
      $region59: #{music_cnn_forward.6} parent=55 // pred_region
        %p967 = scmp.lt.s32.totalorder %s22, 1
        %s968 = scalar_select %p967, %s22, 1
        %p969 = scmp.lt.s32.totalorder %s23, 1
        %s970 = scalar_select %p969, %s23, 1
        %s971 = smul.addr %s968, 2
        %s972 = sadd.s32 %s970, %s971
        %s973 = smul.addr %s972, 2
        %s974 = scalar_lea.vmem %s5, %s973
      $region60: #{music_cnn_forward.6} parent=55 // pred_fallthru
        _
    $region56: #{music_cnn_forward.6} parent=5 // pred_fallthru
      _
  $region6: #{music_cnn_forward.6} parent=0 // loop_footer
    %s15 = sadd.s32 1, %s11
  $region7: #{music_cnn_forward.6} parent=0 // loop_footer_branch
    %10 = sbr.rel target = $region3
  $region8: #{music_cnn_forward.6} parent=0 // loop_exit
    _

</llo_original>
